<compile_context>
chip_gen: v7x
topology: tpu7x:2x2x1
jax: 0.10.0
libtpu: 0.0.40
codegen_flags: <defaults>
</compile_context>

<pallas_src>
import jax
import jax.numpy as jnp
from jax.experimental import pallas as pl
from jax.experimental.pallas import tpu as pltpu

N, C_IN, C_MID, C_OUT = 1, 736, 128, 32
H = W = 14
P = H * W                       # 196 pixels (lanes)
EPS = 1e-5


def fused_kernel(x_ref, w1_ref, gb_ref, w2_ref, m_ref, o_ref):
    # ---- 1x1 conv: single full-K contraction (bf16 MXU operands, f32 accumulate) ----
    x_bf = x_ref[...].astype(jnp.bfloat16)                       # (C_IN, P)
    y = jnp.dot(w1_ref[...], x_bf,                               # (C_MID, C_IN) @ (C_IN, P)
                preferred_element_type=jnp.float32)              # (C_MID, P) f32

    # ---- BatchNorm2d (training mode: batch mean / biased variance), all f32 ----
    inv_p = 1.0 / P
    s1 = jnp.sum(y, axis=1, keepdims=True)                       # (C_MID, 1)
    s2 = jnp.sum(y * y, axis=1, keepdims=True)                   # (C_MID, 1)
    mean = s1 * inv_p
    var = s2 * inv_p - mean * mean
    gamma = gb_ref[:, 0:1]                                       # (C_MID, 1)
    beta = gb_ref[:, 1:2]                                        # (C_MID, 1)
    scale = gamma * jax.lax.rsqrt(var + EPS)
    shift = beta - mean * scale
    h = jnp.maximum(y * scale + shift, 0.0)                      # ReLU, (C_MID, P) f32

    # ---- 3x3 conv (stride 1, pad 1) as 9 accumulating MXU matmuls ----
    # For tap (dy, dx): out[:, p] += mask_t[p] * (w2[:, :, dy, dx] @ h[:, p + (dy-1)*W + (dx-1)]).
    # The lane shift is a rotation (two static slices + concat); wrap-around / out-of-image
    # positions are zeroed by the precomputed per-output-pixel mask AFTER the matmul.
    acc = None
    for dy in range(3):
        for dx in range(3):
            t = 3 * dy + dx
            s = ((dy - 1) * W + (dx - 1)) % P
            if s == 0:
                rot = h
            else:
                rot = jnp.concatenate([h[:, s:], h[:, :s]], axis=1)
            contrib = m_ref[t] * jnp.dot(w2_ref[t], rot.astype(jnp.bfloat16),
                                         preferred_element_type=jnp.float32)
            acc = contrib if acc is None else acc + contrib
    o_ref[...] = acc                                             # (C_OUT, P) f32


def prepare_params(w1, gamma, beta, w2):
    """One-time (hoisted) weight/param preparation — no per-call XLA shuffles."""
    # 1x1 conv weight as a single (C_MID, C_IN) bf16 block for the MXU.
    w1b = w1.reshape(C_MID, C_IN).astype(jnp.bfloat16)
    # 3x3 conv weight as 9 (C_OUT, C_MID) bf16 taps, tap index = 3*dy + dx.
    w2t = jnp.transpose(w2, (2, 3, 0, 1)).reshape(9, C_OUT, C_MID).astype(jnp.bfloat16)
    # gamma/beta merged into one (C_MID, 2) f32 block (col 0 = gamma, col 1 = beta).
    gb = jnp.stack([gamma, beta], axis=1).astype(jnp.float32)
    # Per-tap validity masks over the P=H*W lane axis (zero out-of-image taps / wrap-around).
    hh = jnp.arange(P) // W
    ww = jnp.arange(P) % W
    masks = []
    for dy in range(3):
        for dx in range(3):
            valid = ((hh + dy - 1 >= 0) & (hh + dy - 1 < H) &
                     (ww + dx - 1 >= 0) & (ww + dx - 1 < W))
            masks.append(valid)
    tap_masks = jnp.stack(masks).astype(jnp.float32).reshape(9, 1, P)
    return w1b, gb, w2t, tap_masks


@jax.jit
def forward(x_nchw, params):
    w1b, gb, w2t, tap_masks = params
    x2d = x_nchw.reshape(C_IN, P)                                # free reshape (no transpose)
    vmem = pltpu.MemorySpace.VMEM
    out = pl.pallas_call(
        fused_kernel,
        out_shape=jax.ShapeDtypeStruct((C_OUT, P), jnp.float32),
        in_specs=[
            pl.BlockSpec(memory_space=vmem),   # x   (C_IN, P) f32
            pl.BlockSpec(memory_space=vmem),   # w1  (C_MID, C_IN) bf16
            pl.BlockSpec(memory_space=vmem),   # gamma/beta (C_MID, 2) f32
            pl.BlockSpec(memory_space=vmem),   # w2 taps (9, C_OUT, C_MID) bf16
            pl.BlockSpec(memory_space=vmem),   # border masks (9, 1, P) f32
        ],
        out_specs=pl.BlockSpec(memory_space=vmem),
    )(x2d, w1b, gb, w2t, tap_masks)
    return out.reshape(N, C_OUT, H, W)                           # free reshape back to NCHW


def reference(x_nchw, w1, gamma, beta, w2):
    # Pure-JAX reference (same semantics as the PyTorch module in training mode).
    y = jax.lax.conv_general_dilated(
        x_nchw, w1, (1, 1), "VALID", dimension_numbers=("NCHW", "OIHW", "NCHW"))
    mean = jnp.mean(y, axis=(0, 2, 3), keepdims=True)
    var = jnp.mean(jnp.square(y - mean), axis=(0, 2, 3), keepdims=True)
    h = (y - mean) * jax.lax.rsqrt(var + EPS)
    h = h * gamma.reshape(1, -1, 1, 1) + beta.reshape(1, -1, 1, 1)
    h = jnp.maximum(h, 0.0)
    return jax.lax.conv_general_dilated(
        h, w2, (1, 1), ((1, 1), (1, 1)), dimension_numbers=("NCHW", "OIHW", "NCHW"))


if __name__ == "__main__":
    key = jax.random.PRNGKey(0)
    kx, k1, k2 = jax.random.split(key, 3)
    # Input matches the module: torch.Size([1, 736, 14, 14])
    x = jax.random.normal(kx, (N, C_IN, H, W), jnp.float32)
    # Deterministic He-style init (synthetic weights, no checkpoint load)
    w1 = jax.random.normal(k1, (C_MID, C_IN, 1, 1), jnp.float32) * (2.0 / C_IN) ** 0.5
    w2 = jax.random.normal(k2, (C_OUT, C_MID, 3, 3), jnp.float32) * (2.0 / (C_MID * 9)) ** 0.5
    gamma = jnp.ones((C_MID,), jnp.float32)   # BatchNorm2d affine init
    beta = jnp.zeros((C_MID,), jnp.float32)

    params = prepare_params(w1, gamma, beta, w2)   # hoisted: runs once, not per call

    out = jax.block_until_ready(forward(x, params))
    ref = jax.block_until_ready(reference(x, w1, gamma, beta, w2))
    assert out.shape == (N, C_OUT, H, W), out.shape
    err = float(jnp.max(jnp.abs(out - ref)))
    assert err < 5e-2, f"max abs error too large: {err}"
    print("KERNEL_OK")
</pallas_src>

<mosaic_0001>
module attributes {stable_mosaic.version = 11 : i64} {
  func.func @fused_kernel(%arg0: memref<736x196xf32, #tpu.memory_space<vmem>>, %arg1: memref<128x736xbf16, #tpu.memory_space<vmem>>, %arg2: memref<128x2xf32, #tpu.memory_space<vmem>>, %arg3: memref<9x32x128xbf16, #tpu.memory_space<vmem>>, %arg4: memref<9x1x196xf32, #tpu.memory_space<vmem>>, %arg5: memref<32x196xf32, #tpu.memory_space<vmem>>) attributes {dimension_semantics = [], scalar_prefetch = 0 : i64, scratch_operands = 0 : i64, tpu.core_type = #tpu.core_type<tc>} {
    %c0 = arith.constant 0 : index
    %c0_0 = arith.constant 0 : index
    %0 = vector.load %arg0[%c0, %c0_0] : memref<736x196xf32, #tpu.memory_space<vmem>>, vector<736x196xf32>
    %1 = arith.truncf %0 : vector<736x196xf32> to vector<736x196xbf16>
    %c0_1 = arith.constant 0 : index
    %c0_2 = arith.constant 0 : index
    %2 = vector.load %arg1[%c0_1, %c0_2] : memref<128x736xbf16, #tpu.memory_space<vmem>>, vector<128x736xbf16>
    %cst = arith.constant dense<0.000000e+00> : vector<128x196xf32>
    %3 = tpu.matmul %2, %1, %cst {dimension_numbers = #tpu.dot_dimension_numbers<[1], [0], [0], [1], [0, 0, 1, 1], [], []>} : vector<128x736xbf16>, vector<736x196xbf16>, vector<128x196xf32> -> vector<128x196xf32>
    %cst_3 = arith.constant dense<0.000000e+00> : vector<128xf32>
    %4 = vector.multi_reduction <add>, %3, %cst_3 [1] : vector<128x196xf32> to vector<128xf32>
    %5 = vector.shape_cast %4 : vector<128xf32> to vector<128x1xf32>
    %6 = arith.mulf %3, %3 : vector<128x196xf32>
    %cst_4 = arith.constant dense<0.000000e+00> : vector<128xf32>
    %7 = vector.multi_reduction <add>, %6, %cst_4 [1] : vector<128x196xf32> to vector<128xf32>
    %8 = vector.shape_cast %7 : vector<128xf32> to vector<128x1xf32>
    %cst_5 = arith.constant 0.00510204071 : f32
    %9 = vector.broadcast %cst_5 : f32 to vector<128x1xf32>
    %10 = arith.mulf %5, %9 : vector<128x1xf32>
    %cst_6 = arith.constant 0.00510204071 : f32
    %11 = vector.broadcast %cst_6 : f32 to vector<128x1xf32>
    %12 = arith.mulf %8, %11 : vector<128x1xf32>
    %13 = arith.mulf %10, %10 : vector<128x1xf32>
    %14 = arith.subf %12, %13 : vector<128x1xf32>
    %c0_7 = arith.constant 0 : index
    %c0_8 = arith.constant 0 : index
    %15 = vector.load %arg2[%c0_7, %c0_8] : memref<128x2xf32, #tpu.memory_space<vmem>>, vector<128x1xf32>
    %c0_9 = arith.constant 0 : index
    %c1 = arith.constant 1 : index
    %16 = vector.load %arg2[%c0_9, %c1] : memref<128x2xf32, #tpu.memory_space<vmem>>, vector<128x1xf32>
    %cst_10 = arith.constant 9.99999974E-6 : f32
    %17 = vector.broadcast %cst_10 : f32 to vector<128x1xf32>
    %18 = arith.addf %14, %17 : vector<128x1xf32>
    %19 = math.rsqrt %18 : vector<128x1xf32>
    %20 = arith.mulf %15, %19 : vector<128x1xf32>
    %21 = arith.mulf %10, %20 : vector<128x1xf32>
    %22 = arith.subf %16, %21 : vector<128x1xf32>
    %23 = vector.broadcast %20 : vector<128x1xf32> to vector<128x196xf32>
    %24 = arith.mulf %3, %23 : vector<128x196xf32>
    %25 = vector.broadcast %22 : vector<128x1xf32> to vector<128x196xf32>
    %26 = arith.addf %24, %25 : vector<128x196xf32>
    %cst_11 = arith.constant 0.000000e+00 : f32
    %27 = vector.broadcast %cst_11 : f32 to vector<128x196xf32>
    %28 = arith.maximumf %26, %27 : vector<128x196xf32>
    %29 = vector.extract_strided_slice %28 {offsets = [0, 181], sizes = [128, 15], strides = [1, 1]} : vector<128x196xf32> to vector<128x15xf32>
    %30 = vector.extract_strided_slice %28 {offsets = [0, 0], sizes = [128, 181], strides = [1, 1]} : vector<128x196xf32> to vector<128x181xf32>
    %31 = tpu.concatenate %29, %30 in 1 : vector<128x15xf32>, vector<128x181xf32> -> vector<128x196xf32>
    %c0_12 = arith.constant 0 : index
    %c0_13 = arith.constant 0 : index
    %c0_14 = arith.constant 0 : index
    %32 = vector.load %arg4[%c0_12, %c0_13, %c0_14] : memref<9x1x196xf32, #tpu.memory_space<vmem>>, vector<1x1x196xf32>
    %33 = vector.shape_cast %32 : vector<1x1x196xf32> to vector<1x196xf32>
    %c0_15 = arith.constant 0 : index
    %c0_16 = arith.constant 0 : index
    %c0_17 = arith.constant 0 : index
    %34 = vector.load %arg3[%c0_15, %c0_16, %c0_17] : memref<9x32x128xbf16, #tpu.memory_space<vmem>>, vector<1x32x128xbf16>
    %35 = vector.shape_cast %34 : vector<1x32x128xbf16> to vector<32x128xbf16>
    %36 = arith.truncf %31 : vector<128x196xf32> to vector<128x196xbf16>
    %cst_18 = arith.constant dense<0.000000e+00> : vector<32x196xf32>
    %37 = tpu.matmul %35, %36, %cst_18 {dimension_numbers = #tpu.dot_dimension_numbers<[1], [0], [0], [1], [0, 0, 1, 1], [], []>} : vector<32x128xbf16>, vector<128x196xbf16>, vector<32x196xf32> -> vector<32x196xf32>
    %38 = vector.broadcast %33 : vector<1x196xf32> to vector<32x196xf32>
    %39 = arith.mulf %38, %37 : vector<32x196xf32>
    %40 = vector.extract_strided_slice %28 {offsets = [0, 182], sizes = [128, 14], strides = [1, 1]} : vector<128x196xf32> to vector<128x14xf32>
    %41 = vector.extract_strided_slice %28 {offsets = [0, 0], sizes = [128, 182], strides = [1, 1]} : vector<128x196xf32> to vector<128x182xf32>
    %42 = tpu.concatenate %40, %41 in 1 : vector<128x14xf32>, vector<128x182xf32> -> vector<128x196xf32>
    %c1_19 = arith.constant 1 : index
    %c0_20 = arith.constant 0 : index
    %c0_21 = arith.constant 0 : index
    %43 = vector.load %arg4[%c1_19, %c0_20, %c0_21] : memref<9x1x196xf32, #tpu.memory_space<vmem>>, vector<1x1x196xf32>
    %44 = vector.shape_cast %43 : vector<1x1x196xf32> to vector<1x196xf32>
    %c1_22 = arith.constant 1 : index
    %c0_23 = arith.constant 0 : index
    %c0_24 = arith.constant 0 : index
    %45 = vector.load %arg3[%c1_22, %c0_23, %c0_24] : memref<9x32x128xbf16, #tpu.memory_space<vmem>>, vector<1x32x128xbf16>
    %46 = vector.shape_cast %45 : vector<1x32x128xbf16> to vector<32x128xbf16>
    %47 = arith.truncf %42 : vector<128x196xf32> to vector<128x196xbf16>
    %cst_25 = arith.constant dense<0.000000e+00> : vector<32x196xf32>
    %48 = tpu.matmul %46, %47, %cst_25 {dimension_numbers = #tpu.dot_dimension_numbers<[1], [0], [0], [1], [0, 0, 1, 1], [], []>} : vector<32x128xbf16>, vector<128x196xbf16>, vector<32x196xf32> -> vector<32x196xf32>
    %49 = vector.broadcast %44 : vector<1x196xf32> to vector<32x196xf32>
    %50 = arith.mulf %49, %48 : vector<32x196xf32>
    %51 = arith.addf %39, %50 : vector<32x196xf32>
    %52 = vector.extract_strided_slice %28 {offsets = [0, 183], sizes = [128, 13], strides = [1, 1]} : vector<128x196xf32> to vector<128x13xf32>
    %53 = vector.extract_strided_slice %28 {offsets = [0, 0], sizes = [128, 183], strides = [1, 1]} : vector<128x196xf32> to vector<128x183xf32>
    %54 = tpu.concatenate %52, %53 in 1 : vector<128x13xf32>, vector<128x183xf32> -> vector<128x196xf32>
    %c2 = arith.constant 2 : index
    %c0_26 = arith.constant 0 : index
    %c0_27 = arith.constant 0 : index
    %55 = vector.load %arg4[%c2, %c0_26, %c0_27] : memref<9x1x196xf32, #tpu.memory_space<vmem>>, vector<1x1x196xf32>
    %56 = vector.shape_cast %55 : vector<1x1x196xf32> to vector<1x196xf32>
    %c2_28 = arith.constant 2 : index
    %c0_29 = arith.constant 0 : index
    %c0_30 = arith.constant 0 : index
    %57 = vector.load %arg3[%c2_28, %c0_29, %c0_30] : memref<9x32x128xbf16, #tpu.memory_space<vmem>>, vector<1x32x128xbf16>
    %58 = vector.shape_cast %57 : vector<1x32x128xbf16> to vector<32x128xbf16>
    %59 = arith.truncf %54 : vector<128x196xf32> to vector<128x196xbf16>
    %cst_31 = arith.constant dense<0.000000e+00> : vector<32x196xf32>
    %60 = tpu.matmul %58, %59, %cst_31 {dimension_numbers = #tpu.dot_dimension_numbers<[1], [0], [0], [1], [0, 0, 1, 1], [], []>} : vector<32x128xbf16>, vector<128x196xbf16>, vector<32x196xf32> -> vector<32x196xf32>
    %61 = vector.broadcast %56 : vector<1x196xf32> to vector<32x196xf32>
    %62 = arith.mulf %61, %60 : vector<32x196xf32>
    %63 = arith.addf %51, %62 : vector<32x196xf32>
    %64 = vector.extract_strided_slice %28 {offsets = [0, 195], sizes = [128, 1], strides = [1, 1]} : vector<128x196xf32> to vector<128x1xf32>
    %65 = vector.extract_strided_slice %28 {offsets = [0, 0], sizes = [128, 195], strides = [1, 1]} : vector<128x196xf32> to vector<128x195xf32>
    %66 = tpu.concatenate %64, %65 in 1 : vector<128x1xf32>, vector<128x195xf32> -> vector<128x196xf32>
    %c3 = arith.constant 3 : index
    %c0_32 = arith.constant 0 : index
    %c0_33 = arith.constant 0 : index
    %67 = vector.load %arg4[%c3, %c0_32, %c0_33] : memref<9x1x196xf32, #tpu.memory_space<vmem>>, vector<1x1x196xf32>
    %68 = vector.shape_cast %67 : vector<1x1x196xf32> to vector<1x196xf32>
    %c3_34 = arith.constant 3 : index
    %c0_35 = arith.constant 0 : index
    %c0_36 = arith.constant 0 : index
    %69 = vector.load %arg3[%c3_34, %c0_35, %c0_36] : memref<9x32x128xbf16, #tpu.memory_space<vmem>>, vector<1x32x128xbf16>
    %70 = vector.shape_cast %69 : vector<1x32x128xbf16> to vector<32x128xbf16>
    %71 = arith.truncf %66 : vector<128x196xf32> to vector<128x196xbf16>
    %cst_37 = arith.constant dense<0.000000e+00> : vector<32x196xf32>
    %72 = tpu.matmul %70, %71, %cst_37 {dimension_numbers = #tpu.dot_dimension_numbers<[1], [0], [0], [1], [0, 0, 1, 1], [], []>} : vector<32x128xbf16>, vector<128x196xbf16>, vector<32x196xf32> -> vector<32x196xf32>
    %73 = vector.broadcast %68 : vector<1x196xf32> to vector<32x196xf32>
    %74 = arith.mulf %73, %72 : vector<32x196xf32>
    %75 = arith.addf %63, %74 : vector<32x196xf32>
    %c4 = arith.constant 4 : index
    %c0_38 = arith.constant 0 : index
    %c0_39 = arith.constant 0 : index
    %76 = vector.load %arg4[%c4, %c0_38, %c0_39] : memref<9x1x196xf32, #tpu.memory_space<vmem>>, vector<1x1x196xf32>
    %77 = vector.shape_cast %76 : vector<1x1x196xf32> to vector<1x196xf32>
    %c4_40 = arith.constant 4 : index
    %c0_41 = arith.constant 0 : index
    %c0_42 = arith.constant 0 : index
    %78 = vector.load %arg3[%c4_40, %c0_41, %c0_42] : memref<9x32x128xbf16, #tpu.memory_space<vmem>>, vector<1x32x128xbf16>
    %79 = vector.shape_cast %78 : vector<1x32x128xbf16> to vector<32x128xbf16>
    %80 = arith.truncf %28 : vector<128x196xf32> to vector<128x196xbf16>
    %cst_43 = arith.constant dense<0.000000e+00> : vector<32x196xf32>
    %81 = tpu.matmul %79, %80, %cst_43 {dimension_numbers = #tpu.dot_dimension_numbers<[1], [0], [0], [1], [0, 0, 1, 1], [], []>} : vector<32x128xbf16>, vector<128x196xbf16>, vector<32x196xf32> -> vector<32x196xf32>
    %82 = vector.broadcast %77 : vector<1x196xf32> to vector<32x196xf32>
    %83 = arith.mulf %82, %81 : vector<32x196xf32>
    %84 = arith.addf %75, %83 : vector<32x196xf32>
    %85 = vector.extract_strided_slice %28 {offsets = [0, 1], sizes = [128, 195], strides = [1, 1]} : vector<128x196xf32> to vector<128x195xf32>
    %86 = vector.extract_strided_slice %28 {offsets = [0, 0], sizes = [128, 1], strides = [1, 1]} : vector<128x196xf32> to vector<128x1xf32>
    %87 = tpu.concatenate %85, %86 in 1 : vector<128x195xf32>, vector<128x1xf32> -> vector<128x196xf32>
    %c5 = arith.constant 5 : index
    %c0_44 = arith.constant 0 : index
    %c0_45 = arith.constant 0 : index
    %88 = vector.load %arg4[%c5, %c0_44, %c0_45] : memref<9x1x196xf32, #tpu.memory_space<vmem>>, vector<1x1x196xf32>
    %89 = vector.shape_cast %88 : vector<1x1x196xf32> to vector<1x196xf32>
    %c5_46 = arith.constant 5 : index
    %c0_47 = arith.constant 0 : index
    %c0_48 = arith.constant 0 : index
    %90 = vector.load %arg3[%c5_46, %c0_47, %c0_48] : memref<9x32x128xbf16, #tpu.memory_space<vmem>>, vector<1x32x128xbf16>
    %91 = vector.shape_cast %90 : vector<1x32x128xbf16> to vector<32x128xbf16>
    %92 = arith.truncf %87 : vector<128x196xf32> to vector<128x196xbf16>
    %cst_49 = arith.constant dense<0.000000e+00> : vector<32x196xf32>
    %93 = tpu.matmul %91, %92, %cst_49 {dimension_numbers = #tpu.dot_dimension_numbers<[1], [0], [0], [1], [0, 0, 1, 1], [], []>} : vector<32x128xbf16>, vector<128x196xbf16>, vector<32x196xf32> -> vector<32x196xf32>
    %94 = vector.broadcast %89 : vector<1x196xf32> to vector<32x196xf32>
    %95 = arith.mulf %94, %93 : vector<32x196xf32>
    %96 = arith.addf %84, %95 : vector<32x196xf32>
    %97 = vector.extract_strided_slice %28 {offsets = [0, 13], sizes = [128, 183], strides = [1, 1]} : vector<128x196xf32> to vector<128x183xf32>
    %98 = vector.extract_strided_slice %28 {offsets = [0, 0], sizes = [128, 13], strides = [1, 1]} : vector<128x196xf32> to vector<128x13xf32>
    %99 = tpu.concatenate %97, %98 in 1 : vector<128x183xf32>, vector<128x13xf32> -> vector<128x196xf32>
    %c6 = arith.constant 6 : index
    %c0_50 = arith.constant 0 : index
    %c0_51 = arith.constant 0 : index
    %100 = vector.load %arg4[%c6, %c0_50, %c0_51] : memref<9x1x196xf32, #tpu.memory_space<vmem>>, vector<1x1x196xf32>
    %101 = vector.shape_cast %100 : vector<1x1x196xf32> to vector<1x196xf32>
    %c6_52 = arith.constant 6 : index
    %c0_53 = arith.constant 0 : index
    %c0_54 = arith.constant 0 : index
    %102 = vector.load %arg3[%c6_52, %c0_53, %c0_54] : memref<9x32x128xbf16, #tpu.memory_space<vmem>>, vector<1x32x128xbf16>
    %103 = vector.shape_cast %102 : vector<1x32x128xbf16> to vector<32x128xbf16>
    %104 = arith.truncf %99 : vector<128x196xf32> to vector<128x196xbf16>
    %cst_55 = arith.constant dense<0.000000e+00> : vector<32x196xf32>
    %105 = tpu.matmul %103, %104, %cst_55 {dimension_numbers = #tpu.dot_dimension_numbers<[1], [0], [0], [1], [0, 0, 1, 1], [], []>} : vector<32x128xbf16>, vector<128x196xbf16>, vector<32x196xf32> -> vector<32x196xf32>
    %106 = vector.broadcast %101 : vector<1x196xf32> to vector<32x196xf32>
    %107 = arith.mulf %106, %105 : vector<32x196xf32>
    %108 = arith.addf %96, %107 : vector<32x196xf32>
    %109 = vector.extract_strided_slice %28 {offsets = [0, 14], sizes = [128, 182], strides = [1, 1]} : vector<128x196xf32> to vector<128x182xf32>
    %110 = vector.extract_strided_slice %28 {offsets = [0, 0], sizes = [128, 14], strides = [1, 1]} : vector<128x196xf32> to vector<128x14xf32>
    %111 = tpu.concatenate %109, %110 in 1 : vector<128x182xf32>, vector<128x14xf32> -> vector<128x196xf32>
    %c7 = arith.constant 7 : index
    %c0_56 = arith.constant 0 : index
    %c0_57 = arith.constant 0 : index
    %112 = vector.load %arg4[%c7, %c0_56, %c0_57] : memref<9x1x196xf32, #tpu.memory_space<vmem>>, vector<1x1x196xf32>
    %113 = vector.shape_cast %112 : vector<1x1x196xf32> to vector<1x196xf32>
    %c7_58 = arith.constant 7 : index
    %c0_59 = arith.constant 0 : index
    %c0_60 = arith.constant 0 : index
    %114 = vector.load %arg3[%c7_58, %c0_59, %c0_60] : memref<9x32x128xbf16, #tpu.memory_space<vmem>>, vector<1x32x128xbf16>
    %115 = vector.shape_cast %114 : vector<1x32x128xbf16> to vector<32x128xbf16>
    %116 = arith.truncf %111 : vector<128x196xf32> to vector<128x196xbf16>
    %cst_61 = arith.constant dense<0.000000e+00> : vector<32x196xf32>
    %117 = tpu.matmul %115, %116, %cst_61 {dimension_numbers = #tpu.dot_dimension_numbers<[1], [0], [0], [1], [0, 0, 1, 1], [], []>} : vector<32x128xbf16>, vector<128x196xbf16>, vector<32x196xf32> -> vector<32x196xf32>
    %118 = vector.broadcast %113 : vector<1x196xf32> to vector<32x196xf32>
    %119 = arith.mulf %118, %117 : vector<32x196xf32>
    %120 = arith.addf %108, %119 : vector<32x196xf32>
    %121 = vector.extract_strided_slice %28 {offsets = [0, 15], sizes = [128, 181], strides = [1, 1]} : vector<128x196xf32> to vector<128x181xf32>
    %122 = vector.extract_strided_slice %28 {offsets = [0, 0], sizes = [128, 15], strides = [1, 1]} : vector<128x196xf32> to vector<128x15xf32>
    %123 = tpu.concatenate %121, %122 in 1 : vector<128x181xf32>, vector<128x15xf32> -> vector<128x196xf32>
    %c8 = arith.constant 8 : index
    %c0_62 = arith.constant 0 : index
    %c0_63 = arith.constant 0 : index
    %124 = vector.load %arg4[%c8, %c0_62, %c0_63] : memref<9x1x196xf32, #tpu.memory_space<vmem>>, vector<1x1x196xf32>
    %125 = vector.shape_cast %124 : vector<1x1x196xf32> to vector<1x196xf32>
    %c8_64 = arith.constant 8 : index
    %c0_65 = arith.constant 0 : index
    %c0_66 = arith.constant 0 : index
    %126 = vector.load %arg3[%c8_64, %c0_65, %c0_66] : memref<9x32x128xbf16, #tpu.memory_space<vmem>>, vector<1x32x128xbf16>
    %127 = vector.shape_cast %126 : vector<1x32x128xbf16> to vector<32x128xbf16>
    %128 = arith.truncf %123 : vector<128x196xf32> to vector<128x196xbf16>
    %cst_67 = arith.constant dense<0.000000e+00> : vector<32x196xf32>
    %129 = tpu.matmul %127, %128, %cst_67 {dimension_numbers = #tpu.dot_dimension_numbers<[1], [0], [0], [1], [0, 0, 1, 1], [], []>} : vector<32x128xbf16>, vector<128x196xbf16>, vector<32x196xf32> -> vector<32x196xf32>
    %130 = vector.broadcast %125 : vector<1x196xf32> to vector<32x196xf32>
    %131 = arith.mulf %130, %129 : vector<32x196xf32>
    %132 = arith.addf %120, %131 : vector<32x196xf32>
    %c0_68 = arith.constant 0 : index
    %c0_69 = arith.constant 0 : index
    %133 = vector.load %arg5[%c0_68, %c0_69] : memref<32x196xf32, #tpu.memory_space<vmem>>, vector<32x196xf32>
    tpu.vector_store %arg5[%c0_68, %c0_69], %132 {strides = array<i32>} : memref<32x196xf32, #tpu.memory_space<vmem>>, vector<32x196xf32>,
    return
  }
}

</mosaic_0001>

<llo_original>
// kernel: forward.1
$region0: #{forward.1}
  #allocation0 [shape = 'u32[]', space=smem, size = 0x4, offset = 0x4, fixed_abs, tag = 'smem constant byte address 0x4 - core index']
  #allocation1 [shape = 'u32[144,128]{1,0:T(1,128)}', space=vmem, size = 0x12000, scoped, tag = 'internal scratch']
  %s0 = inlined_call_operand.vmem [shape: f32[736,196], index: 0, kind: input, shape index: {}]
  %s1 = inlined_call_operand.vmem [shape: bf16[128,736], index: 1, kind: input, shape index: {}]
  %s2 = inlined_call_operand.vmem [shape: f32[128,2], index: 2, kind: input, shape index: {}]
  %s3 = inlined_call_operand.vmem [shape: bf16[9,32,128], index: 3, kind: input, shape index: {}]
  %s4 = inlined_call_operand.vmem [shape: f32[9,1,196], index: 4, kind: input, shape index: {}]
  %s5 = inlined_call_operand.vmem [shape: f32[32,196], index: 5, kind: output, shape index: {}]
  %s6 = sld [smem:[#allocation0]]
  $region30: #{forward.1} parent=0
    _
  %s8 = ssub.s32 1, %s6
  %s9 = scalar_select 0, %s8, %s6
  // Predicated region
  $region2: #{forward.1} parent=0 // pred_check
    _
  $region3: #{forward.1} parent=0 // pred_check_branch
    %11 = sbr.rel (0) target = $region5
  $region4: #{forward.1} parent=0 // pred_region
    _
  $region5: #{forward.1} parent=0 // pred_fallthru
    _
  // Predicated region
  $region6: #{forward.1} parent=0 // pred_check
    _
  $region7: #{forward.1} parent=0 // pred_check_branch
    %13 = sbr.rel (0) target = $region9
  $region8: #{forward.1} parent=0 // pred_region
    _
  $region9: #{forward.1} parent=0 // pred_fallthru
    _
  // Predicated region
  $region10: #{forward.1} parent=0 // pred_check
    _
  $region11: #{forward.1} parent=0 // pred_check_branch
    %15 = sbr.rel (0) target = $region13
  $region12: #{forward.1} parent=0 // pred_region
    _
  $region13: #{forward.1} parent=0 // pred_fallthru
    _
  // Predicated region
  $region14: #{forward.1} parent=0 // pred_check
    _
  $region15: #{forward.1} parent=0 // pred_check_branch
    %17 = sbr.rel (0) target = $region17
  $region16: #{forward.1} parent=0 // pred_region
    _
  $region17: #{forward.1} parent=0 // pred_fallthru
    _
  // Predicated region
  $region18: #{forward.1} parent=0 // pred_check
    _
  $region19: #{forward.1} parent=0 // pred_check_branch
    %19 = sbr.rel (0) target = $region21
  $region20: #{forward.1} parent=0 // pred_region
    _
  $region21: #{forward.1} parent=0 // pred_fallthru
    _
  %v21 = vld [vmem:[%s0] sm:$0xff]
  %v22 = vld [vmem:[%s0 + $0x8] sm:$0xff]
  %v23 = vld [vmem:[%s0 + $0x10] sm:$0xff]
  %v24 = vld [vmem:[%s0 + $0x18] sm:$0xff]
  %v25 = vld [vmem:[%s0 + $0x20] sm:$0xff]
  %v26 = vld [vmem:[%s0 + $0x28] sm:$0xff]
  %v27 = vld [vmem:[%s0 + $0x30] sm:$0xff]
  %v28 = vld [vmem:[%s0 + $0x38] sm:$0xff]
  %v29 = vld [vmem:[%s0 + $0x40] sm:$0xff]
  %v30 = vld [vmem:[%s0 + $0x48] sm:$0xff]
  %v31 = vld [vmem:[%s0 + $0x50] sm:$0xff]
  %v32 = vld [vmem:[%s0 + $0x58] sm:$0xff]
  %v33 = vld [vmem:[%s0 + $0x60] sm:$0xff]
  %v34 = vld [vmem:[%s0 + $0x68] sm:$0xff]
  %v35 = vld [vmem:[%s0 + $0x70] sm:$0xff]
  %v36 = vld [vmem:[%s0 + $0x78] sm:$0xff]
  %v37 = vld [vmem:[%s0 + $0x80] sm:$0xff]
  %v38 = vld [vmem:[%s0 + $0x88] sm:$0xff]
  %v39 = vld [vmem:[%s0 + $0x90] sm:$0xff]
  %v40 = vld [vmem:[%s0 + $0x98] sm:$0xff]
  %v41 = vld [vmem:[%s0 + $0xa0] sm:$0xff]
  %v42 = vld [vmem:[%s0 + $0xa8] sm:$0xff]
  %v43 = vld [vmem:[%s0 + $0xb0] sm:$0xff]
  %v44 = vld [vmem:[%s0 + $0xb8] sm:$0xff]
  %v45 = vld [vmem:[%s0 + $0xc0] sm:$0xff]
  %v46 = vld [vmem:[%s0 + $0xc8] sm:$0xff]
  %v47 = vld [vmem:[%s0 + $0xd0] sm:$0xff]
  %v48 = vld [vmem:[%s0 + $0xd8] sm:$0xff]
  %v49 = vld [vmem:[%s0 + $0xe0] sm:$0xff]
  %v50 = vld [vmem:[%s0 + $0xe8] sm:$0xff]
  %v51 = vld [vmem:[%s0 + $0xf0] sm:$0xff]
  %v52 = vld [vmem:[%s0 + $0xf8] sm:$0xff]
  %v53 = vld [vmem:[%s0 + $0x100] sm:$0xff]
  %v54 = vld [vmem:[%s0 + $0x108] sm:$0xff]
  %v55 = vld [vmem:[%s0 + $0x110] sm:$0xff]
  %v56 = vld [vmem:[%s0 + $0x118] sm:$0xff]
  %v57 = vld [vmem:[%s0 + $0x120] sm:$0xff]
  %v58 = vld [vmem:[%s0 + $0x128] sm:$0xff]
  %v59 = vld [vmem:[%s0 + $0x130] sm:$0xff]
  %v60 = vld [vmem:[%s0 + $0x138] sm:$0xff]
  %v61 = vld [vmem:[%s0 + $0x140] sm:$0xff]
  %v62 = vld [vmem:[%s0 + $0x148] sm:$0xff]
  %v63 = vld [vmem:[%s0 + $0x150] sm:$0xff]
  %v64 = vld [vmem:[%s0 + $0x158] sm:$0xff]
  %v65 = vld [vmem:[%s0 + $0x160] sm:$0xff]
  %v66 = vld [vmem:[%s0 + $0x168] sm:$0xff]
  %v67 = vld [vmem:[%s0 + $0x170] sm:$0xff]
  %v68 = vld [vmem:[%s0 + $0x178] sm:$0xff]
  %v69 = vld [vmem:[%s0 + $0x180] sm:$0xff]
  %v70 = vld [vmem:[%s0 + $0x188] sm:$0xff]
  %v71 = vld [vmem:[%s0 + $0x190] sm:$0xff]
  %v72 = vld [vmem:[%s0 + $0x198] sm:$0xff]
  %v73 = vld [vmem:[%s0 + $0x1a0] sm:$0xff]
  %v74 = vld [vmem:[%s0 + $0x1a8] sm:$0xff]
  %v75 = vld [vmem:[%s0 + $0x1b0] sm:$0xff]
  %v76 = vld [vmem:[%s0 + $0x1b8] sm:$0xff]
  %v77 = vld [vmem:[%s0 + $0x1c0] sm:$0xff]
  %v78 = vld [vmem:[%s0 + $0x1c8] sm:$0xff]
  %v79 = vld [vmem:[%s0 + $0x1d0] sm:$0xff]
  %v80 = vld [vmem:[%s0 + $0x1d8] sm:$0xff]
  %v81 = vld [vmem:[%s0 + $0x1e0] sm:$0xff]
  %v82 = vld [vmem:[%s0 + $0x1e8] sm:$0xff]
  %v83 = vld [vmem:[%s0 + $0x1f0] sm:$0xff]
  %v84 = vld [vmem:[%s0 + $0x1f8] sm:$0xff]
  %v85 = vld [vmem:[%s0 + $0x200] sm:$0xff]
  %v86 = vld [vmem:[%s0 + $0x208] sm:$0xff]
  %v87 = vld [vmem:[%s0 + $0x210] sm:$0xff]
  %v88 = vld [vmem:[%s0 + $0x218] sm:$0xff]
  %v89 = vld [vmem:[%s0 + $0x220] sm:$0xff]
  %v90 = vld [vmem:[%s0 + $0x228] sm:$0xff]
  %v91 = vld [vmem:[%s0 + $0x230] sm:$0xff]
  %v92 = vld [vmem:[%s0 + $0x238] sm:$0xff]
  %v93 = vld [vmem:[%s0 + $0x240] sm:$0xff]
  %v94 = vld [vmem:[%s0 + $0x248] sm:$0xff]
  %v95 = vld [vmem:[%s0 + $0x250] sm:$0xff]
  %v96 = vld [vmem:[%s0 + $0x258] sm:$0xff]
  %v97 = vld [vmem:[%s0 + $0x260] sm:$0xff]
  %v98 = vld [vmem:[%s0 + $0x268] sm:$0xff]
  %v99 = vld [vmem:[%s0 + $0x270] sm:$0xff]
  %v100 = vld [vmem:[%s0 + $0x278] sm:$0xff]
  %v101 = vld [vmem:[%s0 + $0x280] sm:$0xff]
  %v102 = vld [vmem:[%s0 + $0x288] sm:$0xff]
  %v103 = vld [vmem:[%s0 + $0x290] sm:$0xff]
  %v104 = vld [vmem:[%s0 + $0x298] sm:$0xff]
  %v105 = vld [vmem:[%s0 + $0x2a0] sm:$0xff]
  %v106 = vld [vmem:[%s0 + $0x2a8] sm:$0xff]
  %v107 = vld [vmem:[%s0 + $0x2b0] sm:$0xff]
  %v108 = vld [vmem:[%s0 + $0x2b8] sm:$0xff]
  %v109 = vld [vmem:[%s0 + $0x2c0] sm:$0xff]
  %v110 = vld [vmem:[%s0 + $0x2c8] sm:$0xff]
  %v111 = vld [vmem:[%s0 + $0x2d0] sm:$0xff]
  %v112 = vld [vmem:[%s0 + $0x2d8] sm:$0xff]
  %v113 = vld [vmem:[%s0 + $0x2e0] sm:$0xff]
  %v114 = vld [vmem:[%s0 + $0x2e8] sm:$0xff]
  %v115 = vld [vmem:[%s0 + $0x2f0] sm:$0xff]
  %v116 = vld [vmem:[%s0 + $0x2f8] sm:$0xff]
  %v117 = vld [vmem:[%s0 + $0x300] sm:$0xff]
  %v118 = vld [vmem:[%s0 + $0x308] sm:$0xff]
  %v119 = vld [vmem:[%s0 + $0x310] sm:$0xff]
  %v120 = vld [vmem:[%s0 + $0x318] sm:$0xff]
  %v121 = vld [vmem:[%s0 + $0x320] sm:$0xff]
  %v122 = vld [vmem:[%s0 + $0x328] sm:$0xff]
  %v123 = vld [vmem:[%s0 + $0x330] sm:$0xff]
  %v124 = vld [vmem:[%s0 + $0x338] sm:$0xff]
  %v125 = vld [vmem:[%s0 + $0x340] sm:$0xff]
  %v126 = vld [vmem:[%s0 + $0x348] sm:$0xff]
  %v127 = vld [vmem:[%s0 + $0x350] sm:$0xff]
  %v128 = vld [vmem:[%s0 + $0x358] sm:$0xff]
  %v129 = vld [vmem:[%s0 + $0x360] sm:$0xff]
  %v130 = vld [vmem:[%s0 + $0x368] sm:$0xff]
  %v131 = vld [vmem:[%s0 + $0x370] sm:$0xff]
  %v132 = vld [vmem:[%s0 + $0x378] sm:$0xff]
  %v133 = vld [vmem:[%s0 + $0x380] sm:$0xff]
  %v134 = vld [vmem:[%s0 + $0x388] sm:$0xff]
  %v135 = vld [vmem:[%s0 + $0x390] sm:$0xff]
  %v136 = vld [vmem:[%s0 + $0x398] sm:$0xff]
  %v137 = vld [vmem:[%s0 + $0x3a0] sm:$0xff]
  %v138 = vld [vmem:[%s0 + $0x3a8] sm:$0xff]
  %v139 = vld [vmem:[%s0 + $0x3b0] sm:$0xff]
  %v140 = vld [vmem:[%s0 + $0x3b8] sm:$0xff]
  %v141 = vld [vmem:[%s0 + $0x3c0] sm:$0xff]
  %v142 = vld [vmem:[%s0 + $0x3c8] sm:$0xff]
  %v143 = vld [vmem:[%s0 + $0x3d0] sm:$0xff]
  %v144 = vld [vmem:[%s0 + $0x3d8] sm:$0xff]
  %v145 = vld [vmem:[%s0 + $0x3e0] sm:$0xff]
  %v146 = vld [vmem:[%s0 + $0x3e8] sm:$0xff]
  %v147 = vld [vmem:[%s0 + $0x3f0] sm:$0xff]
  %v148 = vld [vmem:[%s0 + $0x3f8] sm:$0xff]
  %v149 = vld [vmem:[%s0 + $0x400] sm:$0xff]
  %v150 = vld [vmem:[%s0 + $0x408] sm:$0xff]
  %v151 = vld [vmem:[%s0 + $0x410] sm:$0xff]
  %v152 = vld [vmem:[%s0 + $0x418] sm:$0xff]
  %v153 = vld [vmem:[%s0 + $0x420] sm:$0xff]
  %v154 = vld [vmem:[%s0 + $0x428] sm:$0xff]
  %v155 = vld [vmem:[%s0 + $0x430] sm:$0xff]
  %v156 = vld [vmem:[%s0 + $0x438] sm:$0xff]
  %v157 = vld [vmem:[%s0 + $0x440] sm:$0xff]
  %v158 = vld [vmem:[%s0 + $0x448] sm:$0xff]
  %v159 = vld [vmem:[%s0 + $0x450] sm:$0xff]
  %v160 = vld [vmem:[%s0 + $0x458] sm:$0xff]
  %v161 = vld [vmem:[%s0 + $0x460] sm:$0xff]
  %v162 = vld [vmem:[%s0 + $0x468] sm:$0xff]
  %v163 = vld [vmem:[%s0 + $0x470] sm:$0xff]
  %v164 = vld [vmem:[%s0 + $0x478] sm:$0xff]
  %v165 = vld [vmem:[%s0 + $0x480] sm:$0xff]
  %v166 = vld [vmem:[%s0 + $0x488] sm:$0xff]
  %v167 = vld [vmem:[%s0 + $0x490] sm:$0xff]
  %v168 = vld [vmem:[%s0 + $0x498] sm:$0xff]
  %v169 = vld [vmem:[%s0 + $0x4a0] sm:$0xff]
  %v170 = vld [vmem:[%s0 + $0x4a8] sm:$0xff]
  %v171 = vld [vmem:[%s0 + $0x4b0] sm:$0xff]
  %v172 = vld [vmem:[%s0 + $0x4b8] sm:$0xff]
  %v173 = vld [vmem:[%s0 + $0x4c0] sm:$0xff]
  %v174 = vld [vmem:[%s0 + $0x4c8] sm:$0xff]
  %v175 = vld [vmem:[%s0 + $0x4d0] sm:$0xff]
  %v176 = vld [vmem:[%s0 + $0x4d8] sm:$0xff]
  %v177 = vld [vmem:[%s0 + $0x4e0] sm:$0xff]
  %v178 = vld [vmem:[%s0 + $0x4e8] sm:$0xff]
  %v179 = vld [vmem:[%s0 + $0x4f0] sm:$0xff]
  %v180 = vld [vmem:[%s0 + $0x4f8] sm:$0xff]
  %v181 = vld [vmem:[%s0 + $0x500] sm:$0xff]
  %v182 = vld [vmem:[%s0 + $0x508] sm:$0xff]
  %v183 = vld [vmem:[%s0 + $0x510] sm:$0xff]
  %v184 = vld [vmem:[%s0 + $0x518] sm:$0xff]
  %v185 = vld [vmem:[%s0 + $0x520] sm:$0xff]
  %v186 = vld [vmem:[%s0 + $0x528] sm:$0xff]
  %v187 = vld [vmem:[%s0 + $0x530] sm:$0xff]
  %v188 = vld [vmem:[%s0 + $0x538] sm:$0xff]
  %v189 = vld [vmem:[%s0 + $0x540] sm:$0xff]
  %v190 = vld [vmem:[%s0 + $0x548] sm:$0xff]
  %v191 = vld [vmem:[%s0 + $0x550] sm:$0xff]
  %v192 = vld [vmem:[%s0 + $0x558] sm:$0xff]
  %v193 = vld [vmem:[%s0 + $0x560] sm:$0xff]
  %v194 = vld [vmem:[%s0 + $0x568] sm:$0xff]
  %v195 = vld [vmem:[%s0 + $0x570] sm:$0xff]
  %v196 = vld [vmem:[%s0 + $0x578] sm:$0xff]
  %v197 = vld [vmem:[%s0 + $0x580] sm:$0xff]
  %v198 = vld [vmem:[%s0 + $0x588] sm:$0xff]
  %v199 = vld [vmem:[%s0 + $0x590] sm:$0xff]
  %v200 = vld [vmem:[%s0 + $0x598] sm:$0xff]
  %v201 = vld [vmem:[%s0 + $0x5a0] sm:$0xff]
  %v202 = vld [vmem:[%s0 + $0x5a8] sm:$0xff]
  %v203 = vld [vmem:[%s0 + $0x5b0] sm:$0xff]
  %v204 = vld [vmem:[%s0 + $0x5b8] sm:$0xff]
  %v205 = vpack.c.bf16 %v23, %v21
  %v206 = vpack.c.bf16 %v24, %v22
  %v207 = vpack.c.bf16 %v27, %v25
  %v208 = vpack.c.bf16 %v28, %v26
  %v209 = vpack.c.bf16 %v31, %v29
  %v210 = vpack.c.bf16 %v32, %v30
  %v211 = vpack.c.bf16 %v35, %v33
  %v212 = vpack.c.bf16 %v36, %v34
  %v213 = vpack.c.bf16 %v39, %v37
  %v214 = vpack.c.bf16 %v40, %v38
  %v215 = vpack.c.bf16 %v43, %v41
  %v216 = vpack.c.bf16 %v44, %v42
  %v217 = vpack.c.bf16 %v47, %v45
  %v218 = vpack.c.bf16 %v48, %v46
  %v219 = vpack.c.bf16 %v51, %v49
  %v220 = vpack.c.bf16 %v52, %v50
  %v221 = vpack.c.bf16 %v55, %v53
  %v222 = vpack.c.bf16 %v56, %v54
  %v223 = vpack.c.bf16 %v59, %v57
  %v224 = vpack.c.bf16 %v60, %v58
  %v225 = vpack.c.bf16 %v63, %v61
  %v226 = vpack.c.bf16 %v64, %v62
  %v227 = vpack.c.bf16 %v67, %v65
  %v228 = vpack.c.bf16 %v68, %v66
  %v229 = vpack.c.bf16 %v71, %v69
  %v230 = vpack.c.bf16 %v72, %v70
  %v231 = vpack.c.bf16 %v75, %v73
  %v232 = vpack.c.bf16 %v76, %v74
  %v233 = vpack.c.bf16 %v79, %v77
  %v234 = vpack.c.bf16 %v80, %v78
  %v235 = vpack.c.bf16 %v83, %v81
  %v236 = vpack.c.bf16 %v84, %v82
  %v237 = vpack.c.bf16 %v87, %v85
  %v238 = vpack.c.bf16 %v88, %v86
  %v239 = vpack.c.bf16 %v91, %v89
  %v240 = vpack.c.bf16 %v92, %v90
  %v241 = vpack.c.bf16 %v95, %v93
  %v242 = vpack.c.bf16 %v96, %v94
  %v243 = vpack.c.bf16 %v99, %v97
  %v244 = vpack.c.bf16 %v100, %v98
  %v245 = vpack.c.bf16 %v103, %v101
  %v246 = vpack.c.bf16 %v104, %v102
  %v247 = vpack.c.bf16 %v107, %v105
  %v248 = vpack.c.bf16 %v108, %v106
  %v249 = vpack.c.bf16 %v111, %v109
  %v250 = vpack.c.bf16 %v112, %v110
  %v251 = vpack.c.bf16 %v115, %v113
  %v252 = vpack.c.bf16 %v116, %v114
  %v253 = vpack.c.bf16 %v119, %v117
  %v254 = vpack.c.bf16 %v120, %v118
  %v255 = vpack.c.bf16 %v123, %v121
  %v256 = vpack.c.bf16 %v124, %v122
  %v257 = vpack.c.bf16 %v127, %v125
  %v258 = vpack.c.bf16 %v128, %v126
  %v259 = vpack.c.bf16 %v131, %v129
  %v260 = vpack.c.bf16 %v132, %v130
  %v261 = vpack.c.bf16 %v135, %v133
  %v262 = vpack.c.bf16 %v136, %v134
  %v263 = vpack.c.bf16 %v139, %v137
  %v264 = vpack.c.bf16 %v140, %v138
  %v265 = vpack.c.bf16 %v143, %v141
  %v266 = vpack.c.bf16 %v144, %v142
  %v267 = vpack.c.bf16 %v147, %v145
  %v268 = vpack.c.bf16 %v148, %v146
  %v269 = vpack.c.bf16 %v151, %v149
  %v270 = vpack.c.bf16 %v152, %v150
  %v271 = vpack.c.bf16 %v155, %v153
  %v272 = vpack.c.bf16 %v156, %v154
  %v273 = vpack.c.bf16 %v159, %v157
  %v274 = vpack.c.bf16 %v160, %v158
  %v275 = vpack.c.bf16 %v163, %v161
  %v276 = vpack.c.bf16 %v164, %v162
  %v277 = vpack.c.bf16 %v167, %v165
  %v278 = vpack.c.bf16 %v168, %v166
  %v279 = vpack.c.bf16 %v171, %v169
  %v280 = vpack.c.bf16 %v172, %v170
  %v281 = vpack.c.bf16 %v175, %v173
  %v282 = vpack.c.bf16 %v176, %v174
  %v283 = vpack.c.bf16 %v179, %v177
  %v284 = vpack.c.bf16 %v180, %v178
  %v285 = vpack.c.bf16 %v183, %v181
  %v286 = vpack.c.bf16 %v184, %v182
  %v287 = vpack.c.bf16 %v187, %v185
  %v288 = vpack.c.bf16 %v188, %v186
  %v289 = vpack.c.bf16 %v191, %v189
  %v290 = vpack.c.bf16 %v192, %v190
  %v291 = vpack.c.bf16 %v195, %v193
  %v292 = vpack.c.bf16 %v196, %v194
  %v293 = vpack.c.bf16 %v199, %v197
  %v294 = vpack.c.bf16 %v200, %v198
  %v295 = vpack.c.bf16 %v203, %v201
  %v296 = vpack.c.bf16 %v204, %v202
  %v297 = vld [vmem:[%s1] sm:$0xff]
  %v298 = vld [vmem:[%s1 + $0x8] sm:$0xff]
  %v299 = vld [vmem:[%s1 + $0x10] sm:$0xff]
  %v300 = vld [vmem:[%s1 + $0x18] sm:$0xff]
  %v301 = vld [vmem:[%s1 + $0x20] sm:$0xff]
  %v302 = vld [vmem:[%s1 + $0x28] sm:$0xff]
  %v303 = vld [vmem:[%s1 + $0x30] sm:$0xff]
  %v304 = vld [vmem:[%s1 + $0x38] sm:$0xff]
  %v305 = vld [vmem:[%s1 + $0x40] sm:$0xff]
  %v306 = vld [vmem:[%s1 + $0x48] sm:$0xff]
  %v307 = vld [vmem:[%s1 + $0x50] sm:$0xff]
  %v308 = vld [vmem:[%s1 + $0x58] sm:$0xff]
  %v309 = vld [vmem:[%s1 + $0x60] sm:$0xff]
  %v310 = vld [vmem:[%s1 + $0x68] sm:$0xff]
  %v311 = vld [vmem:[%s1 + $0x70] sm:$0xff]
  %v312 = vld [vmem:[%s1 + $0x78] sm:$0xff]
  %v313 = vld [vmem:[%s1 + $0x80] sm:$0xff]
  %v314 = vld [vmem:[%s1 + $0x88] sm:$0xff]
  %v315 = vld [vmem:[%s1 + $0x90] sm:$0xff]
  %v316 = vld [vmem:[%s1 + $0x98] sm:$0xff]
  %v317 = vld [vmem:[%s1 + $0xa0] sm:$0xff]
  %v318 = vld [vmem:[%s1 + $0xa8] sm:$0xff]
  %v319 = vld [vmem:[%s1 + $0xb0] sm:$0xff]
  %v320 = vld [vmem:[%s1 + $0xb8] sm:$0xff]
  %v321 = vld [vmem:[%s1 + $0xc0] sm:$0xff]
  %v322 = vld [vmem:[%s1 + $0xc8] sm:$0xff]
  %v323 = vld [vmem:[%s1 + $0xd0] sm:$0xff]
  %v324 = vld [vmem:[%s1 + $0xd8] sm:$0xff]
  %v325 = vld [vmem:[%s1 + $0xe0] sm:$0xff]
  %v326 = vld [vmem:[%s1 + $0xe8] sm:$0xff]
  %v327 = vld [vmem:[%s1 + $0xf0] sm:$0xff]
  %v328 = vld [vmem:[%s1 + $0xf8] sm:$0xff]
  %v329 = vld [vmem:[%s1 + $0x100] sm:$0xff]
  %v330 = vld [vmem:[%s1 + $0x108] sm:$0xff]
  %v331 = vld [vmem:[%s1 + $0x110] sm:$0xff]
  %v332 = vld [vmem:[%s1 + $0x118] sm:$0xff]
  %v333 = vld [vmem:[%s1 + $0x120] sm:$0xff]
  %v334 = vld [vmem:[%s1 + $0x128] sm:$0xff]
  %v335 = vld [vmem:[%s1 + $0x130] sm:$0xff]
  %v336 = vld [vmem:[%s1 + $0x138] sm:$0xff]
  %v337 = vld [vmem:[%s1 + $0x140] sm:$0xff]
  %v338 = vld [vmem:[%s1 + $0x148] sm:$0xff]
  %v339 = vld [vmem:[%s1 + $0x150] sm:$0xff]
  %v340 = vld [vmem:[%s1 + $0x158] sm:$0xff]
  %v341 = vld [vmem:[%s1 + $0x160] sm:$0xff]
  %v342 = vld [vmem:[%s1 + $0x168] sm:$0xff]
  %v343 = vld [vmem:[%s1 + $0x170] sm:$0xff]
  %v344 = vld [vmem:[%s1 + $0x178] sm:$0xff]
  %v393 = vunpack.c.l.b16 %v297
  %v394 = vunpack.c.h.b16 %v297
  %v395 = vunpack.c.l.b16 %v298
  %v396 = vunpack.c.h.b16 %v298
  %v397 = vunpack.c.l.b16 %v299
  %v398 = vunpack.c.h.b16 %v299
  %v399 = vunpack.c.l.b16 %v300
  %v400 = vunpack.c.h.b16 %v300
  %v401 = vunpack.c.l.b16 %v301
  %v402 = vunpack.c.h.b16 %v301
  %v403 = vunpack.c.l.b16 %v302
  %v404 = vunpack.c.h.b16 %v302
  %v405 = vunpack.c.l.b16 %v303
  %v406 = vunpack.c.h.b16 %v303
  %v407 = vunpack.c.l.b16 %v304
  %v408 = vunpack.c.h.b16 %v304
  %v409 = vunpack.c.l.b16 %v305
  %v410 = vunpack.c.h.b16 %v305
  %v411 = vunpack.c.l.b16 %v306
  %v412 = vunpack.c.h.b16 %v306
  %v413 = vunpack.c.l.b16 %v307
  %v414 = vunpack.c.h.b16 %v307
  %v415 = vunpack.c.l.b16 %v308
  %v416 = vunpack.c.h.b16 %v308
  %v417 = vunpack.c.l.b16 %v309
  %v418 = vunpack.c.h.b16 %v309
  %v419 = vunpack.c.l.b16 %v310
  %v420 = vunpack.c.h.b16 %v310
  %v421 = vunpack.c.l.b16 %v311
  %v422 = vunpack.c.h.b16 %v311
  %v423 = vunpack.c.l.b16 %v312
  %v424 = vunpack.c.h.b16 %v312
  %v425 = vunpack.c.l.b16 %v313
  %v426 = vunpack.c.h.b16 %v313
  %v427 = vunpack.c.l.b16 %v314
  %v428 = vunpack.c.h.b16 %v314
  %v429 = vunpack.c.l.b16 %v315
  %v430 = vunpack.c.h.b16 %v315
  %v431 = vunpack.c.l.b16 %v316
  %v432 = vunpack.c.h.b16 %v316
  %v433 = vunpack.c.l.b16 %v317
  %v434 = vunpack.c.h.b16 %v317
  %v435 = vunpack.c.l.b16 %v318
  %v436 = vunpack.c.h.b16 %v318
  %v437 = vunpack.c.l.b16 %v319
  %v438 = vunpack.c.h.b16 %v319
  %v439 = vunpack.c.l.b16 %v320
  %v440 = vunpack.c.h.b16 %v320
  %v441 = vunpack.c.l.b16 %v321
  %v442 = vunpack.c.h.b16 %v321
  %v443 = vunpack.c.l.b16 %v322
  %v444 = vunpack.c.h.b16 %v322
  %v445 = vunpack.c.l.b16 %v323
  %v446 = vunpack.c.h.b16 %v323
  %v447 = vunpack.c.l.b16 %v324
  %v448 = vunpack.c.h.b16 %v324
  %v449 = vunpack.c.l.b16 %v325
  %v450 = vunpack.c.h.b16 %v325
  %v451 = vunpack.c.l.b16 %v326
  %v452 = vunpack.c.h.b16 %v326
  %v453 = vunpack.c.l.b16 %v327
  %v454 = vunpack.c.h.b16 %v327
  %v455 = vunpack.c.l.b16 %v328
  %v456 = vunpack.c.h.b16 %v328
  %v457 = vunpack.c.l.b16 %v329
  %v458 = vunpack.c.h.b16 %v329
  %v459 = vunpack.c.l.b16 %v330
  %v460 = vunpack.c.h.b16 %v330
  %v461 = vunpack.c.l.b16 %v331
  %v462 = vunpack.c.h.b16 %v331
  %v463 = vunpack.c.l.b16 %v332
  %v464 = vunpack.c.h.b16 %v332
  %v465 = vunpack.c.l.b16 %v333
  %v466 = vunpack.c.h.b16 %v333
  %v467 = vunpack.c.l.b16 %v334
  %v468 = vunpack.c.h.b16 %v334
  %v469 = vunpack.c.l.b16 %v335
  %v470 = vunpack.c.h.b16 %v335
  %v471 = vunpack.c.l.b16 %v336
  %v472 = vunpack.c.h.b16 %v336
  %v473 = vunpack.c.l.b16 %v337
  %v474 = vunpack.c.h.b16 %v337
  %v475 = vunpack.c.l.b16 %v338
  %v476 = vunpack.c.h.b16 %v338
  %v477 = vunpack.c.l.b16 %v339
  %v478 = vunpack.c.h.b16 %v339
  %v479 = vunpack.c.l.b16 %v340
  %v480 = vunpack.c.h.b16 %v340
  %v481 = vunpack.c.l.b16 %v341
  %v482 = vunpack.c.h.b16 %v341
  %v483 = vunpack.c.l.b16 %v342
  %v484 = vunpack.c.h.b16 %v342
  %v485 = vunpack.c.l.b16 %v343
  %v486 = vunpack.c.h.b16 %v343
  %v487 = vunpack.c.l.b16 %v344
  %v488 = vunpack.c.h.b16 %v344
  %v489 = vpack.c.b16 %v399, %v393
  %v490 = vpack.c.b16 %v400, %v394
  %v491 = vpack.c.b16 %v401, %v395
  %v492 = vpack.c.b16 %v402, %v396
  %v493 = vpack.c.b16 %v403, %v397
  %v494 = vpack.c.b16 %v404, %v398
  %v495 = vpack.c.b16 %v411, %v405
  %v496 = vpack.c.b16 %v412, %v406
  %v497 = vpack.c.b16 %v413, %v407
  %v498 = vpack.c.b16 %v414, %v408
  %v499 = vpack.c.b16 %v415, %v409
  %v500 = vpack.c.b16 %v416, %v410
  %v501 = vpack.c.b16 %v423, %v417
  %v502 = vpack.c.b16 %v424, %v418
  %v503 = vpack.c.b16 %v425, %v419
  %v504 = vpack.c.b16 %v426, %v420
  %v505 = vpack.c.b16 %v427, %v421
  %v506 = vpack.c.b16 %v428, %v422
  %v507 = vpack.c.b16 %v435, %v429
  %v508 = vpack.c.b16 %v436, %v430
  %v509 = vpack.c.b16 %v437, %v431
  %v510 = vpack.c.b16 %v438, %v432
  %v511 = vpack.c.b16 %v439, %v433
  %v512 = vpack.c.b16 %v440, %v434
  %v513 = vpack.c.b16 %v447, %v441
  %v514 = vpack.c.b16 %v448, %v442
  %v515 = vpack.c.b16 %v449, %v443
  %v516 = vpack.c.b16 %v450, %v444
  %v517 = vpack.c.b16 %v451, %v445
  %v518 = vpack.c.b16 %v452, %v446
  %v519 = vpack.c.b16 %v459, %v453
  %v520 = vpack.c.b16 %v460, %v454
  %v521 = vpack.c.b16 %v461, %v455
  %v522 = vpack.c.b16 %v462, %v456
  %v523 = vpack.c.b16 %v463, %v457
  %v524 = vpack.c.b16 %v464, %v458
  %v525 = vpack.c.b16 %v471, %v465
  %v526 = vpack.c.b16 %v472, %v466
  %v527 = vpack.c.b16 %v473, %v467
  %v528 = vpack.c.b16 %v474, %v468
  %v529 = vpack.c.b16 %v475, %v469
  %v530 = vpack.c.b16 %v476, %v470
  %v531 = vpack.c.b16 %v483, %v477
  %v532 = vpack.c.b16 %v484, %v478
  %v533 = vpack.c.b16 %v485, %v479
  %v534 = vpack.c.b16 %v486, %v480
  %v535 = vpack.c.b16 %v487, %v481
  %v536 = vpack.c.b16 %v488, %v482
  %vm577 = vcmask 785408
  %v579 = vsel %vm577, %v494, 0
  %v582 = vsel %vm577, %v500, 0
  %v585 = vsel %vm577, %v506, 0
  %v588 = vsel %vm577, %v512, 0
  %v591 = vsel %vm577, %v518, 0
  %v594 = vsel %vm577, %v524, 0
  %v597 = vsel %vm577, %v530, 0
  %v600 = vsel %vm577, %v536, 0
  %602 = vmatprep.subr.bf16.mxu0 %v206
  %603 = vmatpush1.bf16.msra.mxu0 %v205
  %604 = vmatprep.subr.bf16.mxu0 %v208
  %605 = vmatpush1.bf16.msra.mxu0 %v207
  %606 = vmatprep.subr.bf16.mxu0 %v210
  %607 = vmatpush1.bf16.msra.mxu0 %v209
  %608 = vmatprep.subr.bf16.mxu0 %v212
  %609 = vmatpush1.bf16.msra.mxu0 %v211
  %610 = vmatprep.subr.bf16.mxu0 %v214
  %611 = vmatpush1.bf16.msra.mxu0 %v213
  %612 = vmatprep.subr.bf16.mxu0 %v216
  %613 = vmatpush1.bf16.msra.mxu0 %v215
  %614 = vmatprep.subr.bf16.mxu0 %v218
  %615 = vmatpush1.bf16.msra.mxu0 %v217
  %616 = vmatprep.subr.bf16.mxu0 %v220
  %617 = vmatpush1.bf16.msra.mxu0 %v219
  %618 = vmatprep.subr.bf16.mxu0 %v222
  %619 = vmatpush1.bf16.msra.mxu0 %v221
  %620 = vmatprep.subr.bf16.mxu0 %v224
  %621 = vmatpush1.bf16.msra.mxu0 %v223
  %622 = vmatprep.subr.bf16.mxu0 %v226
  %623 = vmatpush1.bf16.msra.mxu0 %v225
  %624 = vmatprep.subr.bf16.mxu0 %v228
  %625 = vmatpush1.bf16.msra.mxu0 %v227
  %626 = vmatprep.subr.bf16.mxu0 %v230
  %627 = vmatpush1.bf16.msra.mxu0 %v229
  %628 = vmatprep.subr.bf16.mxu0 %v232
  %629 = vmatpush1.bf16.msra.mxu0 %v231
  %630 = vmatprep.subr.bf16.mxu0 %v234
  %631 = vmatpush1.bf16.msra.mxu0 %v233
  %632 = vmatprep.subr.bf16.mxu0 %v236
  %633 = vmatpush1.bf16.msra.mxu0 %v235
  %634 = vmatprep.mubr.bf16.mxu0 %v490
  %635 = vmatmul.mubr.bf16.gmra.mrb[0].mxu0 %v489
  %v636 = vpop.f32.mrb[0].mxu0
  %v637 = vadd.f32 0.0, %v636
  %v638 = vpop.f32.mrb[0].mxu0
  %v639 = vadd.f32 0.0, %v638
  %v640 = vpop.f32.mrb[0].mxu0
  %v641 = vadd.f32 0.0, %v640
  %v642 = vpop.f32.mrb[0].mxu0
  %v643 = vadd.f32 0.0, %v642
  %644 = vmatprep.mubr.bf16.mxu0 %v496
  %645 = vmatmul.mubr.bf16.gmra.mrb[0].mxu0 %v495
  %v646 = vpop.f32.mrb[0].mxu0
  %v647 = vadd.f32 0.0, %v646
  %v648 = vpop.f32.mrb[0].mxu0
  %v649 = vadd.f32 0.0, %v648
  %v650 = vpop.f32.mrb[0].mxu0
  %v651 = vadd.f32 0.0, %v650
  %v652 = vpop.f32.mrb[0].mxu0
  %v653 = vadd.f32 0.0, %v652
  %654 = vmatprep.mubr.bf16.mxu0 %v502
  %655 = vmatmul.mubr.bf16.gmra.mrb[0].mxu0 %v501
  %v656 = vpop.f32.mrb[0].mxu0
  %v657 = vadd.f32 0.0, %v656
  %v658 = vpop.f32.mrb[0].mxu0
  %v659 = vadd.f32 0.0, %v658
  %v660 = vpop.f32.mrb[0].mxu0
  %v661 = vadd.f32 0.0, %v660
  %v662 = vpop.f32.mrb[0].mxu0
  %v663 = vadd.f32 0.0, %v662
  %664 = vmatprep.mubr.bf16.mxu0 %v508
  %665 = vmatmul.mubr.bf16.gmra.mrb[0].mxu0 %v507
  %v666 = vpop.f32.mrb[0].mxu0
  %v667 = vadd.f32 0.0, %v666
  %v668 = vpop.f32.mrb[0].mxu0
  %v669 = vadd.f32 0.0, %v668
  %v670 = vpop.f32.mrb[0].mxu0
  %v671 = vadd.f32 0.0, %v670
  %v672 = vpop.f32.mrb[0].mxu0
  %v673 = vadd.f32 0.0, %v672
  %674 = vmatprep.mubr.bf16.mxu0 %v514
  %675 = vmatmul.mubr.bf16.gmra.mrb[0].mxu0 %v513
  %v676 = vpop.f32.mrb[0].mxu0
  %v677 = vadd.f32 0.0, %v676
  %v678 = vpop.f32.mrb[0].mxu0
  %v679 = vadd.f32 0.0, %v678
  %v680 = vpop.f32.mrb[0].mxu0
  %v681 = vadd.f32 0.0, %v680
  %v682 = vpop.f32.mrb[0].mxu0
  %v683 = vadd.f32 0.0, %v682
  %684 = vmatprep.mubr.bf16.mxu0 %v520
  %685 = vmatmul.mubr.bf16.gmra.mrb[0].mxu0 %v519
  %v686 = vpop.f32.mrb[0].mxu0
  %v687 = vadd.f32 0.0, %v686
  %v688 = vpop.f32.mrb[0].mxu0
  %v689 = vadd.f32 0.0, %v688
  %v690 = vpop.f32.mrb[0].mxu0
  %v691 = vadd.f32 0.0, %v690
  %v692 = vpop.f32.mrb[0].mxu0
  %v693 = vadd.f32 0.0, %v692
  %694 = vmatprep.mubr.bf16.mxu0 %v526
  %695 = vmatmul.mubr.bf16.gmra.mrb[0].mxu0 %v525
  %v696 = vpop.f32.mrb[0].mxu0
  %v697 = vadd.f32 0.0, %v696
  %v698 = vpop.f32.mrb[0].mxu0
  %v699 = vadd.f32 0.0, %v698
  %v700 = vpop.f32.mrb[0].mxu0
  %v701 = vadd.f32 0.0, %v700
  %v702 = vpop.f32.mrb[0].mxu0
  %v703 = vadd.f32 0.0, %v702
  %704 = vmatprep.mubr.bf16.mxu0 %v532
  %705 = vmatmul.mubr.bf16.gmra.mrb[0].mxu0 %v531
  %v706 = vpop.f32.mrb[0].mxu0
  %v707 = vadd.f32 0.0, %v706
  %v708 = vpop.f32.mrb[0].mxu0
  %v709 = vadd.f32 0.0, %v708
  %v710 = vpop.f32.mrb[0].mxu0
  %v711 = vadd.f32 0.0, %v710
  %v712 = vpop.f32.mrb[0].mxu0
  %v713 = vadd.f32 0.0, %v712
  %714 = vdwg.mxu0
  %715 = vmatprep.subr.bf16.mxu0 %v238
  %716 = vmatpush1.bf16.msra.mxu0 %v237
  %717 = vmatprep.subr.bf16.mxu0 %v240
  %718 = vmatpush1.bf16.msra.mxu0 %v239
  %719 = vmatprep.subr.bf16.mxu0 %v242
  %720 = vmatpush1.bf16.msra.mxu0 %v241
  %721 = vmatprep.subr.bf16.mxu0 %v244
  %722 = vmatpush1.bf16.msra.mxu0 %v243
  %723 = vmatprep.subr.bf16.mxu0 %v246
  %724 = vmatpush1.bf16.msra.mxu0 %v245
  %725 = vmatprep.subr.bf16.mxu0 %v248
  %726 = vmatpush1.bf16.msra.mxu0 %v247
  %727 = vmatprep.subr.bf16.mxu0 %v250
  %728 = vmatpush1.bf16.msra.mxu0 %v249
  %729 = vmatprep.subr.bf16.mxu0 %v252
  %730 = vmatpush1.bf16.msra.mxu0 %v251
  %731 = vmatprep.subr.bf16.mxu0 %v254
  %732 = vmatpush1.bf16.msra.mxu0 %v253
  %733 = vmatprep.subr.bf16.mxu0 %v256
  %734 = vmatpush1.bf16.msra.mxu0 %v255
  %735 = vmatprep.subr.bf16.mxu0 %v258
  %736 = vmatpush1.bf16.msra.mxu0 %v257
  %737 = vmatprep.subr.bf16.mxu0 %v260
  %738 = vmatpush1.bf16.msra.mxu0 %v259
  %739 = vmatprep.subr.bf16.mxu0 %v262
  %740 = vmatpush1.bf16.msra.mxu0 %v261
  %741 = vmatprep.subr.bf16.mxu0 %v264
  %742 = vmatpush1.bf16.msra.mxu0 %v263
  %743 = vmatprep.subr.bf16.mxu0 %v266
  %744 = vmatpush1.bf16.msra.mxu0 %v265
  %745 = vmatprep.subr.bf16.mxu0 %v268
  %746 = vmatpush1.bf16.msra.mxu0 %v267
  %747 = vmatprep.mubr.bf16.mxu0 %v492
  %748 = vmatmul.mubr.bf16.gmra.mrb[0].mxu0 %v491
  %v749 = vpop.f32.mrb[0].mxu0
  %v750 = vadd.f32 %v637, %v749
  %v751 = vpop.f32.mrb[0].mxu0
  %v752 = vadd.f32 %v639, %v751
  %v753 = vpop.f32.mrb[0].mxu0
  %v754 = vadd.f32 %v641, %v753
  %v755 = vpop.f32.mrb[0].mxu0
  %v756 = vadd.f32 %v643, %v755
  %757 = vmatprep.mubr.bf16.mxu0 %v498
  %758 = vmatmul.mubr.bf16.gmra.mrb[0].mxu0 %v497
  %v759 = vpop.f32.mrb[0].mxu0
  %v760 = vadd.f32 %v647, %v759
  %v761 = vpop.f32.mrb[0].mxu0
  %v762 = vadd.f32 %v649, %v761
  %v763 = vpop.f32.mrb[0].mxu0
  %v764 = vadd.f32 %v651, %v763
  %v765 = vpop.f32.mrb[0].mxu0
  %v766 = vadd.f32 %v653, %v765
  %767 = vmatprep.mubr.bf16.mxu0 %v504
  %768 = vmatmul.mubr.bf16.gmra.mrb[0].mxu0 %v503
  %v769 = vpop.f32.mrb[0].mxu0
  %v770 = vadd.f32 %v657, %v769
  %v771 = vpop.f32.mrb[0].mxu0
  %v772 = vadd.f32 %v659, %v771
  %v773 = vpop.f32.mrb[0].mxu0
  %v774 = vadd.f32 %v661, %v773
  %v775 = vpop.f32.mrb[0].mxu0
  %v776 = vadd.f32 %v663, %v775
  %777 = vmatprep.mubr.bf16.mxu0 %v510
  %778 = vmatmul.mubr.bf16.gmra.mrb[0].mxu0 %v509
  %v779 = vpop.f32.mrb[0].mxu0
  %v780 = vadd.f32 %v667, %v779
  %v781 = vpop.f32.mrb[0].mxu0
  %v782 = vadd.f32 %v669, %v781
  %v783 = vpop.f32.mrb[0].mxu0
  %v784 = vadd.f32 %v671, %v783
  %v785 = vpop.f32.mrb[0].mxu0
  %v786 = vadd.f32 %v673, %v785
  %787 = vmatprep.mubr.bf16.mxu0 %v516
  %788 = vmatmul.mubr.bf16.gmra.mrb[0].mxu0 %v515
  %v789 = vpop.f32.mrb[0].mxu0
  %v790 = vadd.f32 %v677, %v789
  %v791 = vpop.f32.mrb[0].mxu0
  %v792 = vadd.f32 %v679, %v791
  %v793 = vpop.f32.mrb[0].mxu0
  %v794 = vadd.f32 %v681, %v793
  %v795 = vpop.f32.mrb[0].mxu0
  %v796 = vadd.f32 %v683, %v795
  %797 = vmatprep.mubr.bf16.mxu0 %v522
  %798 = vmatmul.mubr.bf16.gmra.mrb[0].mxu0 %v521
  %v799 = vpop.f32.mrb[0].mxu0
  %v800 = vadd.f32 %v687, %v799
  %v801 = vpop.f32.mrb[0].mxu0
  %v802 = vadd.f32 %v689, %v801
  %v803 = vpop.f32.mrb[0].mxu0
  %v804 = vadd.f32 %v691, %v803
  %v805 = vpop.f32.mrb[0].mxu0
  %v806 = vadd.f32 %v693, %v805
  %807 = vmatprep.mubr.bf16.mxu0 %v528
  %808 = vmatmul.mubr.bf16.gmra.mrb[0].mxu0 %v527
  %v809 = vpop.f32.mrb[0].mxu0
  %v810 = vadd.f32 %v697, %v809
  %v811 = vpop.f32.mrb[0].mxu0
  %v812 = vadd.f32 %v699, %v811
  %v813 = vpop.f32.mrb[0].mxu0
  %v814 = vadd.f32 %v701, %v813
  %v815 = vpop.f32.mrb[0].mxu0
  %v816 = vadd.f32 %v703, %v815
  %817 = vmatprep.mubr.bf16.mxu0 %v534
  %818 = vmatmul.mubr.bf16.gmra.mrb[0].mxu0 %v533
  %v819 = vpop.f32.mrb[0].mxu0
  %v820 = vadd.f32 %v707, %v819
  %v821 = vpop.f32.mrb[0].mxu0
  %v822 = vadd.f32 %v709, %v821
  %v823 = vpop.f32.mrb[0].mxu0
  %v824 = vadd.f32 %v711, %v823
  %v825 = vpop.f32.mrb[0].mxu0
  %v826 = vadd.f32 %v713, %v825
  %827 = vdwg.mxu0
  %828 = vmatprep.subr.bf16.mxu0 %v270
  %829 = vmatpush1.bf16.msra.mxu0 %v269
  %830 = vmatprep.subr.bf16.mxu0 %v272
  %831 = vmatpush1.bf16.msra.mxu0 %v271
  %832 = vmatprep.subr.bf16.mxu0 %v274
  %833 = vmatpush1.bf16.msra.mxu0 %v273
  %834 = vmatprep.subr.bf16.mxu0 %v276
  %835 = vmatpush1.bf16.msra.mxu0 %v275
  %836 = vmatprep.subr.bf16.mxu0 %v278
  %837 = vmatpush1.bf16.msra.mxu0 %v277
  %838 = vmatprep.subr.bf16.mxu0 %v280
  %839 = vmatpush1.bf16.msra.mxu0 %v279
  %840 = vmatprep.subr.bf16.mxu0 %v282
  %841 = vmatpush1.bf16.msra.mxu0 %v281
  %842 = vmatprep.subr.bf16.mxu0 %v284
  %843 = vmatpush1.bf16.msra.mxu0 %v283
  %844 = vmatprep.subr.bf16.mxu0 %v286
  %845 = vmatpush1.bf16.msra.mxu0 %v285
  %846 = vmatprep.subr.bf16.mxu0 %v288
  %847 = vmatpush1.bf16.msra.mxu0 %v287
  %848 = vmatprep.subr.bf16.mxu0 %v290
  %849 = vmatpush1.bf16.msra.mxu0 %v289
  %850 = vmatprep.subr.bf16.mxu0 %v292
  %851 = vmatpush1.bf16.msra.mxu0 %v291
  %852 = vmatprep.subr.bf16.mxu0 %v294
  %853 = vmatpush1.bf16.msra.mxu0 %v293
  %854 = vmatprep.subr.bf16.mxu0 %v296
  %855 = vmatpush1.bf16.msra.mxu0 %v295
  %856 = vmatprep.subr.bf16.mxu0 0
  %857 = vmatpush1.bf16.msra.mxu0 0
  %858 = vmatprep.subr.bf16.mxu0 0
  %859 = vmatpush1.bf16.msra.mxu0 0
  %860 = vmatprep.mubr.bf16.mxu0 %v579
  %861 = vmatmul.mubr.bf16.gmra.mrb[0].mxu0 %v493
  %v862 = vpop.f32.mrb[0].mxu0
  %v863 = vadd.f32 %v750, %v862
  %v864 = vpop.f32.mrb[0].mxu0
  %v865 = vadd.f32 %v752, %v864
  %v866 = vpop.f32.mrb[0].mxu0
  %v867 = vadd.f32 %v754, %v866
  %v868 = vpop.f32.mrb[0].mxu0
  %v869 = vadd.f32 %v756, %v868
  %870 = vmatprep.mubr.bf16.mxu0 %v582
  %871 = vmatmul.mubr.bf16.gmra.mrb[0].mxu0 %v499
  %v872 = vpop.f32.mrb[0].mxu0
  %v873 = vadd.f32 %v760, %v872
  %v874 = vpop.f32.mrb[0].mxu0
  %v875 = vadd.f32 %v762, %v874
  %v876 = vpop.f32.mrb[0].mxu0
  %v877 = vadd.f32 %v764, %v876
  %v878 = vpop.f32.mrb[0].mxu0
  %v879 = vadd.f32 %v766, %v878
  %880 = vmatprep.mubr.bf16.mxu0 %v585
  %881 = vmatmul.mubr.bf16.gmra.mrb[0].mxu0 %v505
  %v882 = vpop.f32.mrb[0].mxu0
  %v883 = vadd.f32 %v770, %v882
  %v884 = vpop.f32.mrb[0].mxu0
  %v885 = vadd.f32 %v772, %v884
  %v886 = vpop.f32.mrb[0].mxu0
  %v887 = vadd.f32 %v774, %v886
  %v888 = vpop.f32.mrb[0].mxu0
  %v889 = vadd.f32 %v776, %v888
  %890 = vmatprep.mubr.bf16.mxu0 %v588
  %891 = vmatmul.mubr.bf16.gmra.mrb[0].mxu0 %v511
  %v892 = vpop.f32.mrb[0].mxu0
  %v893 = vadd.f32 %v780, %v892
  %v894 = vpop.f32.mrb[0].mxu0
  %v895 = vadd.f32 %v782, %v894
  %v896 = vpop.f32.mrb[0].mxu0
  %v897 = vadd.f32 %v784, %v896
  %v898 = vpop.f32.mrb[0].mxu0
  %v899 = vadd.f32 %v786, %v898
  %900 = vmatprep.mubr.bf16.mxu0 %v591
  %901 = vmatmul.mubr.bf16.gmra.mrb[0].mxu0 %v517
  %v902 = vpop.f32.mrb[0].mxu0
  %v903 = vadd.f32 %v790, %v902
  %v904 = vpop.f32.mrb[0].mxu0
  %v905 = vadd.f32 %v792, %v904
  %v906 = vpop.f32.mrb[0].mxu0
  %v907 = vadd.f32 %v794, %v906
  %v908 = vpop.f32.mrb[0].mxu0
  %v909 = vadd.f32 %v796, %v908
  %910 = vmatprep.mubr.bf16.mxu0 %v594
  %911 = vmatmul.mubr.bf16.gmra.mrb[0].mxu0 %v523
  %v912 = vpop.f32.mrb[0].mxu0
  %v913 = vadd.f32 %v800, %v912
  %v914 = vpop.f32.mrb[0].mxu0
  %v915 = vadd.f32 %v802, %v914
  %v916 = vpop.f32.mrb[0].mxu0
  %v917 = vadd.f32 %v804, %v916
  %v918 = vpop.f32.mrb[0].mxu0
  %v919 = vadd.f32 %v806, %v918
  %920 = vmatprep.mubr.bf16.mxu0 %v597
  %921 = vmatmul.mubr.bf16.gmra.mrb[0].mxu0 %v529
  %v922 = vpop.f32.mrb[0].mxu0
  %v923 = vadd.f32 %v810, %v922
  %v924 = vpop.f32.mrb[0].mxu0
  %v925 = vadd.f32 %v812, %v924
  %v926 = vpop.f32.mrb[0].mxu0
  %v927 = vadd.f32 %v814, %v926
  %v928 = vpop.f32.mrb[0].mxu0
  %v929 = vadd.f32 %v816, %v928
  %930 = vmatprep.mubr.bf16.mxu0 %v600
  %931 = vmatmul.mubr.bf16.gmra.mrb[0].mxu0 %v535
  %v932 = vpop.f32.mrb[0].mxu0
  %v933 = vadd.f32 %v820, %v932
  %v934 = vpop.f32.mrb[0].mxu0
  %v935 = vadd.f32 %v822, %v934
  %v936 = vpop.f32.mrb[0].mxu0
  %v937 = vadd.f32 %v824, %v936
  %v938 = vpop.f32.mrb[0].mxu0
  %v939 = vadd.f32 %v826, %v938
  %940 = vdwg.mxu0
  %vm941 = vcmask 556032
  %v942 = vsel %vm941, %v865, 0.0
  %v943 = vadd.f32 %v863, %v942
  %944 = vadd.xlane.f32.xlu0 %v943
  %v945 = vpop.xlane.xlu0 %944
  %v946 = vsel %vm941, %v869, 0.0
  %v947 = vadd.f32 %v867, %v946
  %948 = vadd.xlane.f32.xlu0 %v947
  %v949 = vpop.xlane.xlu0 %948
  %v950 = vsel %vm941, %v875, 0.0
  %v951 = vadd.f32 %v873, %v950
  %952 = vadd.xlane.f32.xlu0 %v951
  %v953 = vpop.xlane.xlu0 %952
  %v954 = vsel %vm941, %v879, 0.0
  %v955 = vadd.f32 %v877, %v954
  %956 = vadd.xlane.f32.xlu0 %v955
  %v957 = vpop.xlane.xlu0 %956
  %v958 = vsel %vm941, %v885, 0.0
  %v959 = vadd.f32 %v883, %v958
  %960 = vadd.xlane.f32.xlu0 %v959
  %v961 = vpop.xlane.xlu0 %960
  %v962 = vsel %vm941, %v889, 0.0
  %v963 = vadd.f32 %v887, %v962
  %964 = vadd.xlane.f32.xlu0 %v963
  %v965 = vpop.xlane.xlu0 %964
  %v966 = vsel %vm941, %v895, 0.0
  %v967 = vadd.f32 %v893, %v966
  %968 = vadd.xlane.f32.xlu0 %v967
  %v969 = vpop.xlane.xlu0 %968
  %v970 = vsel %vm941, %v899, 0.0
  %v971 = vadd.f32 %v897, %v970
  %972 = vadd.xlane.f32.xlu0 %v971
  %v973 = vpop.xlane.xlu0 %972
  %v974 = vsel %vm941, %v905, 0.0
  %v975 = vadd.f32 %v903, %v974
  %976 = vadd.xlane.f32.xlu0 %v975
  %v977 = vpop.xlane.xlu0 %976
  %v978 = vsel %vm941, %v909, 0.0
  %v979 = vadd.f32 %v907, %v978
  %980 = vadd.xlane.f32.xlu0 %v979
  %v981 = vpop.xlane.xlu0 %980
  %v982 = vsel %vm941, %v915, 0.0
  %v983 = vadd.f32 %v913, %v982
  %984 = vadd.xlane.f32.xlu0 %v983
  %v985 = vpop.xlane.xlu0 %984
  %v986 = vsel %vm941, %v919, 0.0
  %v987 = vadd.f32 %v917, %v986
  %988 = vadd.xlane.f32.xlu0 %v987
  %v989 = vpop.xlane.xlu0 %988
  %v990 = vsel %vm941, %v925, 0.0
  %v991 = vadd.f32 %v923, %v990
  %992 = vadd.xlane.f32.xlu0 %v991
  %v993 = vpop.xlane.xlu0 %992
  %v994 = vsel %vm941, %v929, 0.0
  %v995 = vadd.f32 %v927, %v994
  %996 = vadd.xlane.f32.xlu0 %v995
  %v997 = vpop.xlane.xlu0 %996
  %v998 = vsel %vm941, %v935, 0.0
  %v999 = vadd.f32 %v933, %v998
  %1000 = vadd.xlane.f32.xlu0 %v999
  %v1001 = vpop.xlane.xlu0 %1000
  %v1002 = vsel %vm941, %v939, 0.0
  %v1003 = vadd.f32 %v937, %v1002
  %1004 = vadd.xlane.f32.xlu0 %v1003
  %v1005 = vpop.xlane.xlu0 %1004
  %v1006 = vmul.f32 %v863, %v863
  %v1007 = vmul.f32 %v865, %v865
  %v1008 = vmul.f32 %v867, %v867
  %v1009 = vmul.f32 %v869, %v869
  %v1010 = vmul.f32 %v873, %v873
  %v1011 = vmul.f32 %v875, %v875
  %v1012 = vmul.f32 %v877, %v877
  %v1013 = vmul.f32 %v879, %v879
  %v1014 = vmul.f32 %v883, %v883
  %v1015 = vmul.f32 %v885, %v885
  %v1016 = vmul.f32 %v887, %v887
  %v1017 = vmul.f32 %v889, %v889
  %v1018 = vmul.f32 %v893, %v893
  %v1019 = vmul.f32 %v895, %v895
  %v1020 = vmul.f32 %v897, %v897
  %v1021 = vmul.f32 %v899, %v899
  %v1022 = vmul.f32 %v903, %v903
  %v1023 = vmul.f32 %v905, %v905
  %v1024 = vmul.f32 %v907, %v907
  %v1025 = vmul.f32 %v909, %v909
  %v1026 = vmul.f32 %v913, %v913
  %v1027 = vmul.f32 %v915, %v915
  %v1028 = vmul.f32 %v917, %v917
  %v1029 = vmul.f32 %v919, %v919
  %v1030 = vmul.f32 %v923, %v923
  %v1031 = vmul.f32 %v925, %v925
  %v1032 = vmul.f32 %v927, %v927
  %v1033 = vmul.f32 %v929, %v929
  %v1034 = vmul.f32 %v933, %v933
  %v1035 = vmul.f32 %v935, %v935
  %v1036 = vmul.f32 %v937, %v937
  %v1037 = vmul.f32 %v939, %v939
  %v1038 = vsel %vm941, %v1007, 0.0
  %v1039 = vadd.f32 %v1006, %v1038
  %1040 = vadd.xlane.f32.xlu0 %v1039
  %v1041 = vpop.xlane.xlu0 %1040
  %v1042 = vsel %vm941, %v1009, 0.0
  %v1043 = vadd.f32 %v1008, %v1042
  %1044 = vadd.xlane.f32.xlu0 %v1043
  %v1045 = vpop.xlane.xlu0 %1044
  %v1046 = vsel %vm941, %v1011, 0.0
  %v1047 = vadd.f32 %v1010, %v1046
  %1048 = vadd.xlane.f32.xlu0 %v1047
  %v1049 = vpop.xlane.xlu0 %1048
  %v1050 = vsel %vm941, %v1013, 0.0
  %v1051 = vadd.f32 %v1012, %v1050
  %1052 = vadd.xlane.f32.xlu0 %v1051
  %v1053 = vpop.xlane.xlu0 %1052
  %v1054 = vsel %vm941, %v1015, 0.0
  %v1055 = vadd.f32 %v1014, %v1054
  %1056 = vadd.xlane.f32.xlu0 %v1055
  %v1057 = vpop.xlane.xlu0 %1056
  %v1058 = vsel %vm941, %v1017, 0.0
  %v1059 = vadd.f32 %v1016, %v1058
  %1060 = vadd.xlane.f32.xlu0 %v1059
  %v1061 = vpop.xlane.xlu0 %1060
  %v1062 = vsel %vm941, %v1019, 0.0
  %v1063 = vadd.f32 %v1018, %v1062
  %1064 = vadd.xlane.f32.xlu0 %v1063
  %v1065 = vpop.xlane.xlu0 %1064
  %v1066 = vsel %vm941, %v1021, 0.0
  %v1067 = vadd.f32 %v1020, %v1066
  %1068 = vadd.xlane.f32.xlu0 %v1067
  %v1069 = vpop.xlane.xlu0 %1068
  %v1070 = vsel %vm941, %v1023, 0.0
  %v1071 = vadd.f32 %v1022, %v1070
  %1072 = vadd.xlane.f32.xlu0 %v1071
  %v1073 = vpop.xlane.xlu0 %1072
  %v1074 = vsel %vm941, %v1025, 0.0
  %v1075 = vadd.f32 %v1024, %v1074
  %1076 = vadd.xlane.f32.xlu0 %v1075
  %v1077 = vpop.xlane.xlu0 %1076
  %v1078 = vsel %vm941, %v1027, 0.0
  %v1079 = vadd.f32 %v1026, %v1078
  %1080 = vadd.xlane.f32.xlu0 %v1079
  %v1081 = vpop.xlane.xlu0 %1080
  %v1082 = vsel %vm941, %v1029, 0.0
  %v1083 = vadd.f32 %v1028, %v1082
  %1084 = vadd.xlane.f32.xlu0 %v1083
  %v1085 = vpop.xlane.xlu0 %1084
  %v1086 = vsel %vm941, %v1031, 0.0
  %v1087 = vadd.f32 %v1030, %v1086
  %1088 = vadd.xlane.f32.xlu0 %v1087
  %v1089 = vpop.xlane.xlu0 %1088
  %v1090 = vsel %vm941, %v1033, 0.0
  %v1091 = vadd.f32 %v1032, %v1090
  %1092 = vadd.xlane.f32.xlu0 %v1091
  %v1093 = vpop.xlane.xlu0 %1092
  %v1094 = vsel %vm941, %v1035, 0.0
  %v1095 = vadd.f32 %v1034, %v1094
  %1096 = vadd.xlane.f32.xlu0 %v1095
  %v1097 = vpop.xlane.xlu0 %1096
  %v1098 = vsel %vm941, %v1037, 0.0
  %v1099 = vadd.f32 %v1036, %v1098
  %1100 = vadd.xlane.f32.xlu0 %v1099
  %v1101 = vpop.xlane.xlu0 %1100
  %v1102 = vmul.f32 %v945, 0.0051020407
  %v1103 = vmul.f32 %v949, 0.0051020407
  %v1104 = vmul.f32 %v953, 0.0051020407
  %v1105 = vmul.f32 %v957, 0.0051020407
  %v1106 = vmul.f32 %v961, 0.0051020407
  %v1107 = vmul.f32 %v965, 0.0051020407
  %v1108 = vmul.f32 %v969, 0.0051020407
  %v1109 = vmul.f32 %v973, 0.0051020407
  %v1110 = vmul.f32 %v977, 0.0051020407
  %v1111 = vmul.f32 %v981, 0.0051020407
  %v1112 = vmul.f32 %v985, 0.0051020407
  %v1113 = vmul.f32 %v989, 0.0051020407
  %v1114 = vmul.f32 %v993, 0.0051020407
  %v1115 = vmul.f32 %v997, 0.0051020407
  %v1116 = vmul.f32 %v1001, 0.0051020407
  %v1117 = vmul.f32 %v1005, 0.0051020407
  %v1118 = vmul.f32 %v1041, 0.0051020407
  %v1119 = vmul.f32 %v1045, 0.0051020407
  %v1120 = vmul.f32 %v1049, 0.0051020407
  %v1121 = vmul.f32 %v1053, 0.0051020407
  %v1122 = vmul.f32 %v1057, 0.0051020407
  %v1123 = vmul.f32 %v1061, 0.0051020407
  %v1124 = vmul.f32 %v1065, 0.0051020407
  %v1125 = vmul.f32 %v1069, 0.0051020407
  %v1126 = vmul.f32 %v1073, 0.0051020407
  %v1127 = vmul.f32 %v1077, 0.0051020407
  %v1128 = vmul.f32 %v1081, 0.0051020407
  %v1129 = vmul.f32 %v1085, 0.0051020407
  %v1130 = vmul.f32 %v1089, 0.0051020407
  %v1131 = vmul.f32 %v1093, 0.0051020407
  %v1132 = vmul.f32 %v1097, 0.0051020407
  %v1133 = vmul.f32 %v1101, 0.0051020407
  %v1134 = vmul.f32 %v1102, %v1102
  %v1135 = vmul.f32 %v1103, %v1103
  %v1136 = vmul.f32 %v1104, %v1104
  %v1137 = vmul.f32 %v1105, %v1105
  %v1138 = vmul.f32 %v1106, %v1106
  %v1139 = vmul.f32 %v1107, %v1107
  %v1140 = vmul.f32 %v1108, %v1108
  %v1141 = vmul.f32 %v1109, %v1109
  %v1142 = vmul.f32 %v1110, %v1110
  %v1143 = vmul.f32 %v1111, %v1111
  %v1144 = vmul.f32 %v1112, %v1112
  %v1145 = vmul.f32 %v1113, %v1113
  %v1146 = vmul.f32 %v1114, %v1114
  %v1147 = vmul.f32 %v1115, %v1115
  %v1148 = vmul.f32 %v1116, %v1116
  %v1149 = vmul.f32 %v1117, %v1117
  %v1150 = vsub.f32 %v1118, %v1134
  %v1151 = vsub.f32 %v1119, %v1135
  %v1152 = vsub.f32 %v1120, %v1136
  %v1153 = vsub.f32 %v1121, %v1137
  %v1154 = vsub.f32 %v1122, %v1138
  %v1155 = vsub.f32 %v1123, %v1139
  %v1156 = vsub.f32 %v1124, %v1140
  %v1157 = vsub.f32 %v1125, %v1141
  %v1158 = vsub.f32 %v1126, %v1142
  %v1159 = vsub.f32 %v1127, %v1143
  %v1160 = vsub.f32 %v1128, %v1144
  %v1161 = vsub.f32 %v1129, %v1145
  %v1162 = vsub.f32 %v1130, %v1146
  %v1163 = vsub.f32 %v1131, %v1147
  %v1164 = vsub.f32 %v1132, %v1148
  %v1165 = vsub.f32 %v1133, %v1149
  %v1166 = vld [vmem:[%s2] sm:$0xff]
  %v1167 = vld [vmem:[%s2 + $0x8] sm:$0xff]
  %v1168 = vld [vmem:[%s2 + $0x10] sm:$0xff]
  %v1169 = vld [vmem:[%s2 + $0x18] sm:$0xff]
  %v1170 = vld [vmem:[%s2 + $0x20] sm:$0xff]
  %v1171 = vld [vmem:[%s2 + $0x28] sm:$0xff]
  %v1172 = vld [vmem:[%s2 + $0x30] sm:$0xff]
  %v1173 = vld [vmem:[%s2 + $0x38] sm:$0xff]
  %v1174 = vld [vmem:[%s2 + $0x40] sm:$0xff]
  %v1175 = vld [vmem:[%s2 + $0x48] sm:$0xff]
  %v1176 = vld [vmem:[%s2 + $0x50] sm:$0xff]
  %v1177 = vld [vmem:[%s2 + $0x58] sm:$0xff]
  %v1178 = vld [vmem:[%s2 + $0x60] sm:$0xff]
  %v1179 = vld [vmem:[%s2 + $0x68] sm:$0xff]
  %v1180 = vld [vmem:[%s2 + $0x70] sm:$0xff]
  %v1181 = vld [vmem:[%s2 + $0x78] sm:$0xff]
  %v1182 = vadd.f32 %v1150, 1e-05
  %v1183 = vadd.f32 %v1151, 1e-05
  %v1184 = vadd.f32 %v1152, 1e-05
  %v1185 = vadd.f32 %v1153, 1e-05
  %v1186 = vadd.f32 %v1154, 1e-05
  %v1187 = vadd.f32 %v1155, 1e-05
  %v1188 = vadd.f32 %v1156, 1e-05
  %v1189 = vadd.f32 %v1157, 1e-05
  %v1190 = vadd.f32 %v1158, 1e-05
  %v1191 = vadd.f32 %v1159, 1e-05
  %v1192 = vadd.f32 %v1160, 1e-05
  %v1193 = vadd.f32 %v1161, 1e-05
  %v1194 = vadd.f32 %v1162, 1e-05
  %v1195 = vadd.f32 %v1163, 1e-05
  %v1196 = vadd.f32 %v1164, 1e-05
  %v1197 = vadd.f32 %v1165, 1e-05
  %v1198 = vrsqrt.pop %v1182
  %v1199 = vrsqrt.pop %v1183
  %v1200 = vrsqrt.pop %v1184
  %v1201 = vrsqrt.pop %v1185
  %v1202 = vrsqrt.pop %v1186
  %v1203 = vrsqrt.pop %v1187
  %v1204 = vrsqrt.pop %v1188
  %v1205 = vrsqrt.pop %v1189
  %v1206 = vrsqrt.pop %v1190
  %v1207 = vrsqrt.pop %v1191
  %v1208 = vrsqrt.pop %v1192
  %v1209 = vrsqrt.pop %v1193
  %v1210 = vrsqrt.pop %v1194
  %v1211 = vrsqrt.pop %v1195
  %v1212 = vrsqrt.pop %v1196
  %v1213 = vrsqrt.pop %v1197
  %v1214 = vmul.f32 %v1166, %v1198
  %v1215 = vmul.f32 %v1167, %v1199
  %v1216 = vmul.f32 %v1168, %v1200
  %v1217 = vmul.f32 %v1169, %v1201
  %v1218 = vmul.f32 %v1170, %v1202
  %v1219 = vmul.f32 %v1171, %v1203
  %v1220 = vmul.f32 %v1172, %v1204
  %v1221 = vmul.f32 %v1173, %v1205
  %v1222 = vmul.f32 %v1174, %v1206
  %v1223 = vmul.f32 %v1175, %v1207
  %v1224 = vmul.f32 %v1176, %v1208
  %v1225 = vmul.f32 %v1177, %v1209
  %v1226 = vmul.f32 %v1178, %v1210
  %v1227 = vmul.f32 %v1179, %v1211
  %v1228 = vmul.f32 %v1180, %v1212
  %v1229 = vmul.f32 %v1181, %v1213
  %v1230 = vmul.f32 %v1102, %v1214
  %v1231 = vmul.f32 %v1103, %v1215
  %v1232 = vmul.f32 %v1104, %v1216
  %v1233 = vmul.f32 %v1105, %v1217
  %v1234 = vmul.f32 %v1106, %v1218
  %v1235 = vmul.f32 %v1107, %v1219
  %v1236 = vmul.f32 %v1108, %v1220
  %v1237 = vmul.f32 %v1109, %v1221
  %v1238 = vmul.f32 %v1110, %v1222
  %v1239 = vmul.f32 %v1111, %v1223
  %v1240 = vmul.f32 %v1112, %v1224
  %v1241 = vmul.f32 %v1113, %v1225
  %v1242 = vmul.f32 %v1114, %v1226
  %v1243 = vmul.f32 %v1115, %v1227
  %v1244 = vmul.f32 %v1116, %v1228
  %v1245 = vmul.f32 %v1117, %v1229
  %1262 = vrot.lane.b32.xlu0 %v1230, 1
  %v1263 = vpop.permute.xlu0 %1262
  %1264 = vrot.lane.b32.xlu0 %v1231, 1
  %v1265 = vpop.permute.xlu0 %1264
  %1266 = vrot.lane.b32.xlu0 %v1232, 1
  %v1267 = vpop.permute.xlu0 %1266
  %1268 = vrot.lane.b32.xlu0 %v1233, 1
  %v1269 = vpop.permute.xlu0 %1268
  %1270 = vrot.lane.b32.xlu0 %v1234, 1
  %v1271 = vpop.permute.xlu0 %1270
  %1272 = vrot.lane.b32.xlu0 %v1235, 1
  %v1273 = vpop.permute.xlu0 %1272
  %1274 = vrot.lane.b32.xlu0 %v1236, 1
  %v1275 = vpop.permute.xlu0 %1274
  %1276 = vrot.lane.b32.xlu0 %v1237, 1
  %v1277 = vpop.permute.xlu0 %1276
  %1278 = vrot.lane.b32.xlu0 %v1238, 1
  %v1279 = vpop.permute.xlu0 %1278
  %1280 = vrot.lane.b32.xlu0 %v1239, 1
  %v1281 = vpop.permute.xlu0 %1280
  %1282 = vrot.lane.b32.xlu0 %v1240, 1
  %v1283 = vpop.permute.xlu0 %1282
  %1284 = vrot.lane.b32.xlu0 %v1241, 1
  %v1285 = vpop.permute.xlu0 %1284
  %1286 = vrot.lane.b32.xlu0 %v1242, 1
  %v1287 = vpop.permute.xlu0 %1286
  %1288 = vrot.lane.b32.xlu0 %v1243, 1
  %v1289 = vpop.permute.xlu0 %1288
  %1290 = vrot.lane.b32.xlu0 %v1244, 1
  %v1291 = vpop.permute.xlu0 %1290
  %1292 = vrot.lane.b32.xlu0 %v1245, 1
  %v1293 = vpop.permute.xlu0 %1292
  %v1310 = vsub.f32 %v1166, %v1263
  %v1311 = vsub.f32 %v1167, %v1265
  %v1312 = vsub.f32 %v1168, %v1267
  %v1313 = vsub.f32 %v1169, %v1269
  %v1314 = vsub.f32 %v1170, %v1271
  %v1315 = vsub.f32 %v1171, %v1273
  %v1316 = vsub.f32 %v1172, %v1275
  %v1317 = vsub.f32 %v1173, %v1277
  %v1318 = vsub.f32 %v1174, %v1279
  %v1319 = vsub.f32 %v1175, %v1281
  %v1320 = vsub.f32 %v1176, %v1283
  %v1321 = vsub.f32 %v1177, %v1285
  %v1322 = vsub.f32 %v1178, %v1287
  %v1323 = vsub.f32 %v1179, %v1289
  %v1324 = vsub.f32 %v1180, %v1291
  %v1325 = vsub.f32 %v1181, %v1293
  %1327 = vset.pattern.permute.xlu0 0
  %1328 = vperm.xlu0 %1327, %v1214
  %v1329 = vpop.permute.xlu0 %1328
  %1332 = vset.pattern.permute.xlu0 0
  %1333 = vperm.xlu0 %1332, %v1215
  %v1334 = vpop.permute.xlu0 %1333
  %1337 = vset.pattern.permute.xlu0 0
  %1338 = vperm.xlu0 %1337, %v1216
  %v1339 = vpop.permute.xlu0 %1338
  %1342 = vset.pattern.permute.xlu0 0
  %1343 = vperm.xlu0 %1342, %v1217
  %v1344 = vpop.permute.xlu0 %1343
  %1347 = vset.pattern.permute.xlu0 0
  %1348 = vperm.xlu0 %1347, %v1218
  %v1349 = vpop.permute.xlu0 %1348
  %1352 = vset.pattern.permute.xlu0 0
  %1353 = vperm.xlu0 %1352, %v1219
  %v1354 = vpop.permute.xlu0 %1353
  %1357 = vset.pattern.permute.xlu0 0
  %1358 = vperm.xlu0 %1357, %v1220
  %v1359 = vpop.permute.xlu0 %1358
  %1362 = vset.pattern.permute.xlu0 0
  %1363 = vperm.xlu0 %1362, %v1221
  %v1364 = vpop.permute.xlu0 %1363
  %1367 = vset.pattern.permute.xlu0 0
  %1368 = vperm.xlu0 %1367, %v1222
  %v1369 = vpop.permute.xlu0 %1368
  %1372 = vset.pattern.permute.xlu0 0
  %1373 = vperm.xlu0 %1372, %v1223
  %v1374 = vpop.permute.xlu0 %1373
  %1377 = vset.pattern.permute.xlu0 0
  %1378 = vperm.xlu0 %1377, %v1224
  %v1379 = vpop.permute.xlu0 %1378
  %1382 = vset.pattern.permute.xlu0 0
  %1383 = vperm.xlu0 %1382, %v1225
  %v1384 = vpop.permute.xlu0 %1383
  %1387 = vset.pattern.permute.xlu0 0
  %1388 = vperm.xlu0 %1387, %v1226
  %v1389 = vpop.permute.xlu0 %1388
  %1392 = vset.pattern.permute.xlu0 0
  %1393 = vperm.xlu0 %1392, %v1227
  %v1394 = vpop.permute.xlu0 %1393
  %1397 = vset.pattern.permute.xlu0 0
  %1398 = vperm.xlu0 %1397, %v1228
  %v1399 = vpop.permute.xlu0 %1398
  %1402 = vset.pattern.permute.xlu0 0
  %1403 = vperm.xlu0 %1402, %v1229
  %v1404 = vpop.permute.xlu0 %1403
  %v1406 = vmul.f32 %v863, %v1329
  %v1407 = vmul.f32 %v865, %v1329
  %v1408 = vmul.f32 %v867, %v1334
  %v1409 = vmul.f32 %v869, %v1334
  %v1410 = vmul.f32 %v873, %v1339
  %v1411 = vmul.f32 %v875, %v1339
  %v1412 = vmul.f32 %v877, %v1344
  %v1413 = vmul.f32 %v879, %v1344
  %v1414 = vmul.f32 %v883, %v1349
  %v1415 = vmul.f32 %v885, %v1349
  %v1416 = vmul.f32 %v887, %v1354
  %v1417 = vmul.f32 %v889, %v1354
  %v1418 = vmul.f32 %v893, %v1359
  %v1419 = vmul.f32 %v895, %v1359
  %v1420 = vmul.f32 %v897, %v1364
  %v1421 = vmul.f32 %v899, %v1364
  %v1422 = vmul.f32 %v903, %v1369
  %v1423 = vmul.f32 %v905, %v1369
  %v1424 = vmul.f32 %v907, %v1374
  %v1425 = vmul.f32 %v909, %v1374
  %v1426 = vmul.f32 %v913, %v1379
  %v1427 = vmul.f32 %v915, %v1379
  %v1428 = vmul.f32 %v917, %v1384
  %v1429 = vmul.f32 %v919, %v1384
  %v1430 = vmul.f32 %v923, %v1389
  %v1431 = vmul.f32 %v925, %v1389
  %v1432 = vmul.f32 %v927, %v1394
  %v1433 = vmul.f32 %v929, %v1394
  %v1434 = vmul.f32 %v933, %v1399
  %v1435 = vmul.f32 %v935, %v1399
  %v1436 = vmul.f32 %v937, %v1404
  %v1437 = vmul.f32 %v939, %v1404
  %1439 = vset.pattern.permute.xlu0 1
  %1440 = vperm.xlu0 %1439, %v1310
  %v1441 = vpop.permute.xlu0 %1440
  %1444 = vset.pattern.permute.xlu0 1
  %1445 = vperm.xlu0 %1444, %v1311
  %v1446 = vpop.permute.xlu0 %1445
  %1449 = vset.pattern.permute.xlu0 1
  %1450 = vperm.xlu0 %1449, %v1312
  %v1451 = vpop.permute.xlu0 %1450
  %1454 = vset.pattern.permute.xlu0 1
  %1455 = vperm.xlu0 %1454, %v1313
  %v1456 = vpop.permute.xlu0 %1455
  %1459 = vset.pattern.permute.xlu0 1
  %1460 = vperm.xlu0 %1459, %v1314
  %v1461 = vpop.permute.xlu0 %1460
  %1464 = vset.pattern.permute.xlu0 1
  %1465 = vperm.xlu0 %1464, %v1315
  %v1466 = vpop.permute.xlu0 %1465
  %1469 = vset.pattern.permute.xlu0 1
  %1470 = vperm.xlu0 %1469, %v1316
  %v1471 = vpop.permute.xlu0 %1470
  %1474 = vset.pattern.permute.xlu0 1
  %1475 = vperm.xlu0 %1474, %v1317
  %v1476 = vpop.permute.xlu0 %1475
  %1479 = vset.pattern.permute.xlu0 1
  %1480 = vperm.xlu0 %1479, %v1318
  %v1481 = vpop.permute.xlu0 %1480
  %1484 = vset.pattern.permute.xlu0 1
  %1485 = vperm.xlu0 %1484, %v1319
  %v1486 = vpop.permute.xlu0 %1485
  %1489 = vset.pattern.permute.xlu0 1
  %1490 = vperm.xlu0 %1489, %v1320
  %v1491 = vpop.permute.xlu0 %1490
  %1494 = vset.pattern.permute.xlu0 1
  %1495 = vperm.xlu0 %1494, %v1321
  %v1496 = vpop.permute.xlu0 %1495
  %1499 = vset.pattern.permute.xlu0 1
  %1500 = vperm.xlu0 %1499, %v1322
  %v1501 = vpop.permute.xlu0 %1500
  %1504 = vset.pattern.permute.xlu0 1
  %1505 = vperm.xlu0 %1504, %v1323
  %v1506 = vpop.permute.xlu0 %1505
  %1509 = vset.pattern.permute.xlu0 1
  %1510 = vperm.xlu0 %1509, %v1324
  %v1511 = vpop.permute.xlu0 %1510
  %1514 = vset.pattern.permute.xlu0 1
  %1515 = vperm.xlu0 %1514, %v1325
  %v1516 = vpop.permute.xlu0 %1515
  %v1518 = vadd.f32 %v1406, %v1441
  %v1519 = vadd.f32 %v1407, %v1441
  %v1520 = vadd.f32 %v1408, %v1446
  %v1521 = vadd.f32 %v1409, %v1446
  %v1522 = vadd.f32 %v1410, %v1451
  %v1523 = vadd.f32 %v1411, %v1451
  %v1524 = vadd.f32 %v1412, %v1456
  %v1525 = vadd.f32 %v1413, %v1456
  %v1526 = vadd.f32 %v1414, %v1461
  %v1527 = vadd.f32 %v1415, %v1461
  %v1528 = vadd.f32 %v1416, %v1466
  %v1529 = vadd.f32 %v1417, %v1466
  %v1530 = vadd.f32 %v1418, %v1471
  %v1531 = vadd.f32 %v1419, %v1471
  %v1532 = vadd.f32 %v1420, %v1476
  %v1533 = vadd.f32 %v1421, %v1476
  %v1534 = vadd.f32 %v1422, %v1481
  %v1535 = vadd.f32 %v1423, %v1481
  %v1536 = vadd.f32 %v1424, %v1486
  %v1537 = vadd.f32 %v1425, %v1486
  %v1538 = vadd.f32 %v1426, %v1491
  %v1539 = vadd.f32 %v1427, %v1491
  %v1540 = vadd.f32 %v1428, %v1496
  %v1541 = vadd.f32 %v1429, %v1496
  %v1542 = vadd.f32 %v1430, %v1501
  %v1543 = vadd.f32 %v1431, %v1501
  %v1544 = vadd.f32 %v1432, %v1506
  %v1545 = vadd.f32 %v1433, %v1506
  %v1546 = vadd.f32 %v1434, %v1511
  %v1547 = vadd.f32 %v1435, %v1511
  %v1548 = vadd.f32 %v1436, %v1516
  %v1549 = vadd.f32 %v1437, %v1516
  %v1550 = vmax.f32 %v1518, 0.0
  %v1551 = vmax.f32 %v1519, 0.0
  %v1552 = vmax.f32 %v1520, 0.0
  %v1553 = vmax.f32 %v1521, 0.0
  %v1554 = vmax.f32 %v1522, 0.0
  %v1555 = vmax.f32 %v1523, 0.0
  %v1556 = vmax.f32 %v1524, 0.0
  %v1557 = vmax.f32 %v1525, 0.0
  %v1558 = vmax.f32 %v1526, 0.0
  %v1559 = vmax.f32 %v1527, 0.0
  %v1560 = vmax.f32 %v1528, 0.0
  %v1561 = vmax.f32 %v1529, 0.0
  %v1562 = vmax.f32 %v1530, 0.0
  %v1563 = vmax.f32 %v1531, 0.0
  %v1564 = vmax.f32 %v1532, 0.0
  %v1565 = vmax.f32 %v1533, 0.0
  %v1566 = vmax.f32 %v1534, 0.0
  %v1567 = vmax.f32 %v1535, 0.0
  %v1568 = vmax.f32 %v1536, 0.0
  %v1569 = vmax.f32 %v1537, 0.0
  %v1570 = vmax.f32 %v1538, 0.0
  %v1571 = vmax.f32 %v1539, 0.0
  %v1572 = vmax.f32 %v1540, 0.0
  %v1573 = vmax.f32 %v1541, 0.0
  %v1574 = vmax.f32 %v1542, 0.0
  %v1575 = vmax.f32 %v1543, 0.0
  %v1576 = vmax.f32 %v1544, 0.0
  %v1577 = vmax.f32 %v1545, 0.0
  %v1578 = vmax.f32 %v1546, 0.0
  %v1579 = vmax.f32 %v1547, 0.0
  %v1580 = vmax.f32 %v1548, 0.0
  %v1581 = vmax.f32 %v1549, 0.0
  %1598 = vrot.lane.b32.xlu0 %v1551, 75
  %v1599 = vpop.permute.xlu0 %1598
  %1600 = vrot.lane.b32.xlu0 %v1553, 75
  %v1601 = vpop.permute.xlu0 %1600
  %1602 = vrot.lane.b32.xlu0 %v1555, 75
  %v1603 = vpop.permute.xlu0 %1602
  %1604 = vrot.lane.b32.xlu0 %v1557, 75
  %v1605 = vpop.permute.xlu0 %1604
  %1606 = vrot.lane.b32.xlu0 %v1559, 75
  %v1607 = vpop.permute.xlu0 %1606
  %1608 = vrot.lane.b32.xlu0 %v1561, 75
  %v1609 = vpop.permute.xlu0 %1608
  %1610 = vrot.lane.b32.xlu0 %v1563, 75
  %v1611 = vpop.permute.xlu0 %1610
  %1612 = vrot.lane.b32.xlu0 %v1565, 75
  %v1613 = vpop.permute.xlu0 %1612
  %1614 = vrot.lane.b32.xlu0 %v1567, 75
  %v1615 = vpop.permute.xlu0 %1614
  %1616 = vrot.lane.b32.xlu0 %v1569, 75
  %v1617 = vpop.permute.xlu0 %1616
  %1618 = vrot.lane.b32.xlu0 %v1571, 75
  %v1619 = vpop.permute.xlu0 %1618
  %1620 = vrot.lane.b32.xlu0 %v1573, 75
  %v1621 = vpop.permute.xlu0 %1620
  %1622 = vrot.lane.b32.xlu0 %v1575, 75
  %v1623 = vpop.permute.xlu0 %1622
  %1624 = vrot.lane.b32.xlu0 %v1577, 75
  %v1625 = vpop.permute.xlu0 %1624
  %1626 = vrot.lane.b32.xlu0 %v1579, 75
  %v1627 = vpop.permute.xlu0 %1626
  %1628 = vrot.lane.b32.xlu0 %v1581, 75
  %v1629 = vpop.permute.xlu0 %1628
  %1662 = vrot.lane.b32.xlu0 %v1550, 15
  %v1663 = vpop.permute.xlu0 %1662
  %1664 = vrot.lane.b32.xlu0 %v1551, 15
  %v1665 = vpop.permute.xlu0 %1664
  %1666 = vrot.lane.b32.xlu0 %v1552, 15
  %v1667 = vpop.permute.xlu0 %1666
  %1668 = vrot.lane.b32.xlu0 %v1553, 15
  %v1669 = vpop.permute.xlu0 %1668
  %1670 = vrot.lane.b32.xlu0 %v1554, 15
  %v1671 = vpop.permute.xlu0 %1670
  %1672 = vrot.lane.b32.xlu0 %v1555, 15
  %v1673 = vpop.permute.xlu0 %1672
  %1674 = vrot.lane.b32.xlu0 %v1556, 15
  %v1675 = vpop.permute.xlu0 %1674
  %1676 = vrot.lane.b32.xlu0 %v1557, 15
  %v1677 = vpop.permute.xlu0 %1676
  %1678 = vrot.lane.b32.xlu0 %v1558, 15
  %v1679 = vpop.permute.xlu0 %1678
  %1680 = vrot.lane.b32.xlu0 %v1559, 15
  %v1681 = vpop.permute.xlu0 %1680
  %1682 = vrot.lane.b32.xlu0 %v1560, 15
  %v1683 = vpop.permute.xlu0 %1682
  %1684 = vrot.lane.b32.xlu0 %v1561, 15
  %v1685 = vpop.permute.xlu0 %1684
  %1686 = vrot.lane.b32.xlu0 %v1562, 15
  %v1687 = vpop.permute.xlu0 %1686
  %1688 = vrot.lane.b32.xlu0 %v1563, 15
  %v1689 = vpop.permute.xlu0 %1688
  %1690 = vrot.lane.b32.xlu0 %v1564, 15
  %v1691 = vpop.permute.xlu0 %1690
  %1692 = vrot.lane.b32.xlu0 %v1565, 15
  %v1693 = vpop.permute.xlu0 %1692
  %1694 = vrot.lane.b32.xlu0 %v1566, 15
  %v1695 = vpop.permute.xlu0 %1694
  %1696 = vrot.lane.b32.xlu0 %v1567, 15
  %v1697 = vpop.permute.xlu0 %1696
  %1698 = vrot.lane.b32.xlu0 %v1568, 15
  %v1699 = vpop.permute.xlu0 %1698
  %1700 = vrot.lane.b32.xlu0 %v1569, 15
  %v1701 = vpop.permute.xlu0 %1700
  %1702 = vrot.lane.b32.xlu0 %v1570, 15
  %v1703 = vpop.permute.xlu0 %1702
  %1704 = vrot.lane.b32.xlu0 %v1571, 15
  %v1705 = vpop.permute.xlu0 %1704
  %1706 = vrot.lane.b32.xlu0 %v1572, 15
  %v1707 = vpop.permute.xlu0 %1706
  %1708 = vrot.lane.b32.xlu0 %v1573, 15
  %v1709 = vpop.permute.xlu0 %1708
  %1710 = vrot.lane.b32.xlu0 %v1574, 15
  %v1711 = vpop.permute.xlu0 %1710
  %1712 = vrot.lane.b32.xlu0 %v1575, 15
  %v1713 = vpop.permute.xlu0 %1712
  %1714 = vrot.lane.b32.xlu0 %v1576, 15
  %v1715 = vpop.permute.xlu0 %1714
  %1716 = vrot.lane.b32.xlu0 %v1577, 15
  %v1717 = vpop.permute.xlu0 %1716
  %1718 = vrot.lane.b32.xlu0 %v1578, 15
  %v1719 = vpop.permute.xlu0 %1718
  %1720 = vrot.lane.b32.xlu0 %v1579, 15
  %v1721 = vpop.permute.xlu0 %1720
  %1722 = vrot.lane.b32.xlu0 %v1580, 15
  %v1723 = vpop.permute.xlu0 %1722
  %1724 = vrot.lane.b32.xlu0 %v1581, 15
  %v1725 = vpop.permute.xlu0 %1724
  %vm1726 = vcmask 121856
  %v1727 = vsel %vm1726, %v1663, %v1665
  %v1728 = vsel %vm1726, %v1667, %v1669
  %v1729 = vsel %vm1726, %v1671, %v1673
  %v1730 = vsel %vm1726, %v1675, %v1677
  %v1731 = vsel %vm1726, %v1679, %v1681
  %v1732 = vsel %vm1726, %v1683, %v1685
  %v1733 = vsel %vm1726, %v1687, %v1689
  %v1734 = vsel %vm1726, %v1691, %v1693
  %v1735 = vsel %vm1726, %v1695, %v1697
  %v1736 = vsel %vm1726, %v1699, %v1701
  %v1737 = vsel %vm1726, %v1703, %v1705
  %v1738 = vsel %vm1726, %v1707, %v1709
  %v1739 = vsel %vm1726, %v1711, %v1713
  %v1740 = vsel %vm1726, %v1715, %v1717
  %v1741 = vsel %vm1726, %v1719, %v1721
  %v1742 = vsel %vm1726, %v1723, %v1725
  %v1775 = vsel %vm1726, %v1599, %v1663
  %v1776 = vsel %vm1726, %v1601, %v1667
  %v1777 = vsel %vm1726, %v1603, %v1671
  %v1778 = vsel %vm1726, %v1605, %v1675
  %v1779 = vsel %vm1726, %v1607, %v1679
  %v1780 = vsel %vm1726, %v1609, %v1683
  %v1781 = vsel %vm1726, %v1611, %v1687
  %v1782 = vsel %vm1726, %v1613, %v1691
  %v1783 = vsel %vm1726, %v1615, %v1695
  %v1784 = vsel %vm1726, %v1617, %v1699
  %v1785 = vsel %vm1726, %v1619, %v1703
  %v1786 = vsel %vm1726, %v1621, %v1707
  %v1787 = vsel %vm1726, %v1623, %v1711
  %v1788 = vsel %vm1726, %v1625, %v1715
  %v1789 = vsel %vm1726, %v1627, %v1719
  %v1790 = vsel %vm1726, %v1629, %v1723
  %v1791 = vld [vmem:[%s4] sm:$0x3]
  %v1792 = vld [vmem:[%s3] sm:$0xf]
  %v1793 = vld [vmem:[%s3 + $0x4] sm:$0xf]
  %v1794 = vld [vmem:[%s3 + $0x8] sm:$0xf]
  %v1795 = vld [vmem:[%s3 + $0xc] sm:$0xf]
  %v1796 = vpack.c.bf16 %v1776, %v1775
  %v1797 = vpack.c.bf16 %v1728, %v1727
  %v1798 = vpack.c.bf16 %v1778, %v1777
  %v1799 = vpack.c.bf16 %v1730, %v1729
  %v1800 = vpack.c.bf16 %v1780, %v1779
  %v1801 = vpack.c.bf16 %v1732, %v1731
  %v1802 = vpack.c.bf16 %v1782, %v1781
  %v1803 = vpack.c.bf16 %v1734, %v1733
  %v1804 = vpack.c.bf16 %v1784, %v1783
  %v1805 = vpack.c.bf16 %v1736, %v1735
  %v1806 = vpack.c.bf16 %v1786, %v1785
  %v1807 = vpack.c.bf16 %v1738, %v1737
  %v1808 = vpack.c.bf16 %v1788, %v1787
  %v1809 = vpack.c.bf16 %v1740, %v1739
  %v1810 = vpack.c.bf16 %v1790, %v1789
  %v1811 = vpack.c.bf16 %v1742, %v1741
  %v1816 = vunpack.c.l.b16 %v1792
  %v1817 = vunpack.c.l.b16 %v1793
  %v1818 = vunpack.c.l.b16 %v1794
  %v1819 = vunpack.c.l.b16 %v1795
  %v1820 = vpack.c.b16 %v1817, %v1816
  %v1821 = vpack.c.b16 %v1819, %v1818
  %1824 = vmatprep.subr.bf16.mxu0 %v1797
  %1825 = vmatpush1.bf16.msra.mxu0 %v1796
  %1826 = vmatprep.subr.bf16.mxu0 %v1799
  %1827 = vmatpush1.bf16.msra.mxu0 %v1798
  %1828 = vmatprep.subr.bf16.mxu0 %v1801
  %1829 = vmatpush1.bf16.msra.mxu0 %v1800
  %1830 = vmatprep.subr.bf16.mxu0 %v1803
  %1831 = vmatpush1.bf16.msra.mxu0 %v1802
  %1832 = vmatprep.subr.bf16.mxu0 %v1805
  %1833 = vmatpush1.bf16.msra.mxu0 %v1804
  %1834 = vmatprep.subr.bf16.mxu0 %v1807
  %1835 = vmatpush1.bf16.msra.mxu0 %v1806
  %1836 = vmatprep.subr.bf16.mxu0 %v1809
  %1837 = vmatpush1.bf16.msra.mxu0 %v1808
  %1838 = vmatprep.subr.bf16.mxu0 %v1811
  %1839 = vmatpush1.bf16.msra.mxu0 %v1810
  %1840 = vmatprep.subr.bf16.mxu0 0
  %1841 = vmatpush1.bf16.msra.mxu0 0
  %1842 = vmatprep.subr.bf16.mxu0 0
  %1843 = vmatpush1.bf16.msra.mxu0 0
  %1844 = vmatprep.subr.bf16.mxu0 0
  %1845 = vmatpush1.bf16.msra.mxu0 0
  %1846 = vmatprep.subr.bf16.mxu0 0
  %1847 = vmatpush1.bf16.msra.mxu0 0
  %1848 = vmatprep.subr.bf16.mxu0 0
  %1849 = vmatpush1.bf16.msra.mxu0 0
  %1850 = vmatprep.subr.bf16.mxu0 0
  %1851 = vmatpush1.bf16.msra.mxu0 0
  %1852 = vmatprep.subr.bf16.mxu0 0
  %1853 = vmatpush1.bf16.msra.mxu0 0
  %1854 = vmatprep.subr.bf16.mxu0 0
  %1855 = vmatpush1.bf16.msra.mxu0 0
  %1856 = vmatprep.mubr.bf16.mxu0 0
  %1857 = vmatmul.mubr.bf16.gmra.mrb[0].mxu0 %v1820
  %v1858 = vpop.f32.mrb[0].mxu0
  %v1859 = vadd.f32 0.0, %v1858
  %v1860 = vpop.f32.mrb[0].mxu0
  %v1861 = vadd.f32 0.0, %v1860
  %v1862 = vpop.f32.mrb[0].mxu0
  %v1863 = vadd.f32 0.0, %v1862
  %v1864 = vpop.f32.mrb[0].mxu0
  %v1865 = vadd.f32 0.0, %v1864
  %1866 = vmatprep.mubr.bf16.mxu0 0
  %1867 = vmatmul.mubr.bf16.gmra.mrb[0].mxu0 %v1821
  %v1868 = vpop.f32.mrb[0].mxu0
  %v1869 = vadd.f32 0.0, %v1868
  %v1870 = vpop.f32.mrb[0].mxu0
  %v1871 = vadd.f32 0.0, %v1870
  %v1872 = vpop.f32.mrb[0].mxu0
  %v1873 = vadd.f32 0.0, %v1872
  %v1874 = vpop.f32.mrb[0].mxu0
  %v1875 = vadd.f32 0.0, %v1874
  %1876 = vdwg.mxu0
  %v1878 = vlaneseq
  %v1879 = vshrl.u32 %v1878, 7
  %v1880 = vsub.s32 0, %v1879
  %v1881 = vrot.slane %v1791, %v1880
  %v1882 = vlaneseq
  %v1883 = vshrl.u32 %v1882, 7
  %v1884 = vsub.s32 1, %v1883
  %v1885 = vrot.slane %v1791, %v1884
  %v1888 = vmul.f32 %v1881, %v1859
  %v1889 = vmul.f32 %v1885, %v1861
  %v1890 = vmul.f32 %v1881, %v1863
  %v1891 = vmul.f32 %v1885, %v1865
  %v1892 = vmul.f32 %v1881, %v1869
  %v1893 = vmul.f32 %v1885, %v1871
  %v1894 = vmul.f32 %v1881, %v1873
  %v1895 = vmul.f32 %v1885, %v1875
  %1896 = vrot.lane.b32.xlu0 %v1551, 74
  %v1897 = vpop.permute.xlu0 %1896
  %1898 = vrot.lane.b32.xlu0 %v1553, 74
  %v1899 = vpop.permute.xlu0 %1898
  %1900 = vrot.lane.b32.xlu0 %v1555, 74
  %v1901 = vpop.permute.xlu0 %1900
  %1902 = vrot.lane.b32.xlu0 %v1557, 74
  %v1903 = vpop.permute.xlu0 %1902
  %1904 = vrot.lane.b32.xlu0 %v1559, 74
  %v1905 = vpop.permute.xlu0 %1904
  %1906 = vrot.lane.b32.xlu0 %v1561, 74
  %v1907 = vpop.permute.xlu0 %1906
  %1908 = vrot.lane.b32.xlu0 %v1563, 74
  %v1909 = vpop.permute.xlu0 %1908
  %1910 = vrot.lane.b32.xlu0 %v1565, 74
  %v1911 = vpop.permute.xlu0 %1910
  %1912 = vrot.lane.b32.xlu0 %v1567, 74
  %v1913 = vpop.permute.xlu0 %1912
  %1914 = vrot.lane.b32.xlu0 %v1569, 74
  %v1915 = vpop.permute.xlu0 %1914
  %1916 = vrot.lane.b32.xlu0 %v1571, 74
  %v1917 = vpop.permute.xlu0 %1916
  %1918 = vrot.lane.b32.xlu0 %v1573, 74
  %v1919 = vpop.permute.xlu0 %1918
  %1920 = vrot.lane.b32.xlu0 %v1575, 74
  %v1921 = vpop.permute.xlu0 %1920
  %1922 = vrot.lane.b32.xlu0 %v1577, 74
  %v1923 = vpop.permute.xlu0 %1922
  %1924 = vrot.lane.b32.xlu0 %v1579, 74
  %v1925 = vpop.permute.xlu0 %1924
  %1926 = vrot.lane.b32.xlu0 %v1581, 74
  %v1927 = vpop.permute.xlu0 %1926
  %1944 = vrot.lane.b32.xlu0 %v1550, 14
  %v1945 = vpop.permute.xlu0 %1944
  %1946 = vrot.lane.b32.xlu0 %v1551, 14
  %v1947 = vpop.permute.xlu0 %1946
  %1948 = vrot.lane.b32.xlu0 %v1552, 14
  %v1949 = vpop.permute.xlu0 %1948
  %1950 = vrot.lane.b32.xlu0 %v1553, 14
  %v1951 = vpop.permute.xlu0 %1950
  %1952 = vrot.lane.b32.xlu0 %v1554, 14
  %v1953 = vpop.permute.xlu0 %1952
  %1954 = vrot.lane.b32.xlu0 %v1555, 14
  %v1955 = vpop.permute.xlu0 %1954
  %1956 = vrot.lane.b32.xlu0 %v1556, 14
  %v1957 = vpop.permute.xlu0 %1956
  %1958 = vrot.lane.b32.xlu0 %v1557, 14
  %v1959 = vpop.permute.xlu0 %1958
  %1960 = vrot.lane.b32.xlu0 %v1558, 14
  %v1961 = vpop.permute.xlu0 %1960
  %1962 = vrot.lane.b32.xlu0 %v1559, 14
  %v1963 = vpop.permute.xlu0 %1962
  %1964 = vrot.lane.b32.xlu0 %v1560, 14
  %v1965 = vpop.permute.xlu0 %1964
  %1966 = vrot.lane.b32.xlu0 %v1561, 14
  %v1967 = vpop.permute.xlu0 %1966
  %1968 = vrot.lane.b32.xlu0 %v1562, 14
  %v1969 = vpop.permute.xlu0 %1968
  %1970 = vrot.lane.b32.xlu0 %v1563, 14
  %v1971 = vpop.permute.xlu0 %1970
  %1972 = vrot.lane.b32.xlu0 %v1564, 14
  %v1973 = vpop.permute.xlu0 %1972
  %1974 = vrot.lane.b32.xlu0 %v1565, 14
  %v1975 = vpop.permute.xlu0 %1974
  %1976 = vrot.lane.b32.xlu0 %v1566, 14
  %v1977 = vpop.permute.xlu0 %1976
  %1978 = vrot.lane.b32.xlu0 %v1567, 14
  %v1979 = vpop.permute.xlu0 %1978
  %1980 = vrot.lane.b32.xlu0 %v1568, 14
  %v1981 = vpop.permute.xlu0 %1980
  %1982 = vrot.lane.b32.xlu0 %v1569, 14
  %v1983 = vpop.permute.xlu0 %1982
  %1984 = vrot.lane.b32.xlu0 %v1570, 14
  %v1985 = vpop.permute.xlu0 %1984
  %1986 = vrot.lane.b32.xlu0 %v1571, 14
  %v1987 = vpop.permute.xlu0 %1986
  %1988 = vrot.lane.b32.xlu0 %v1572, 14
  %v1989 = vpop.permute.xlu0 %1988
  %1990 = vrot.lane.b32.xlu0 %v1573, 14
  %v1991 = vpop.permute.xlu0 %1990
  %1992 = vrot.lane.b32.xlu0 %v1574, 14
  %v1993 = vpop.permute.xlu0 %1992
  %1994 = vrot.lane.b32.xlu0 %v1575, 14
  %v1995 = vpop.permute.xlu0 %1994
  %1996 = vrot.lane.b32.xlu0 %v1576, 14
  %v1997 = vpop.permute.xlu0 %1996
  %1998 = vrot.lane.b32.xlu0 %v1577, 14
  %v1999 = vpop.permute.xlu0 %1998
  %2000 = vrot.lane.b32.xlu0 %v1578, 14
  %v2001 = vpop.permute.xlu0 %2000
  %2002 = vrot.lane.b32.xlu0 %v1579, 14
  %v2003 = vpop.permute.xlu0 %2002
  %2004 = vrot.lane.b32.xlu0 %v1580, 14
  %v2005 = vpop.permute.xlu0 %2004
  %2006 = vrot.lane.b32.xlu0 %v1581, 14
  %v2007 = vpop.permute.xlu0 %2006
  %vm2008 = vcmask 113664
  %v2009 = vsel %vm2008, %v1945, %v1947
  %v2010 = vsel %vm2008, %v1949, %v1951
  %v2011 = vsel %vm2008, %v1953, %v1955
  %v2012 = vsel %vm2008, %v1957, %v1959
  %v2013 = vsel %vm2008, %v1961, %v1963
  %v2014 = vsel %vm2008, %v1965, %v1967
  %v2015 = vsel %vm2008, %v1969, %v1971
  %v2016 = vsel %vm2008, %v1973, %v1975
  %v2017 = vsel %vm2008, %v1977, %v1979
  %v2018 = vsel %vm2008, %v1981, %v1983
  %v2019 = vsel %vm2008, %v1985, %v1987
  %v2020 = vsel %vm2008, %v1989, %v1991
  %v2021 = vsel %vm2008, %v1993, %v1995
  %v2022 = vsel %vm2008, %v1997, %v1999
  %v2023 = vsel %vm2008, %v2001, %v2003
  %v2024 = vsel %vm2008, %v2005, %v2007
  %v2057 = vsel %vm2008, %v1897, %v1945
  %v2058 = vsel %vm2008, %v1899, %v1949
  %v2059 = vsel %vm2008, %v1901, %v1953
  %v2060 = vsel %vm2008, %v1903, %v1957
  %v2061 = vsel %vm2008, %v1905, %v1961
  %v2062 = vsel %vm2008, %v1907, %v1965
  %v2063 = vsel %vm2008, %v1909, %v1969
  %v2064 = vsel %vm2008, %v1911, %v1973
  %v2065 = vsel %vm2008, %v1913, %v1977
  %v2066 = vsel %vm2008, %v1915, %v1981
  %v2067 = vsel %vm2008, %v1917, %v1985
  %v2068 = vsel %vm2008, %v1919, %v1989
  %v2069 = vsel %vm2008, %v1921, %v1993
  %v2070 = vsel %vm2008, %v1923, %v1997
  %v2071 = vsel %vm2008, %v1925, %v2001
  %v2072 = vsel %vm2008, %v1927, %v2005
  %s2073 = scalar_lea.vmem %s4, 2
  %v2074 = vld [vmem:[%s2073] sm:$0x3]
  %s2075 = scalar_lea.vmem %s3, 16
  %v2076 = vld [vmem:[%s2075] sm:$0xf]
  %v2077 = vld [vmem:[%s2075 + $0x4] sm:$0xf]
  %v2078 = vld [vmem:[%s2075 + $0x8] sm:$0xf]
  %v2079 = vld [vmem:[%s2075 + $0xc] sm:$0xf]
  %v2080 = vpack.c.bf16 %v2058, %v2057
  %v2081 = vpack.c.bf16 %v2010, %v2009
  %v2082 = vpack.c.bf16 %v2060, %v2059
  %v2083 = vpack.c.bf16 %v2012, %v2011
  %v2084 = vpack.c.bf16 %v2062, %v2061
  %v2085 = vpack.c.bf16 %v2014, %v2013
  %v2086 = vpack.c.bf16 %v2064, %v2063
  %v2087 = vpack.c.bf16 %v2016, %v2015
  %v2088 = vpack.c.bf16 %v2066, %v2065
  %v2089 = vpack.c.bf16 %v2018, %v2017
  %v2090 = vpack.c.bf16 %v2068, %v2067
  %v2091 = vpack.c.bf16 %v2020, %v2019
  %v2092 = vpack.c.bf16 %v2070, %v2069
  %v2093 = vpack.c.bf16 %v2022, %v2021
  %v2094 = vpack.c.bf16 %v2072, %v2071
  %v2095 = vpack.c.bf16 %v2024, %v2023
  %v2100 = vunpack.c.l.b16 %v2076
  %v2101 = vunpack.c.l.b16 %v2077
  %v2102 = vunpack.c.l.b16 %v2078
  %v2103 = vunpack.c.l.b16 %v2079
  %v2104 = vpack.c.b16 %v2101, %v2100
  %v2105 = vpack.c.b16 %v2103, %v2102
  %2108 = vmatprep.subr.bf16.mxu0 %v2081
  %2109 = vmatpush1.bf16.msra.mxu0 %v2080
  %2110 = vmatprep.subr.bf16.mxu0 %v2083
  %2111 = vmatpush1.bf16.msra.mxu0 %v2082
  %2112 = vmatprep.subr.bf16.mxu0 %v2085
  %2113 = vmatpush1.bf16.msra.mxu0 %v2084
  %2114 = vmatprep.subr.bf16.mxu0 %v2087
  %2115 = vmatpush1.bf16.msra.mxu0 %v2086
  %2116 = vmatprep.subr.bf16.mxu0 %v2089
  %2117 = vmatpush1.bf16.msra.mxu0 %v2088
  %2118 = vmatprep.subr.bf16.mxu0 %v2091
  %2119 = vmatpush1.bf16.msra.mxu0 %v2090
  %2120 = vmatprep.subr.bf16.mxu0 %v2093
  %2121 = vmatpush1.bf16.msra.mxu0 %v2092
  %2122 = vmatprep.subr.bf16.mxu0 %v2095
  %2123 = vmatpush1.bf16.msra.mxu0 %v2094
  %2124 = vmatprep.subr.bf16.mxu0 0
  %2125 = vmatpush1.bf16.msra.mxu0 0
  %2126 = vmatprep.subr.bf16.mxu0 0
  %2127 = vmatpush1.bf16.msra.mxu0 0
  %2128 = vmatprep.subr.bf16.mxu0 0
  %2129 = vmatpush1.bf16.msra.mxu0 0
  %2130 = vmatprep.subr.bf16.mxu0 0
  %2131 = vmatpush1.bf16.msra.mxu0 0
  %2132 = vmatprep.subr.bf16.mxu0 0
  %2133 = vmatpush1.bf16.msra.mxu0 0
  %2134 = vmatprep.subr.bf16.mxu0 0
  %2135 = vmatpush1.bf16.msra.mxu0 0
  %2136 = vmatprep.subr.bf16.mxu0 0
  %2137 = vmatpush1.bf16.msra.mxu0 0
  %2138 = vmatprep.subr.bf16.mxu0 0
  %2139 = vmatpush1.bf16.msra.mxu0 0
  %2140 = vmatprep.mubr.bf16.mxu0 0
  %2141 = vmatmul.mubr.bf16.gmra.mrb[0].mxu0 %v2104
  %v2142 = vpop.f32.mrb[0].mxu0
  %v2143 = vadd.f32 0.0, %v2142
  %v2144 = vpop.f32.mrb[0].mxu0
  %v2145 = vadd.f32 0.0, %v2144
  %v2146 = vpop.f32.mrb[0].mxu0
  %v2147 = vadd.f32 0.0, %v2146
  %v2148 = vpop.f32.mrb[0].mxu0
  %v2149 = vadd.f32 0.0, %v2148
  %2150 = vmatprep.mubr.bf16.mxu0 0
  %2151 = vmatmul.mubr.bf16.gmra.mrb[0].mxu0 %v2105
  %v2152 = vpop.f32.mrb[0].mxu0
  %v2153 = vadd.f32 0.0, %v2152
  %v2154 = vpop.f32.mrb[0].mxu0
  %v2155 = vadd.f32 0.0, %v2154
  %v2156 = vpop.f32.mrb[0].mxu0
  %v2157 = vadd.f32 0.0, %v2156
  %v2158 = vpop.f32.mrb[0].mxu0
  %v2159 = vadd.f32 0.0, %v2158
  %2160 = vdwg.mxu0
  %v2162 = vlaneseq
  %v2163 = vshrl.u32 %v2162, 7
  %v2164 = vsub.s32 0, %v2163
  %v2165 = vrot.slane %v2074, %v2164
  %v2166 = vlaneseq
  %v2167 = vshrl.u32 %v2166, 7
  %v2168 = vsub.s32 1, %v2167
  %v2169 = vrot.slane %v2074, %v2168
  %v2172 = vmul.f32 %v2165, %v2143
  %v2173 = vmul.f32 %v2169, %v2145
  %v2174 = vmul.f32 %v2165, %v2147
  %v2175 = vmul.f32 %v2169, %v2149
  %v2176 = vmul.f32 %v2165, %v2153
  %v2177 = vmul.f32 %v2169, %v2155
  %v2178 = vmul.f32 %v2165, %v2157
  %v2179 = vmul.f32 %v2169, %v2159
  %v2180 = vadd.f32 %v1888, %v2172
  %v2181 = vadd.f32 %v1889, %v2173
  %v2182 = vadd.f32 %v1890, %v2174
  %v2183 = vadd.f32 %v1891, %v2175
  %v2184 = vadd.f32 %v1892, %v2176
  %v2185 = vadd.f32 %v1893, %v2177
  %v2186 = vadd.f32 %v1894, %v2178
  %v2187 = vadd.f32 %v1895, %v2179
  %2188 = vrot.lane.b32.xlu0 %v1551, 73
  %v2189 = vpop.permute.xlu0 %2188
  %2190 = vrot.lane.b32.xlu0 %v1553, 73
  %v2191 = vpop.permute.xlu0 %2190
  %2192 = vrot.lane.b32.xlu0 %v1555, 73
  %v2193 = vpop.permute.xlu0 %2192
  %2194 = vrot.lane.b32.xlu0 %v1557, 73
  %v2195 = vpop.permute.xlu0 %2194
  %2196 = vrot.lane.b32.xlu0 %v1559, 73
  %v2197 = vpop.permute.xlu0 %2196
  %2198 = vrot.lane.b32.xlu0 %v1561, 73
  %v2199 = vpop.permute.xlu0 %2198
  %2200 = vrot.lane.b32.xlu0 %v1563, 73
  %v2201 = vpop.permute.xlu0 %2200
  %2202 = vrot.lane.b32.xlu0 %v1565, 73
  %v2203 = vpop.permute.xlu0 %2202
  %2204 = vrot.lane.b32.xlu0 %v1567, 73
  %v2205 = vpop.permute.xlu0 %2204
  %2206 = vrot.lane.b32.xlu0 %v1569, 73
  %v2207 = vpop.permute.xlu0 %2206
  %2208 = vrot.lane.b32.xlu0 %v1571, 73
  %v2209 = vpop.permute.xlu0 %2208
  %2210 = vrot.lane.b32.xlu0 %v1573, 73
  %v2211 = vpop.permute.xlu0 %2210
  %2212 = vrot.lane.b32.xlu0 %v1575, 73
  %v2213 = vpop.permute.xlu0 %2212
  %2214 = vrot.lane.b32.xlu0 %v1577, 73
  %v2215 = vpop.permute.xlu0 %2214
  %2216 = vrot.lane.b32.xlu0 %v1579, 73
  %v2217 = vpop.permute.xlu0 %2216
  %2218 = vrot.lane.b32.xlu0 %v1581, 73
  %v2219 = vpop.permute.xlu0 %2218
  %2236 = vrot.lane.b32.xlu0 %v1550, 13
  %v2237 = vpop.permute.xlu0 %2236
  %2238 = vrot.lane.b32.xlu0 %v1551, 13
  %v2239 = vpop.permute.xlu0 %2238
  %2240 = vrot.lane.b32.xlu0 %v1552, 13
  %v2241 = vpop.permute.xlu0 %2240
  %2242 = vrot.lane.b32.xlu0 %v1553, 13
  %v2243 = vpop.permute.xlu0 %2242
  %2244 = vrot.lane.b32.xlu0 %v1554, 13
  %v2245 = vpop.permute.xlu0 %2244
  %2246 = vrot.lane.b32.xlu0 %v1555, 13
  %v2247 = vpop.permute.xlu0 %2246
  %2248 = vrot.lane.b32.xlu0 %v1556, 13
  %v2249 = vpop.permute.xlu0 %2248
  %2250 = vrot.lane.b32.xlu0 %v1557, 13
  %v2251 = vpop.permute.xlu0 %2250
  %2252 = vrot.lane.b32.xlu0 %v1558, 13
  %v2253 = vpop.permute.xlu0 %2252
  %2254 = vrot.lane.b32.xlu0 %v1559, 13
  %v2255 = vpop.permute.xlu0 %2254
  %2256 = vrot.lane.b32.xlu0 %v1560, 13
  %v2257 = vpop.permute.xlu0 %2256
  %2258 = vrot.lane.b32.xlu0 %v1561, 13
  %v2259 = vpop.permute.xlu0 %2258
  %2260 = vrot.lane.b32.xlu0 %v1562, 13
  %v2261 = vpop.permute.xlu0 %2260
  %2262 = vrot.lane.b32.xlu0 %v1563, 13
  %v2263 = vpop.permute.xlu0 %2262
  %2264 = vrot.lane.b32.xlu0 %v1564, 13
  %v2265 = vpop.permute.xlu0 %2264
  %2266 = vrot.lane.b32.xlu0 %v1565, 13
  %v2267 = vpop.permute.xlu0 %2266
  %2268 = vrot.lane.b32.xlu0 %v1566, 13
  %v2269 = vpop.permute.xlu0 %2268
  %2270 = vrot.lane.b32.xlu0 %v1567, 13
  %v2271 = vpop.permute.xlu0 %2270
  %2272 = vrot.lane.b32.xlu0 %v1568, 13
  %v2273 = vpop.permute.xlu0 %2272
  %2274 = vrot.lane.b32.xlu0 %v1569, 13
  %v2275 = vpop.permute.xlu0 %2274
  %2276 = vrot.lane.b32.xlu0 %v1570, 13
  %v2277 = vpop.permute.xlu0 %2276
  %2278 = vrot.lane.b32.xlu0 %v1571, 13
  %v2279 = vpop.permute.xlu0 %2278
  %2280 = vrot.lane.b32.xlu0 %v1572, 13
  %v2281 = vpop.permute.xlu0 %2280
  %2282 = vrot.lane.b32.xlu0 %v1573, 13
  %v2283 = vpop.permute.xlu0 %2282
  %2284 = vrot.lane.b32.xlu0 %v1574, 13
  %v2285 = vpop.permute.xlu0 %2284
  %2286 = vrot.lane.b32.xlu0 %v1575, 13
  %v2287 = vpop.permute.xlu0 %2286
  %2288 = vrot.lane.b32.xlu0 %v1576, 13
  %v2289 = vpop.permute.xlu0 %2288
  %2290 = vrot.lane.b32.xlu0 %v1577, 13
  %v2291 = vpop.permute.xlu0 %2290
  %2292 = vrot.lane.b32.xlu0 %v1578, 13
  %v2293 = vpop.permute.xlu0 %2292
  %2294 = vrot.lane.b32.xlu0 %v1579, 13
  %v2295 = vpop.permute.xlu0 %2294
  %2296 = vrot.lane.b32.xlu0 %v1580, 13
  %v2297 = vpop.permute.xlu0 %2296
  %2298 = vrot.lane.b32.xlu0 %v1581, 13
  %v2299 = vpop.permute.xlu0 %2298
  %vm2300 = vcmask 105472
  %v2301 = vsel %vm2300, %v2237, %v2239
  %v2302 = vsel %vm2300, %v2241, %v2243
  %v2303 = vsel %vm2300, %v2245, %v2247
  %v2304 = vsel %vm2300, %v2249, %v2251
  %v2305 = vsel %vm2300, %v2253, %v2255
  %v2306 = vsel %vm2300, %v2257, %v2259
  %v2307 = vsel %vm2300, %v2261, %v2263
  %v2308 = vsel %vm2300, %v2265, %v2267
  %v2309 = vsel %vm2300, %v2269, %v2271
  %v2310 = vsel %vm2300, %v2273, %v2275
  %v2311 = vsel %vm2300, %v2277, %v2279
  %v2312 = vsel %vm2300, %v2281, %v2283
  %v2313 = vsel %vm2300, %v2285, %v2287
  %v2314 = vsel %vm2300, %v2289, %v2291
  %v2315 = vsel %vm2300, %v2293, %v2295
  %v2316 = vsel %vm2300, %v2297, %v2299
  %v2349 = vsel %vm2300, %v2189, %v2237
  %v2350 = vsel %vm2300, %v2191, %v2241
  %v2351 = vsel %vm2300, %v2193, %v2245
  %v2352 = vsel %vm2300, %v2195, %v2249
  %v2353 = vsel %vm2300, %v2197, %v2253
  %v2354 = vsel %vm2300, %v2199, %v2257
  %v2355 = vsel %vm2300, %v2201, %v2261
  %v2356 = vsel %vm2300, %v2203, %v2265
  %v2357 = vsel %vm2300, %v2205, %v2269
  %v2358 = vsel %vm2300, %v2207, %v2273
  %v2359 = vsel %vm2300, %v2209, %v2277
  %v2360 = vsel %vm2300, %v2211, %v2281
  %v2361 = vsel %vm2300, %v2213, %v2285
  %v2362 = vsel %vm2300, %v2215, %v2289
  %v2363 = vsel %vm2300, %v2217, %v2293
  %v2364 = vsel %vm2300, %v2219, %v2297
  %s2365 = scalar_lea.vmem %s4, 4
  %v2366 = vld [vmem:[%s2365] sm:$0x3]
  %s2367 = scalar_lea.vmem %s3, 32
  %v2368 = vld [vmem:[%s2367] sm:$0xf]
  %v2369 = vld [vmem:[%s2367 + $0x4] sm:$0xf]
  %v2370 = vld [vmem:[%s2367 + $0x8] sm:$0xf]
  %v2371 = vld [vmem:[%s2367 + $0xc] sm:$0xf]
  %v2372 = vpack.c.bf16 %v2350, %v2349
  %v2373 = vpack.c.bf16 %v2302, %v2301
  %v2374 = vpack.c.bf16 %v2352, %v2351
  %v2375 = vpack.c.bf16 %v2304, %v2303
  %v2376 = vpack.c.bf16 %v2354, %v2353
  %v2377 = vpack.c.bf16 %v2306, %v2305
  %v2378 = vpack.c.bf16 %v2356, %v2355
  %v2379 = vpack.c.bf16 %v2308, %v2307
  %v2380 = vpack.c.bf16 %v2358, %v2357
  %v2381 = vpack.c.bf16 %v2310, %v2309
  %v2382 = vpack.c.bf16 %v2360, %v2359
  %v2383 = vpack.c.bf16 %v2312, %v2311
  %v2384 = vpack.c.bf16 %v2362, %v2361
  %v2385 = vpack.c.bf16 %v2314, %v2313
  %v2386 = vpack.c.bf16 %v2364, %v2363
  %v2387 = vpack.c.bf16 %v2316, %v2315
  %v2392 = vunpack.c.l.b16 %v2368
  %v2393 = vunpack.c.l.b16 %v2369
  %v2394 = vunpack.c.l.b16 %v2370
  %v2395 = vunpack.c.l.b16 %v2371
  %v2396 = vpack.c.b16 %v2393, %v2392
  %v2397 = vpack.c.b16 %v2395, %v2394
  %2400 = vmatprep.subr.bf16.mxu0 %v2373
  %2401 = vmatpush1.bf16.msra.mxu0 %v2372
  %2402 = vmatprep.subr.bf16.mxu0 %v2375
  %2403 = vmatpush1.bf16.msra.mxu0 %v2374
  %2404 = vmatprep.subr.bf16.mxu0 %v2377
  %2405 = vmatpush1.bf16.msra.mxu0 %v2376
  %2406 = vmatprep.subr.bf16.mxu0 %v2379
  %2407 = vmatpush1.bf16.msra.mxu0 %v2378
  %2408 = vmatprep.subr.bf16.mxu0 %v2381
  %2409 = vmatpush1.bf16.msra.mxu0 %v2380
  %2410 = vmatprep.subr.bf16.mxu0 %v2383
  %2411 = vmatpush1.bf16.msra.mxu0 %v2382
  %2412 = vmatprep.subr.bf16.mxu0 %v2385
  %2413 = vmatpush1.bf16.msra.mxu0 %v2384
  %2414 = vmatprep.subr.bf16.mxu0 %v2387
  %2415 = vmatpush1.bf16.msra.mxu0 %v2386
  %2416 = vmatprep.subr.bf16.mxu0 0
  %2417 = vmatpush1.bf16.msra.mxu0 0
  %2418 = vmatprep.subr.bf16.mxu0 0
  %2419 = vmatpush1.bf16.msra.mxu0 0
  %2420 = vmatprep.subr.bf16.mxu0 0
  %2421 = vmatpush1.bf16.msra.mxu0 0
  %2422 = vmatprep.subr.bf16.mxu0 0
  %2423 = vmatpush1.bf16.msra.mxu0 0
  %2424 = vmatprep.subr.bf16.mxu0 0
  %2425 = vmatpush1.bf16.msra.mxu0 0
  %2426 = vmatprep.subr.bf16.mxu0 0
  %2427 = vmatpush1.bf16.msra.mxu0 0
  %2428 = vmatprep.subr.bf16.mxu0 0
  %2429 = vmatpush1.bf16.msra.mxu0 0
  %2430 = vmatprep.subr.bf16.mxu0 0
  %2431 = vmatpush1.bf16.msra.mxu0 0
  %2432 = vmatprep.mubr.bf16.mxu0 0
  %2433 = vmatmul.mubr.bf16.gmra.mrb[0].mxu0 %v2396
  %v2434 = vpop.f32.mrb[0].mxu0
  %v2435 = vadd.f32 0.0, %v2434
  %v2436 = vpop.f32.mrb[0].mxu0
  %v2437 = vadd.f32 0.0, %v2436
  %v2438 = vpop.f32.mrb[0].mxu0
  %v2439 = vadd.f32 0.0, %v2438
  %v2440 = vpop.f32.mrb[0].mxu0
  %v2441 = vadd.f32 0.0, %v2440
  %2442 = vmatprep.mubr.bf16.mxu0 0
  %2443 = vmatmul.mubr.bf16.gmra.mrb[0].mxu0 %v2397
  %v2444 = vpop.f32.mrb[0].mxu0
  %v2445 = vadd.f32 0.0, %v2444
  %v2446 = vpop.f32.mrb[0].mxu0
  %v2447 = vadd.f32 0.0, %v2446
  %v2448 = vpop.f32.mrb[0].mxu0
  %v2449 = vadd.f32 0.0, %v2448
  %v2450 = vpop.f32.mrb[0].mxu0
  %v2451 = vadd.f32 0.0, %v2450
  %2452 = vdwg.mxu0
  %v2454 = vlaneseq
  %v2455 = vshrl.u32 %v2454, 7
  %v2456 = vsub.s32 0, %v2455
  %v2457 = vrot.slane %v2366, %v2456
  %v2458 = vlaneseq
  %v2459 = vshrl.u32 %v2458, 7
  %v2460 = vsub.s32 1, %v2459
  %v2461 = vrot.slane %v2366, %v2460
  %v2464 = vmul.f32 %v2457, %v2435
  %v2465 = vmul.f32 %v2461, %v2437
  %v2466 = vmul.f32 %v2457, %v2439
  %v2467 = vmul.f32 %v2461, %v2441
  %v2468 = vmul.f32 %v2457, %v2445
  %v2469 = vmul.f32 %v2461, %v2447
  %v2470 = vmul.f32 %v2457, %v2449
  %v2471 = vmul.f32 %v2461, %v2451
  %v2472 = vadd.f32 %v2180, %v2464
  %v2473 = vadd.f32 %v2181, %v2465
  %v2474 = vadd.f32 %v2182, %v2466
  %v2475 = vadd.f32 %v2183, %v2467
  %v2476 = vadd.f32 %v2184, %v2468
  %v2477 = vadd.f32 %v2185, %v2469
  %v2478 = vadd.f32 %v2186, %v2470
  %v2479 = vadd.f32 %v2187, %v2471
  %2480 = vrot.lane.b32.xlu0 %v1551, 61
  %v2481 = vpop.permute.xlu0 %2480
  %2482 = vrot.lane.b32.xlu0 %v1553, 61
  %v2483 = vpop.permute.xlu0 %2482
  %2484 = vrot.lane.b32.xlu0 %v1555, 61
  %v2485 = vpop.permute.xlu0 %2484
  %2486 = vrot.lane.b32.xlu0 %v1557, 61
  %v2487 = vpop.permute.xlu0 %2486
  %2488 = vrot.lane.b32.xlu0 %v1559, 61
  %v2489 = vpop.permute.xlu0 %2488
  %2490 = vrot.lane.b32.xlu0 %v1561, 61
  %v2491 = vpop.permute.xlu0 %2490
  %2492 = vrot.lane.b32.xlu0 %v1563, 61
  %v2493 = vpop.permute.xlu0 %2492
  %2494 = vrot.lane.b32.xlu0 %v1565, 61
  %v2495 = vpop.permute.xlu0 %2494
  %2496 = vrot.lane.b32.xlu0 %v1567, 61
  %v2497 = vpop.permute.xlu0 %2496
  %2498 = vrot.lane.b32.xlu0 %v1569, 61
  %v2499 = vpop.permute.xlu0 %2498
  %2500 = vrot.lane.b32.xlu0 %v1571, 61
  %v2501 = vpop.permute.xlu0 %2500
  %2502 = vrot.lane.b32.xlu0 %v1573, 61
  %v2503 = vpop.permute.xlu0 %2502
  %2504 = vrot.lane.b32.xlu0 %v1575, 61
  %v2505 = vpop.permute.xlu0 %2504
  %2506 = vrot.lane.b32.xlu0 %v1577, 61
  %v2507 = vpop.permute.xlu0 %2506
  %2508 = vrot.lane.b32.xlu0 %v1579, 61
  %v2509 = vpop.permute.xlu0 %2508
  %2510 = vrot.lane.b32.xlu0 %v1581, 61
  %v2511 = vpop.permute.xlu0 %2510
  %2528 = vrot.lane.b32.xlu0 %v1550, 1
  %v2529 = vpop.permute.xlu0 %2528
  %2530 = vrot.lane.b32.xlu0 %v1551, 1
  %v2531 = vpop.permute.xlu0 %2530
  %2532 = vrot.lane.b32.xlu0 %v1552, 1
  %v2533 = vpop.permute.xlu0 %2532
  %2534 = vrot.lane.b32.xlu0 %v1553, 1
  %v2535 = vpop.permute.xlu0 %2534
  %2536 = vrot.lane.b32.xlu0 %v1554, 1
  %v2537 = vpop.permute.xlu0 %2536
  %2538 = vrot.lane.b32.xlu0 %v1555, 1
  %v2539 = vpop.permute.xlu0 %2538
  %2540 = vrot.lane.b32.xlu0 %v1556, 1
  %v2541 = vpop.permute.xlu0 %2540
  %2542 = vrot.lane.b32.xlu0 %v1557, 1
  %v2543 = vpop.permute.xlu0 %2542
  %2544 = vrot.lane.b32.xlu0 %v1558, 1
  %v2545 = vpop.permute.xlu0 %2544
  %2546 = vrot.lane.b32.xlu0 %v1559, 1
  %v2547 = vpop.permute.xlu0 %2546
  %2548 = vrot.lane.b32.xlu0 %v1560, 1
  %v2549 = vpop.permute.xlu0 %2548
  %2550 = vrot.lane.b32.xlu0 %v1561, 1
  %v2551 = vpop.permute.xlu0 %2550
  %2552 = vrot.lane.b32.xlu0 %v1562, 1
  %v2553 = vpop.permute.xlu0 %2552
  %2554 = vrot.lane.b32.xlu0 %v1563, 1
  %v2555 = vpop.permute.xlu0 %2554
  %2556 = vrot.lane.b32.xlu0 %v1564, 1
  %v2557 = vpop.permute.xlu0 %2556
  %2558 = vrot.lane.b32.xlu0 %v1565, 1
  %v2559 = vpop.permute.xlu0 %2558
  %2560 = vrot.lane.b32.xlu0 %v1566, 1
  %v2561 = vpop.permute.xlu0 %2560
  %2562 = vrot.lane.b32.xlu0 %v1567, 1
  %v2563 = vpop.permute.xlu0 %2562
  %2564 = vrot.lane.b32.xlu0 %v1568, 1
  %v2565 = vpop.permute.xlu0 %2564
  %2566 = vrot.lane.b32.xlu0 %v1569, 1
  %v2567 = vpop.permute.xlu0 %2566
  %2568 = vrot.lane.b32.xlu0 %v1570, 1
  %v2569 = vpop.permute.xlu0 %2568
  %2570 = vrot.lane.b32.xlu0 %v1571, 1
  %v2571 = vpop.permute.xlu0 %2570
  %2572 = vrot.lane.b32.xlu0 %v1572, 1
  %v2573 = vpop.permute.xlu0 %2572
  %2574 = vrot.lane.b32.xlu0 %v1573, 1
  %v2575 = vpop.permute.xlu0 %2574
  %2576 = vrot.lane.b32.xlu0 %v1574, 1
  %v2577 = vpop.permute.xlu0 %2576
  %2578 = vrot.lane.b32.xlu0 %v1575, 1
  %v2579 = vpop.permute.xlu0 %2578
  %2580 = vrot.lane.b32.xlu0 %v1576, 1
  %v2581 = vpop.permute.xlu0 %2580
  %2582 = vrot.lane.b32.xlu0 %v1577, 1
  %v2583 = vpop.permute.xlu0 %2582
  %2584 = vrot.lane.b32.xlu0 %v1578, 1
  %v2585 = vpop.permute.xlu0 %2584
  %2586 = vrot.lane.b32.xlu0 %v1579, 1
  %v2587 = vpop.permute.xlu0 %2586
  %2588 = vrot.lane.b32.xlu0 %v1580, 1
  %v2589 = vpop.permute.xlu0 %2588
  %2590 = vrot.lane.b32.xlu0 %v1581, 1
  %v2591 = vpop.permute.xlu0 %2590
  %vm2592 = vcmask 7168
  %v2593 = vsel %vm2592, %v2529, %v2531
  %v2594 = vsel %vm2592, %v2533, %v2535
  %v2595 = vsel %vm2592, %v2537, %v2539
  %v2596 = vsel %vm2592, %v2541, %v2543
  %v2597 = vsel %vm2592, %v2545, %v2547
  %v2598 = vsel %vm2592, %v2549, %v2551
  %v2599 = vsel %vm2592, %v2553, %v2555
  %v2600 = vsel %vm2592, %v2557, %v2559
  %v2601 = vsel %vm2592, %v2561, %v2563
  %v2602 = vsel %vm2592, %v2565, %v2567
  %v2603 = vsel %vm2592, %v2569, %v2571
  %v2604 = vsel %vm2592, %v2573, %v2575
  %v2605 = vsel %vm2592, %v2577, %v2579
  %v2606 = vsel %vm2592, %v2581, %v2583
  %v2607 = vsel %vm2592, %v2585, %v2587
  %v2608 = vsel %vm2592, %v2589, %v2591
  %v2641 = vsel %vm2592, %v2481, %v2529
  %v2642 = vsel %vm2592, %v2483, %v2533
  %v2643 = vsel %vm2592, %v2485, %v2537
  %v2644 = vsel %vm2592, %v2487, %v2541
  %v2645 = vsel %vm2592, %v2489, %v2545
  %v2646 = vsel %vm2592, %v2491, %v2549
  %v2647 = vsel %vm2592, %v2493, %v2553
  %v2648 = vsel %vm2592, %v2495, %v2557
  %v2649 = vsel %vm2592, %v2497, %v2561
  %v2650 = vsel %vm2592, %v2499, %v2565
  %v2651 = vsel %vm2592, %v2501, %v2569
  %v2652 = vsel %vm2592, %v2503, %v2573
  %v2653 = vsel %vm2592, %v2505, %v2577
  %v2654 = vsel %vm2592, %v2507, %v2581
  %v2655 = vsel %vm2592, %v2509, %v2585
  %v2656 = vsel %vm2592, %v2511, %v2589
  %s2657 = scalar_lea.vmem %s4, 6
  %v2658 = vld [vmem:[%s2657] sm:$0x3]
  %s2659 = scalar_lea.vmem %s3, 48
  %v2660 = vld [vmem:[%s2659] sm:$0xf]
  %v2661 = vld [vmem:[%s2659 + $0x4] sm:$0xf]
  %v2662 = vld [vmem:[%s2659 + $0x8] sm:$0xf]
  %v2663 = vld [vmem:[%s2659 + $0xc] sm:$0xf]
  %v2664 = vpack.c.bf16 %v2642, %v2641
  %v2665 = vpack.c.bf16 %v2594, %v2593
  %v2666 = vpack.c.bf16 %v2644, %v2643
  %v2667 = vpack.c.bf16 %v2596, %v2595
  %v2668 = vpack.c.bf16 %v2646, %v2645
  %v2669 = vpack.c.bf16 %v2598, %v2597
  %v2670 = vpack.c.bf16 %v2648, %v2647
  %v2671 = vpack.c.bf16 %v2600, %v2599
  %v2672 = vpack.c.bf16 %v2650, %v2649
  %v2673 = vpack.c.bf16 %v2602, %v2601
  %v2674 = vpack.c.bf16 %v2652, %v2651
  %v2675 = vpack.c.bf16 %v2604, %v2603
  %v2676 = vpack.c.bf16 %v2654, %v2653
  %v2677 = vpack.c.bf16 %v2606, %v2605
  %v2678 = vpack.c.bf16 %v2656, %v2655
  %v2679 = vpack.c.bf16 %v2608, %v2607
  %v2684 = vunpack.c.l.b16 %v2660
  %v2685 = vunpack.c.l.b16 %v2661
  %v2686 = vunpack.c.l.b16 %v2662
  %v2687 = vunpack.c.l.b16 %v2663
  %v2688 = vpack.c.b16 %v2685, %v2684
  %v2689 = vpack.c.b16 %v2687, %v2686
  %2692 = vmatprep.subr.bf16.mxu0 %v2665
  %2693 = vmatpush1.bf16.msra.mxu0 %v2664
  %2694 = vmatprep.subr.bf16.mxu0 %v2667
  %2695 = vmatpush1.bf16.msra.mxu0 %v2666
  %2696 = vmatprep.subr.bf16.mxu0 %v2669
  %2697 = vmatpush1.bf16.msra.mxu0 %v2668
  %2698 = vmatprep.subr.bf16.mxu0 %v2671
  %2699 = vmatpush1.bf16.msra.mxu0 %v2670
  %2700 = vmatprep.subr.bf16.mxu0 %v2673
  %2701 = vmatpush1.bf16.msra.mxu0 %v2672
  %2702 = vmatprep.subr.bf16.mxu0 %v2675
  %2703 = vmatpush1.bf16.msra.mxu0 %v2674
  %2704 = vmatprep.subr.bf16.mxu0 %v2677
  %2705 = vmatpush1.bf16.msra.mxu0 %v2676
  %2706 = vmatprep.subr.bf16.mxu0 %v2679
  %2707 = vmatpush1.bf16.msra.mxu0 %v2678
  %2708 = vmatprep.subr.bf16.mxu0 0
  %2709 = vmatpush1.bf16.msra.mxu0 0
  %2710 = vmatprep.subr.bf16.mxu0 0
  %2711 = vmatpush1.bf16.msra.mxu0 0
  %2712 = vmatprep.subr.bf16.mxu0 0
  %2713 = vmatpush1.bf16.msra.mxu0 0
  %2714 = vmatprep.subr.bf16.mxu0 0
  %2715 = vmatpush1.bf16.msra.mxu0 0
  %2716 = vmatprep.subr.bf16.mxu0 0
  %2717 = vmatpush1.bf16.msra.mxu0 0
  %2718 = vmatprep.subr.bf16.mxu0 0
  %2719 = vmatpush1.bf16.msra.mxu0 0
  %2720 = vmatprep.subr.bf16.mxu0 0
  %2721 = vmatpush1.bf16.msra.mxu0 0
  %2722 = vmatprep.subr.bf16.mxu0 0
  %2723 = vmatpush1.bf16.msra.mxu0 0
  %2724 = vmatprep.mubr.bf16.mxu0 0
  %2725 = vmatmul.mubr.bf16.gmra.mrb[0].mxu0 %v2688
  %v2726 = vpop.f32.mrb[0].mxu0
  %v2727 = vadd.f32 0.0, %v2726
  %v2728 = vpop.f32.mrb[0].mxu0
  %v2729 = vadd.f32 0.0, %v2728
  %v2730 = vpop.f32.mrb[0].mxu0
  %v2731 = vadd.f32 0.0, %v2730
  %v2732 = vpop.f32.mrb[0].mxu0
  %v2733 = vadd.f32 0.0, %v2732
  %2734 = vmatprep.mubr.bf16.mxu0 0
  %2735 = vmatmul.mubr.bf16.gmra.mrb[0].mxu0 %v2689
  %v2736 = vpop.f32.mrb[0].mxu0
  %v2737 = vadd.f32 0.0, %v2736
  %v2738 = vpop.f32.mrb[0].mxu0
  %v2739 = vadd.f32 0.0, %v2738
  %v2740 = vpop.f32.mrb[0].mxu0
  %v2741 = vadd.f32 0.0, %v2740
  %v2742 = vpop.f32.mrb[0].mxu0
  %v2743 = vadd.f32 0.0, %v2742
  %2744 = vdwg.mxu0
  %v2746 = vlaneseq
  %v2747 = vshrl.u32 %v2746, 7
  %v2748 = vsub.s32 0, %v2747
  %v2749 = vrot.slane %v2658, %v2748
  %v2750 = vlaneseq
  %v2751 = vshrl.u32 %v2750, 7
  %v2752 = vsub.s32 1, %v2751
  %v2753 = vrot.slane %v2658, %v2752
  %v2756 = vmul.f32 %v2749, %v2727
  %v2757 = vmul.f32 %v2753, %v2729
  %v2758 = vmul.f32 %v2749, %v2731
  %v2759 = vmul.f32 %v2753, %v2733
  %v2760 = vmul.f32 %v2749, %v2737
  %v2761 = vmul.f32 %v2753, %v2739
  %v2762 = vmul.f32 %v2749, %v2741
  %v2763 = vmul.f32 %v2753, %v2743
  %v2764 = vadd.f32 %v2472, %v2756
  %v2765 = vadd.f32 %v2473, %v2757
  %v2766 = vadd.f32 %v2474, %v2758
  %v2767 = vadd.f32 %v2475, %v2759
  %v2768 = vadd.f32 %v2476, %v2760
  %v2769 = vadd.f32 %v2477, %v2761
  %v2770 = vadd.f32 %v2478, %v2762
  %v2771 = vadd.f32 %v2479, %v2763
  %s2772 = scalar_lea.vmem %s4, 8
  %v2773 = vld [vmem:[%s2772] sm:$0x3]
  %s2774 = scalar_lea.vmem %s3, 64
  %v2775 = vld [vmem:[%s2774] sm:$0xf]
  %v2776 = vld [vmem:[%s2774 + $0x4] sm:$0xf]
  %v2777 = vld [vmem:[%s2774 + $0x8] sm:$0xf]
  %v2778 = vld [vmem:[%s2774 + $0xc] sm:$0xf]
  %v2779 = vpack.c.bf16 %v1552, %v1550
  %v2780 = vpack.c.bf16 %v1553, %v1551
  %v2781 = vpack.c.bf16 %v1556, %v1554
  %v2782 = vpack.c.bf16 %v1557, %v1555
  %v2783 = vpack.c.bf16 %v1560, %v1558
  %v2784 = vpack.c.bf16 %v1561, %v1559
  %v2785 = vpack.c.bf16 %v1564, %v1562
  %v2786 = vpack.c.bf16 %v1565, %v1563
  %v2787 = vpack.c.bf16 %v1568, %v1566
  %v2788 = vpack.c.bf16 %v1569, %v1567
  %v2789 = vpack.c.bf16 %v1572, %v1570
  %v2790 = vpack.c.bf16 %v1573, %v1571
  %v2791 = vpack.c.bf16 %v1576, %v1574
  %v2792 = vpack.c.bf16 %v1577, %v1575
  %v2793 = vpack.c.bf16 %v1580, %v1578
  %v2794 = vpack.c.bf16 %v1581, %v1579
  %v2799 = vunpack.c.l.b16 %v2775
  %v2800 = vunpack.c.l.b16 %v2776
  %v2801 = vunpack.c.l.b16 %v2777
  %v2802 = vunpack.c.l.b16 %v2778
  %v2803 = vpack.c.b16 %v2800, %v2799
  %v2804 = vpack.c.b16 %v2802, %v2801
  %2807 = vmatprep.subr.bf16.mxu0 %v2780
  %2808 = vmatpush1.bf16.msra.mxu0 %v2779
  %2809 = vmatprep.subr.bf16.mxu0 %v2782
  %2810 = vmatpush1.bf16.msra.mxu0 %v2781
  %2811 = vmatprep.subr.bf16.mxu0 %v2784
  %2812 = vmatpush1.bf16.msra.mxu0 %v2783
  %2813 = vmatprep.subr.bf16.mxu0 %v2786
  %2814 = vmatpush1.bf16.msra.mxu0 %v2785
  %2815 = vmatprep.subr.bf16.mxu0 %v2788
  %2816 = vmatpush1.bf16.msra.mxu0 %v2787
  %2817 = vmatprep.subr.bf16.mxu0 %v2790
  %2818 = vmatpush1.bf16.msra.mxu0 %v2789
  %2819 = vmatprep.subr.bf16.mxu0 %v2792
  %2820 = vmatpush1.bf16.msra.mxu0 %v2791
  %2821 = vmatprep.subr.bf16.mxu0 %v2794
  %2822 = vmatpush1.bf16.msra.mxu0 %v2793
  %2823 = vmatprep.subr.bf16.mxu0 0
  %2824 = vmatpush1.bf16.msra.mxu0 0
  %2825 = vmatprep.subr.bf16.mxu0 0
  %2826 = vmatpush1.bf16.msra.mxu0 0
  %2827 = vmatprep.subr.bf16.mxu0 0
  %2828 = vmatpush1.bf16.msra.mxu0 0
  %2829 = vmatprep.subr.bf16.mxu0 0
  %2830 = vmatpush1.bf16.msra.mxu0 0
  %2831 = vmatprep.subr.bf16.mxu0 0
  %2832 = vmatpush1.bf16.msra.mxu0 0
  %2833 = vmatprep.subr.bf16.mxu0 0
  %2834 = vmatpush1.bf16.msra.mxu0 0
  %2835 = vmatprep.subr.bf16.mxu0 0
  %2836 = vmatpush1.bf16.msra.mxu0 0
  %2837 = vmatprep.subr.bf16.mxu0 0
  %2838 = vmatpush1.bf16.msra.mxu0 0
  %2839 = vmatprep.mubr.bf16.mxu0 0
  %2840 = vmatmul.mubr.bf16.gmra.mrb[0].mxu0 %v2803
  %v2841 = vpop.f32.mrb[0].mxu0
  %v2842 = vadd.f32 0.0, %v2841
  %v2843 = vpop.f32.mrb[0].mxu0
  %v2844 = vadd.f32 0.0, %v2843
  %v2845 = vpop.f32.mrb[0].mxu0
  %v2846 = vadd.f32 0.0, %v2845
  %v2847 = vpop.f32.mrb[0].mxu0
  %v2848 = vadd.f32 0.0, %v2847
  %2849 = vmatprep.mubr.bf16.mxu0 0
  %2850 = vmatmul.mubr.bf16.gmra.mrb[0].mxu0 %v2804
  %v2851 = vpop.f32.mrb[0].mxu0
  %v2852 = vadd.f32 0.0, %v2851
  %v2853 = vpop.f32.mrb[0].mxu0
  %v2854 = vadd.f32 0.0, %v2853
  %v2855 = vpop.f32.mrb[0].mxu0
  %v2856 = vadd.f32 0.0, %v2855
  %v2857 = vpop.f32.mrb[0].mxu0
  %v2858 = vadd.f32 0.0, %v2857
  %2859 = vdwg.mxu0
  %v2861 = vlaneseq
  %v2862 = vshrl.u32 %v2861, 7
  %v2863 = vsub.s32 0, %v2862
  %v2864 = vrot.slane %v2773, %v2863
  %v2865 = vlaneseq
  %v2866 = vshrl.u32 %v2865, 7
  %v2867 = vsub.s32 1, %v2866
  %v2868 = vrot.slane %v2773, %v2867
  %v2871 = vmul.f32 %v2864, %v2842
  %v2872 = vmul.f32 %v2868, %v2844
  %v2873 = vmul.f32 %v2864, %v2846
  %v2874 = vmul.f32 %v2868, %v2848
  %v2875 = vmul.f32 %v2864, %v2852
  %v2876 = vmul.f32 %v2868, %v2854
  %v2877 = vmul.f32 %v2864, %v2856
  %v2878 = vmul.f32 %v2868, %v2858
  %v2879 = vadd.f32 %v2764, %v2871
  %v2880 = vadd.f32 %v2765, %v2872
  %v2881 = vadd.f32 %v2766, %v2873
  %v2882 = vadd.f32 %v2767, %v2874
  %v2883 = vadd.f32 %v2768, %v2875
  %v2884 = vadd.f32 %v2769, %v2876
  %v2885 = vadd.f32 %v2770, %v2877
  %v2886 = vadd.f32 %v2771, %v2878
  %2887 = vrot.lane.b32.xlu0 %v1550, 127
  %v2888 = vpop.permute.xlu0 %2887
  %2889 = vrot.lane.b32.xlu0 %v1551, 127
  %v2890 = vpop.permute.xlu0 %2889
  %2891 = vrot.lane.b32.xlu0 %v1552, 127
  %v2892 = vpop.permute.xlu0 %2891
  %2893 = vrot.lane.b32.xlu0 %v1553, 127
  %v2894 = vpop.permute.xlu0 %2893
  %2895 = vrot.lane.b32.xlu0 %v1554, 127
  %v2896 = vpop.permute.xlu0 %2895
  %2897 = vrot.lane.b32.xlu0 %v1555, 127
  %v2898 = vpop.permute.xlu0 %2897
  %2899 = vrot.lane.b32.xlu0 %v1556, 127
  %v2900 = vpop.permute.xlu0 %2899
  %2901 = vrot.lane.b32.xlu0 %v1557, 127
  %v2902 = vpop.permute.xlu0 %2901
  %2903 = vrot.lane.b32.xlu0 %v1558, 127
  %v2904 = vpop.permute.xlu0 %2903
  %2905 = vrot.lane.b32.xlu0 %v1559, 127
  %v2906 = vpop.permute.xlu0 %2905
  %2907 = vrot.lane.b32.xlu0 %v1560, 127
  %v2908 = vpop.permute.xlu0 %2907
  %2909 = vrot.lane.b32.xlu0 %v1561, 127
  %v2910 = vpop.permute.xlu0 %2909
  %2911 = vrot.lane.b32.xlu0 %v1562, 127
  %v2912 = vpop.permute.xlu0 %2911
  %2913 = vrot.lane.b32.xlu0 %v1563, 127
  %v2914 = vpop.permute.xlu0 %2913
  %2915 = vrot.lane.b32.xlu0 %v1564, 127
  %v2916 = vpop.permute.xlu0 %2915
  %2917 = vrot.lane.b32.xlu0 %v1565, 127
  %v2918 = vpop.permute.xlu0 %2917
  %2919 = vrot.lane.b32.xlu0 %v1566, 127
  %v2920 = vpop.permute.xlu0 %2919
  %2921 = vrot.lane.b32.xlu0 %v1567, 127
  %v2922 = vpop.permute.xlu0 %2921
  %2923 = vrot.lane.b32.xlu0 %v1568, 127
  %v2924 = vpop.permute.xlu0 %2923
  %2925 = vrot.lane.b32.xlu0 %v1569, 127
  %v2926 = vpop.permute.xlu0 %2925
  %2927 = vrot.lane.b32.xlu0 %v1570, 127
  %v2928 = vpop.permute.xlu0 %2927
  %2929 = vrot.lane.b32.xlu0 %v1571, 127
  %v2930 = vpop.permute.xlu0 %2929
  %2931 = vrot.lane.b32.xlu0 %v1572, 127
  %v2932 = vpop.permute.xlu0 %2931
  %2933 = vrot.lane.b32.xlu0 %v1573, 127
  %v2934 = vpop.permute.xlu0 %2933
  %2935 = vrot.lane.b32.xlu0 %v1574, 127
  %v2936 = vpop.permute.xlu0 %2935
  %2937 = vrot.lane.b32.xlu0 %v1575, 127
  %v2938 = vpop.permute.xlu0 %2937
  %2939 = vrot.lane.b32.xlu0 %v1576, 127
  %v2940 = vpop.permute.xlu0 %2939
  %2941 = vrot.lane.b32.xlu0 %v1577, 127
  %v2942 = vpop.permute.xlu0 %2941
  %2943 = vrot.lane.b32.xlu0 %v1578, 127
  %v2944 = vpop.permute.xlu0 %2943
  %2945 = vrot.lane.b32.xlu0 %v1579, 127
  %v2946 = vpop.permute.xlu0 %2945
  %2947 = vrot.lane.b32.xlu0 %v1580, 127
  %v2948 = vpop.permute.xlu0 %2947
  %2949 = vrot.lane.b32.xlu0 %v1581, 127
  %v2950 = vpop.permute.xlu0 %2949
  %vm2951 = vcmask 1039360
  %v2952 = vsel %vm2951, %v2888, %v2890
  %v2953 = vsel %vm2951, %v2892, %v2894
  %v2954 = vsel %vm2951, %v2896, %v2898
  %v2955 = vsel %vm2951, %v2900, %v2902
  %v2956 = vsel %vm2951, %v2904, %v2906
  %v2957 = vsel %vm2951, %v2908, %v2910
  %v2958 = vsel %vm2951, %v2912, %v2914
  %v2959 = vsel %vm2951, %v2916, %v2918
  %v2960 = vsel %vm2951, %v2920, %v2922
  %v2961 = vsel %vm2951, %v2924, %v2926
  %v2962 = vsel %vm2951, %v2928, %v2930
  %v2963 = vsel %vm2951, %v2932, %v2934
  %v2964 = vsel %vm2951, %v2936, %v2938
  %v2965 = vsel %vm2951, %v2940, %v2942
  %v2966 = vsel %vm2951, %v2944, %v2946
  %v2967 = vsel %vm2951, %v2948, %v2950
  %3000 = vrot.lane.b32.xlu0 %v1550, 67
  %v3001 = vpop.permute.xlu0 %3000
  %3002 = vrot.lane.b32.xlu0 %v1552, 67
  %v3003 = vpop.permute.xlu0 %3002
  %3004 = vrot.lane.b32.xlu0 %v1554, 67
  %v3005 = vpop.permute.xlu0 %3004
  %3006 = vrot.lane.b32.xlu0 %v1556, 67
  %v3007 = vpop.permute.xlu0 %3006
  %3008 = vrot.lane.b32.xlu0 %v1558, 67
  %v3009 = vpop.permute.xlu0 %3008
  %3010 = vrot.lane.b32.xlu0 %v1560, 67
  %v3011 = vpop.permute.xlu0 %3010
  %3012 = vrot.lane.b32.xlu0 %v1562, 67
  %v3013 = vpop.permute.xlu0 %3012
  %3014 = vrot.lane.b32.xlu0 %v1564, 67
  %v3015 = vpop.permute.xlu0 %3014
  %3016 = vrot.lane.b32.xlu0 %v1566, 67
  %v3017 = vpop.permute.xlu0 %3016
  %3018 = vrot.lane.b32.xlu0 %v1568, 67
  %v3019 = vpop.permute.xlu0 %3018
  %3020 = vrot.lane.b32.xlu0 %v1570, 67
  %v3021 = vpop.permute.xlu0 %3020
  %3022 = vrot.lane.b32.xlu0 %v1572, 67
  %v3023 = vpop.permute.xlu0 %3022
  %3024 = vrot.lane.b32.xlu0 %v1574, 67
  %v3025 = vpop.permute.xlu0 %3024
  %3026 = vrot.lane.b32.xlu0 %v1576, 67
  %v3027 = vpop.permute.xlu0 %3026
  %3028 = vrot.lane.b32.xlu0 %v1578, 67
  %v3029 = vpop.permute.xlu0 %3028
  %3030 = vrot.lane.b32.xlu0 %v1580, 67
  %v3031 = vpop.permute.xlu0 %3030
  %vm3048 = vcmask 547840
  %v3049 = vsel %vm3048, %v2890, %v3001
  %v3050 = vsel %vm3048, %v2894, %v3003
  %v3051 = vsel %vm3048, %v2898, %v3005
  %v3052 = vsel %vm3048, %v2902, %v3007
  %v3053 = vsel %vm3048, %v2906, %v3009
  %v3054 = vsel %vm3048, %v2910, %v3011
  %v3055 = vsel %vm3048, %v2914, %v3013
  %v3056 = vsel %vm3048, %v2918, %v3015
  %v3057 = vsel %vm3048, %v2922, %v3017
  %v3058 = vsel %vm3048, %v2926, %v3019
  %v3059 = vsel %vm3048, %v2930, %v3021
  %v3060 = vsel %vm3048, %v2934, %v3023
  %v3061 = vsel %vm3048, %v2938, %v3025
  %v3062 = vsel %vm3048, %v2942, %v3027
  %v3063 = vsel %vm3048, %v2946, %v3029
  %v3064 = vsel %vm3048, %v2950, %v3031
  %s3065 = scalar_lea.vmem %s4, 10
  %v3066 = vld [vmem:[%s3065] sm:$0x3]
  %s3067 = scalar_lea.vmem %s3, 80
  %v3068 = vld [vmem:[%s3067] sm:$0xf]
  %v3069 = vld [vmem:[%s3067 + $0x4] sm:$0xf]
  %v3070 = vld [vmem:[%s3067 + $0x8] sm:$0xf]
  %v3071 = vld [vmem:[%s3067 + $0xc] sm:$0xf]
  %v3072 = vpack.c.bf16 %v2953, %v2952
  %v3073 = vpack.c.bf16 %v3050, %v3049
  %v3074 = vpack.c.bf16 %v2955, %v2954
  %v3075 = vpack.c.bf16 %v3052, %v3051
  %v3076 = vpack.c.bf16 %v2957, %v2956
  %v3077 = vpack.c.bf16 %v3054, %v3053
  %v3078 = vpack.c.bf16 %v2959, %v2958
  %v3079 = vpack.c.bf16 %v3056, %v3055
  %v3080 = vpack.c.bf16 %v2961, %v2960
  %v3081 = vpack.c.bf16 %v3058, %v3057
  %v3082 = vpack.c.bf16 %v2963, %v2962
  %v3083 = vpack.c.bf16 %v3060, %v3059
  %v3084 = vpack.c.bf16 %v2965, %v2964
  %v3085 = vpack.c.bf16 %v3062, %v3061
  %v3086 = vpack.c.bf16 %v2967, %v2966
  %v3087 = vpack.c.bf16 %v3064, %v3063
  %v3092 = vunpack.c.l.b16 %v3068
  %v3093 = vunpack.c.l.b16 %v3069
  %v3094 = vunpack.c.l.b16 %v3070
  %v3095 = vunpack.c.l.b16 %v3071
  %v3096 = vpack.c.b16 %v3093, %v3092
  %v3097 = vpack.c.b16 %v3095, %v3094
  %3100 = vmatprep.subr.bf16.mxu0 %v3073
  %3101 = vmatpush1.bf16.msra.mxu0 %v3072
  %3102 = vmatprep.subr.bf16.mxu0 %v3075
  %3103 = vmatpush1.bf16.msra.mxu0 %v3074
  %3104 = vmatprep.subr.bf16.mxu0 %v3077
  %3105 = vmatpush1.bf16.msra.mxu0 %v3076
  %3106 = vmatprep.subr.bf16.mxu0 %v3079
  %3107 = vmatpush1.bf16.msra.mxu0 %v3078
  %3108 = vmatprep.subr.bf16.mxu0 %v3081
  %3109 = vmatpush1.bf16.msra.mxu0 %v3080
  %3110 = vmatprep.subr.bf16.mxu0 %v3083
  %3111 = vmatpush1.bf16.msra.mxu0 %v3082
  %3112 = vmatprep.subr.bf16.mxu0 %v3085
  %3113 = vmatpush1.bf16.msra.mxu0 %v3084
  %3114 = vmatprep.subr.bf16.mxu0 %v3087
  %3115 = vmatpush1.bf16.msra.mxu0 %v3086
  %3116 = vmatprep.subr.bf16.mxu0 0
  %3117 = vmatpush1.bf16.msra.mxu0 0
  %3118 = vmatprep.subr.bf16.mxu0 0
  %3119 = vmatpush1.bf16.msra.mxu0 0
  %3120 = vmatprep.subr.bf16.mxu0 0
  %3121 = vmatpush1.bf16.msra.mxu0 0
  %3122 = vmatprep.subr.bf16.mxu0 0
  %3123 = vmatpush1.bf16.msra.mxu0 0
  %3124 = vmatprep.subr.bf16.mxu0 0
  %3125 = vmatpush1.bf16.msra.mxu0 0
  %3126 = vmatprep.subr.bf16.mxu0 0
  %3127 = vmatpush1.bf16.msra.mxu0 0
  %3128 = vmatprep.subr.bf16.mxu0 0
  %3129 = vmatpush1.bf16.msra.mxu0 0
  %3130 = vmatprep.subr.bf16.mxu0 0
  %3131 = vmatpush1.bf16.msra.mxu0 0
  %3132 = vmatprep.mubr.bf16.mxu0 0
  %3133 = vmatmul.mubr.bf16.gmra.mrb[0].mxu0 %v3096
  %v3134 = vpop.f32.mrb[0].mxu0
  %v3135 = vadd.f32 0.0, %v3134
  %v3136 = vpop.f32.mrb[0].mxu0
  %v3137 = vadd.f32 0.0, %v3136
  %v3138 = vpop.f32.mrb[0].mxu0
  %v3139 = vadd.f32 0.0, %v3138
  %v3140 = vpop.f32.mrb[0].mxu0
  %v3141 = vadd.f32 0.0, %v3140
  %3142 = vmatprep.mubr.bf16.mxu0 0
  %3143 = vmatmul.mubr.bf16.gmra.mrb[0].mxu0 %v3097
  %v3144 = vpop.f32.mrb[0].mxu0
  %v3145 = vadd.f32 0.0, %v3144
  %v3146 = vpop.f32.mrb[0].mxu0
  %v3147 = vadd.f32 0.0, %v3146
  %v3148 = vpop.f32.mrb[0].mxu0
  %v3149 = vadd.f32 0.0, %v3148
  %v3150 = vpop.f32.mrb[0].mxu0
  %v3151 = vadd.f32 0.0, %v3150
  %3152 = vdwg.mxu0
  %v3154 = vlaneseq
  %v3155 = vshrl.u32 %v3154, 7
  %v3156 = vsub.s32 0, %v3155
  %v3157 = vrot.slane %v3066, %v3156
  %v3158 = vlaneseq
  %v3159 = vshrl.u32 %v3158, 7
  %v3160 = vsub.s32 1, %v3159
  %v3161 = vrot.slane %v3066, %v3160
  %v3164 = vmul.f32 %v3157, %v3135
  %v3165 = vmul.f32 %v3161, %v3137
  %v3166 = vmul.f32 %v3157, %v3139
  %v3167 = vmul.f32 %v3161, %v3141
  %v3168 = vmul.f32 %v3157, %v3145
  %v3169 = vmul.f32 %v3161, %v3147
  %v3170 = vmul.f32 %v3157, %v3149
  %v3171 = vmul.f32 %v3161, %v3151
  %v3172 = vadd.f32 %v2879, %v3164
  %v3173 = vadd.f32 %v2880, %v3165
  %v3174 = vadd.f32 %v2881, %v3166
  %v3175 = vadd.f32 %v2882, %v3167
  %v3176 = vadd.f32 %v2883, %v3168
  %v3177 = vadd.f32 %v2884, %v3169
  %v3178 = vadd.f32 %v2885, %v3170
  %v3179 = vadd.f32 %v2886, %v3171
  %3180 = vrot.lane.b32.xlu0 %v1550, 115
  %v3181 = vpop.permute.xlu0 %3180
  %3182 = vrot.lane.b32.xlu0 %v1551, 115
  %v3183 = vpop.permute.xlu0 %3182
  %3184 = vrot.lane.b32.xlu0 %v1552, 115
  %v3185 = vpop.permute.xlu0 %3184
  %3186 = vrot.lane.b32.xlu0 %v1553, 115
  %v3187 = vpop.permute.xlu0 %3186
  %3188 = vrot.lane.b32.xlu0 %v1554, 115
  %v3189 = vpop.permute.xlu0 %3188
  %3190 = vrot.lane.b32.xlu0 %v1555, 115
  %v3191 = vpop.permute.xlu0 %3190
  %3192 = vrot.lane.b32.xlu0 %v1556, 115
  %v3193 = vpop.permute.xlu0 %3192
  %3194 = vrot.lane.b32.xlu0 %v1557, 115
  %v3195 = vpop.permute.xlu0 %3194
  %3196 = vrot.lane.b32.xlu0 %v1558, 115
  %v3197 = vpop.permute.xlu0 %3196
  %3198 = vrot.lane.b32.xlu0 %v1559, 115
  %v3199 = vpop.permute.xlu0 %3198
  %3200 = vrot.lane.b32.xlu0 %v1560, 115
  %v3201 = vpop.permute.xlu0 %3200
  %3202 = vrot.lane.b32.xlu0 %v1561, 115
  %v3203 = vpop.permute.xlu0 %3202
  %3204 = vrot.lane.b32.xlu0 %v1562, 115
  %v3205 = vpop.permute.xlu0 %3204
  %3206 = vrot.lane.b32.xlu0 %v1563, 115
  %v3207 = vpop.permute.xlu0 %3206
  %3208 = vrot.lane.b32.xlu0 %v1564, 115
  %v3209 = vpop.permute.xlu0 %3208
  %3210 = vrot.lane.b32.xlu0 %v1565, 115
  %v3211 = vpop.permute.xlu0 %3210
  %3212 = vrot.lane.b32.xlu0 %v1566, 115
  %v3213 = vpop.permute.xlu0 %3212
  %3214 = vrot.lane.b32.xlu0 %v1567, 115
  %v3215 = vpop.permute.xlu0 %3214
  %3216 = vrot.lane.b32.xlu0 %v1568, 115
  %v3217 = vpop.permute.xlu0 %3216
  %3218 = vrot.lane.b32.xlu0 %v1569, 115
  %v3219 = vpop.permute.xlu0 %3218
  %3220 = vrot.lane.b32.xlu0 %v1570, 115
  %v3221 = vpop.permute.xlu0 %3220
  %3222 = vrot.lane.b32.xlu0 %v1571, 115
  %v3223 = vpop.permute.xlu0 %3222
  %3224 = vrot.lane.b32.xlu0 %v1572, 115
  %v3225 = vpop.permute.xlu0 %3224
  %3226 = vrot.lane.b32.xlu0 %v1573, 115
  %v3227 = vpop.permute.xlu0 %3226
  %3228 = vrot.lane.b32.xlu0 %v1574, 115
  %v3229 = vpop.permute.xlu0 %3228
  %3230 = vrot.lane.b32.xlu0 %v1575, 115
  %v3231 = vpop.permute.xlu0 %3230
  %3232 = vrot.lane.b32.xlu0 %v1576, 115
  %v3233 = vpop.permute.xlu0 %3232
  %3234 = vrot.lane.b32.xlu0 %v1577, 115
  %v3235 = vpop.permute.xlu0 %3234
  %3236 = vrot.lane.b32.xlu0 %v1578, 115
  %v3237 = vpop.permute.xlu0 %3236
  %3238 = vrot.lane.b32.xlu0 %v1579, 115
  %v3239 = vpop.permute.xlu0 %3238
  %3240 = vrot.lane.b32.xlu0 %v1580, 115
  %v3241 = vpop.permute.xlu0 %3240
  %3242 = vrot.lane.b32.xlu0 %v1581, 115
  %v3243 = vpop.permute.xlu0 %3242
  %vm3244 = vcmask 941056
  %v3245 = vsel %vm3244, %v3181, %v3183
  %v3246 = vsel %vm3244, %v3185, %v3187
  %v3247 = vsel %vm3244, %v3189, %v3191
  %v3248 = vsel %vm3244, %v3193, %v3195
  %v3249 = vsel %vm3244, %v3197, %v3199
  %v3250 = vsel %vm3244, %v3201, %v3203
  %v3251 = vsel %vm3244, %v3205, %v3207
  %v3252 = vsel %vm3244, %v3209, %v3211
  %v3253 = vsel %vm3244, %v3213, %v3215
  %v3254 = vsel %vm3244, %v3217, %v3219
  %v3255 = vsel %vm3244, %v3221, %v3223
  %v3256 = vsel %vm3244, %v3225, %v3227
  %v3257 = vsel %vm3244, %v3229, %v3231
  %v3258 = vsel %vm3244, %v3233, %v3235
  %v3259 = vsel %vm3244, %v3237, %v3239
  %v3260 = vsel %vm3244, %v3241, %v3243
  %3293 = vrot.lane.b32.xlu0 %v1550, 55
  %v3294 = vpop.permute.xlu0 %3293
  %3295 = vrot.lane.b32.xlu0 %v1552, 55
  %v3296 = vpop.permute.xlu0 %3295
  %3297 = vrot.lane.b32.xlu0 %v1554, 55
  %v3298 = vpop.permute.xlu0 %3297
  %3299 = vrot.lane.b32.xlu0 %v1556, 55
  %v3300 = vpop.permute.xlu0 %3299
  %3301 = vrot.lane.b32.xlu0 %v1558, 55
  %v3302 = vpop.permute.xlu0 %3301
  %3303 = vrot.lane.b32.xlu0 %v1560, 55
  %v3304 = vpop.permute.xlu0 %3303
  %3305 = vrot.lane.b32.xlu0 %v1562, 55
  %v3306 = vpop.permute.xlu0 %3305
  %3307 = vrot.lane.b32.xlu0 %v1564, 55
  %v3308 = vpop.permute.xlu0 %3307
  %3309 = vrot.lane.b32.xlu0 %v1566, 55
  %v3310 = vpop.permute.xlu0 %3309
  %3311 = vrot.lane.b32.xlu0 %v1568, 55
  %v3312 = vpop.permute.xlu0 %3311
  %3313 = vrot.lane.b32.xlu0 %v1570, 55
  %v3314 = vpop.permute.xlu0 %3313
  %3315 = vrot.lane.b32.xlu0 %v1572, 55
  %v3316 = vpop.permute.xlu0 %3315
  %3317 = vrot.lane.b32.xlu0 %v1574, 55
  %v3318 = vpop.permute.xlu0 %3317
  %3319 = vrot.lane.b32.xlu0 %v1576, 55
  %v3320 = vpop.permute.xlu0 %3319
  %3321 = vrot.lane.b32.xlu0 %v1578, 55
  %v3322 = vpop.permute.xlu0 %3321
  %3323 = vrot.lane.b32.xlu0 %v1580, 55
  %v3324 = vpop.permute.xlu0 %3323
  %vm3341 = vcmask 449536
  %v3342 = vsel %vm3341, %v3183, %v3294
  %v3343 = vsel %vm3341, %v3187, %v3296
  %v3344 = vsel %vm3341, %v3191, %v3298
  %v3345 = vsel %vm3341, %v3195, %v3300
  %v3346 = vsel %vm3341, %v3199, %v3302
  %v3347 = vsel %vm3341, %v3203, %v3304
  %v3348 = vsel %vm3341, %v3207, %v3306
  %v3349 = vsel %vm3341, %v3211, %v3308
  %v3350 = vsel %vm3341, %v3215, %v3310
  %v3351 = vsel %vm3341, %v3219, %v3312
  %v3352 = vsel %vm3341, %v3223, %v3314
  %v3353 = vsel %vm3341, %v3227, %v3316
  %v3354 = vsel %vm3341, %v3231, %v3318
  %v3355 = vsel %vm3341, %v3235, %v3320
  %v3356 = vsel %vm3341, %v3239, %v3322
  %v3357 = vsel %vm3341, %v3243, %v3324
  %s3358 = scalar_lea.vmem %s4, 12
  %v3359 = vld [vmem:[%s3358] sm:$0x3]
  %s3360 = scalar_lea.vmem %s3, 96
  %v3361 = vld [vmem:[%s3360] sm:$0xf]
  %v3362 = vld [vmem:[%s3360 + $0x4] sm:$0xf]
  %v3363 = vld [vmem:[%s3360 + $0x8] sm:$0xf]
  %v3364 = vld [vmem:[%s3360 + $0xc] sm:$0xf]
  %v3365 = vpack.c.bf16 %v3246, %v3245
  %v3366 = vpack.c.bf16 %v3343, %v3342
  %v3367 = vpack.c.bf16 %v3248, %v3247
  %v3368 = vpack.c.bf16 %v3345, %v3344
  %v3369 = vpack.c.bf16 %v3250, %v3249
  %v3370 = vpack.c.bf16 %v3347, %v3346
  %v3371 = vpack.c.bf16 %v3252, %v3251
  %v3372 = vpack.c.bf16 %v3349, %v3348
  %v3373 = vpack.c.bf16 %v3254, %v3253
  %v3374 = vpack.c.bf16 %v3351, %v3350
  %v3375 = vpack.c.bf16 %v3256, %v3255
  %v3376 = vpack.c.bf16 %v3353, %v3352
  %v3377 = vpack.c.bf16 %v3258, %v3257
  %v3378 = vpack.c.bf16 %v3355, %v3354
  %v3379 = vpack.c.bf16 %v3260, %v3259
  %v3380 = vpack.c.bf16 %v3357, %v3356
  %v3385 = vunpack.c.l.b16 %v3361
  %v3386 = vunpack.c.l.b16 %v3362
  %v3387 = vunpack.c.l.b16 %v3363
  %v3388 = vunpack.c.l.b16 %v3364
  %v3389 = vpack.c.b16 %v3386, %v3385
  %v3390 = vpack.c.b16 %v3388, %v3387
  %3393 = vmatprep.subr.bf16.mxu0 %v3366
  %3394 = vmatpush1.bf16.msra.mxu0 %v3365
  %3395 = vmatprep.subr.bf16.mxu0 %v3368
  %3396 = vmatpush1.bf16.msra.mxu0 %v3367
  %3397 = vmatprep.subr.bf16.mxu0 %v3370
  %3398 = vmatpush1.bf16.msra.mxu0 %v3369
  %3399 = vmatprep.subr.bf16.mxu0 %v3372
  %3400 = vmatpush1.bf16.msra.mxu0 %v3371
  %3401 = vmatprep.subr.bf16.mxu0 %v3374
  %3402 = vmatpush1.bf16.msra.mxu0 %v3373
  %3403 = vmatprep.subr.bf16.mxu0 %v3376
  %3404 = vmatpush1.bf16.msra.mxu0 %v3375
  %3405 = vmatprep.subr.bf16.mxu0 %v3378
  %3406 = vmatpush1.bf16.msra.mxu0 %v3377
  %3407 = vmatprep.subr.bf16.mxu0 %v3380
  %3408 = vmatpush1.bf16.msra.mxu0 %v3379
  %3409 = vmatprep.subr.bf16.mxu0 0
  %3410 = vmatpush1.bf16.msra.mxu0 0
  %3411 = vmatprep.subr.bf16.mxu0 0
  %3412 = vmatpush1.bf16.msra.mxu0 0
  %3413 = vmatprep.subr.bf16.mxu0 0
  %3414 = vmatpush1.bf16.msra.mxu0 0
  %3415 = vmatprep.subr.bf16.mxu0 0
  %3416 = vmatpush1.bf16.msra.mxu0 0
  %3417 = vmatprep.subr.bf16.mxu0 0
  %3418 = vmatpush1.bf16.msra.mxu0 0
  %3419 = vmatprep.subr.bf16.mxu0 0
  %3420 = vmatpush1.bf16.msra.mxu0 0
  %3421 = vmatprep.subr.bf16.mxu0 0
  %3422 = vmatpush1.bf16.msra.mxu0 0
  %3423 = vmatprep.subr.bf16.mxu0 0
  %3424 = vmatpush1.bf16.msra.mxu0 0
  %3425 = vmatprep.mubr.bf16.mxu0 0
  %3426 = vmatmul.mubr.bf16.gmra.mrb[0].mxu0 %v3389
  %v3427 = vpop.f32.mrb[0].mxu0
  %v3428 = vadd.f32 0.0, %v3427
  %v3429 = vpop.f32.mrb[0].mxu0
  %v3430 = vadd.f32 0.0, %v3429
  %v3431 = vpop.f32.mrb[0].mxu0
  %v3432 = vadd.f32 0.0, %v3431
  %v3433 = vpop.f32.mrb[0].mxu0
  %v3434 = vadd.f32 0.0, %v3433
  %3435 = vmatprep.mubr.bf16.mxu0 0
  %3436 = vmatmul.mubr.bf16.gmra.mrb[0].mxu0 %v3390
  %v3437 = vpop.f32.mrb[0].mxu0
  %v3438 = vadd.f32 0.0, %v3437
  %v3439 = vpop.f32.mrb[0].mxu0
  %v3440 = vadd.f32 0.0, %v3439
  %v3441 = vpop.f32.mrb[0].mxu0
  %v3442 = vadd.f32 0.0, %v3441
  %v3443 = vpop.f32.mrb[0].mxu0
  %v3444 = vadd.f32 0.0, %v3443
  %3445 = vdwg.mxu0
  %v3447 = vlaneseq
  %v3448 = vshrl.u32 %v3447, 7
  %v3449 = vsub.s32 0, %v3448
  %v3450 = vrot.slane %v3359, %v3449
  %v3451 = vlaneseq
  %v3452 = vshrl.u32 %v3451, 7
  %v3453 = vsub.s32 1, %v3452
  %v3454 = vrot.slane %v3359, %v3453
  %v3457 = vmul.f32 %v3450, %v3428
  %v3458 = vmul.f32 %v3454, %v3430
  %v3459 = vmul.f32 %v3450, %v3432
  %v3460 = vmul.f32 %v3454, %v3434
  %v3461 = vmul.f32 %v3450, %v3438
  %v3462 = vmul.f32 %v3454, %v3440
  %v3463 = vmul.f32 %v3450, %v3442
  %v3464 = vmul.f32 %v3454, %v3444
  %v3465 = vadd.f32 %v3172, %v3457
  %v3466 = vadd.f32 %v3173, %v3458
  %v3467 = vadd.f32 %v3174, %v3459
  %v3468 = vadd.f32 %v3175, %v3460
  %v3469 = vadd.f32 %v3176, %v3461
  %v3470 = vadd.f32 %v3177, %v3462
  %v3471 = vadd.f32 %v3178, %v3463
  %v3472 = vadd.f32 %v3179, %v3464
  %3473 = vrot.lane.b32.xlu0 %v1550, 114
  %v3474 = vpop.permute.xlu0 %3473
  %3475 = vrot.lane.b32.xlu0 %v1551, 114
  %v3476 = vpop.permute.xlu0 %3475
  %3477 = vrot.lane.b32.xlu0 %v1552, 114
  %v3478 = vpop.permute.xlu0 %3477
  %3479 = vrot.lane.b32.xlu0 %v1553, 114
  %v3480 = vpop.permute.xlu0 %3479
  %3481 = vrot.lane.b32.xlu0 %v1554, 114
  %v3482 = vpop.permute.xlu0 %3481
  %3483 = vrot.lane.b32.xlu0 %v1555, 114
  %v3484 = vpop.permute.xlu0 %3483
  %3485 = vrot.lane.b32.xlu0 %v1556, 114
  %v3486 = vpop.permute.xlu0 %3485
  %3487 = vrot.lane.b32.xlu0 %v1557, 114
  %v3488 = vpop.permute.xlu0 %3487
  %3489 = vrot.lane.b32.xlu0 %v1558, 114
  %v3490 = vpop.permute.xlu0 %3489
  %3491 = vrot.lane.b32.xlu0 %v1559, 114
  %v3492 = vpop.permute.xlu0 %3491
  %3493 = vrot.lane.b32.xlu0 %v1560, 114
  %v3494 = vpop.permute.xlu0 %3493
  %3495 = vrot.lane.b32.xlu0 %v1561, 114
  %v3496 = vpop.permute.xlu0 %3495
  %3497 = vrot.lane.b32.xlu0 %v1562, 114
  %v3498 = vpop.permute.xlu0 %3497
  %3499 = vrot.lane.b32.xlu0 %v1563, 114
  %v3500 = vpop.permute.xlu0 %3499
  %3501 = vrot.lane.b32.xlu0 %v1564, 114
  %v3502 = vpop.permute.xlu0 %3501
  %3503 = vrot.lane.b32.xlu0 %v1565, 114
  %v3504 = vpop.permute.xlu0 %3503
  %3505 = vrot.lane.b32.xlu0 %v1566, 114
  %v3506 = vpop.permute.xlu0 %3505
  %3507 = vrot.lane.b32.xlu0 %v1567, 114
  %v3508 = vpop.permute.xlu0 %3507
  %3509 = vrot.lane.b32.xlu0 %v1568, 114
  %v3510 = vpop.permute.xlu0 %3509
  %3511 = vrot.lane.b32.xlu0 %v1569, 114
  %v3512 = vpop.permute.xlu0 %3511
  %3513 = vrot.lane.b32.xlu0 %v1570, 114
  %v3514 = vpop.permute.xlu0 %3513
  %3515 = vrot.lane.b32.xlu0 %v1571, 114
  %v3516 = vpop.permute.xlu0 %3515
  %3517 = vrot.lane.b32.xlu0 %v1572, 114
  %v3518 = vpop.permute.xlu0 %3517
  %3519 = vrot.lane.b32.xlu0 %v1573, 114
  %v3520 = vpop.permute.xlu0 %3519
  %3521 = vrot.lane.b32.xlu0 %v1574, 114
  %v3522 = vpop.permute.xlu0 %3521
  %3523 = vrot.lane.b32.xlu0 %v1575, 114
  %v3524 = vpop.permute.xlu0 %3523
  %3525 = vrot.lane.b32.xlu0 %v1576, 114
  %v3526 = vpop.permute.xlu0 %3525
  %3527 = vrot.lane.b32.xlu0 %v1577, 114
  %v3528 = vpop.permute.xlu0 %3527
  %3529 = vrot.lane.b32.xlu0 %v1578, 114
  %v3530 = vpop.permute.xlu0 %3529
  %3531 = vrot.lane.b32.xlu0 %v1579, 114
  %v3532 = vpop.permute.xlu0 %3531
  %3533 = vrot.lane.b32.xlu0 %v1580, 114
  %v3534 = vpop.permute.xlu0 %3533
  %3535 = vrot.lane.b32.xlu0 %v1581, 114
  %v3536 = vpop.permute.xlu0 %3535
  %vm3537 = vcmask 932864
  %v3538 = vsel %vm3537, %v3474, %v3476
  %v3539 = vsel %vm3537, %v3478, %v3480
  %v3540 = vsel %vm3537, %v3482, %v3484
  %v3541 = vsel %vm3537, %v3486, %v3488
  %v3542 = vsel %vm3537, %v3490, %v3492
  %v3543 = vsel %vm3537, %v3494, %v3496
  %v3544 = vsel %vm3537, %v3498, %v3500
  %v3545 = vsel %vm3537, %v3502, %v3504
  %v3546 = vsel %vm3537, %v3506, %v3508
  %v3547 = vsel %vm3537, %v3510, %v3512
  %v3548 = vsel %vm3537, %v3514, %v3516
  %v3549 = vsel %vm3537, %v3518, %v3520
  %v3550 = vsel %vm3537, %v3522, %v3524
  %v3551 = vsel %vm3537, %v3526, %v3528
  %v3552 = vsel %vm3537, %v3530, %v3532
  %v3553 = vsel %vm3537, %v3534, %v3536
  %3586 = vrot.lane.b32.xlu0 %v1550, 54
  %v3587 = vpop.permute.xlu0 %3586
  %3588 = vrot.lane.b32.xlu0 %v1552, 54
  %v3589 = vpop.permute.xlu0 %3588
  %3590 = vrot.lane.b32.xlu0 %v1554, 54
  %v3591 = vpop.permute.xlu0 %3590
  %3592 = vrot.lane.b32.xlu0 %v1556, 54
  %v3593 = vpop.permute.xlu0 %3592
  %3594 = vrot.lane.b32.xlu0 %v1558, 54
  %v3595 = vpop.permute.xlu0 %3594
  %3596 = vrot.lane.b32.xlu0 %v1560, 54
  %v3597 = vpop.permute.xlu0 %3596
  %3598 = vrot.lane.b32.xlu0 %v1562, 54
  %v3599 = vpop.permute.xlu0 %3598
  %3600 = vrot.lane.b32.xlu0 %v1564, 54
  %v3601 = vpop.permute.xlu0 %3600
  %3602 = vrot.lane.b32.xlu0 %v1566, 54
  %v3603 = vpop.permute.xlu0 %3602
  %3604 = vrot.lane.b32.xlu0 %v1568, 54
  %v3605 = vpop.permute.xlu0 %3604
  %3606 = vrot.lane.b32.xlu0 %v1570, 54
  %v3607 = vpop.permute.xlu0 %3606
  %3608 = vrot.lane.b32.xlu0 %v1572, 54
  %v3609 = vpop.permute.xlu0 %3608
  %3610 = vrot.lane.b32.xlu0 %v1574, 54
  %v3611 = vpop.permute.xlu0 %3610
  %3612 = vrot.lane.b32.xlu0 %v1576, 54
  %v3613 = vpop.permute.xlu0 %3612
  %3614 = vrot.lane.b32.xlu0 %v1578, 54
  %v3615 = vpop.permute.xlu0 %3614
  %3616 = vrot.lane.b32.xlu0 %v1580, 54
  %v3617 = vpop.permute.xlu0 %3616
  %vm3634 = vcmask 441344
  %v3635 = vsel %vm3634, %v3476, %v3587
  %v3636 = vsel %vm3634, %v3480, %v3589
  %v3637 = vsel %vm3634, %v3484, %v3591
  %v3638 = vsel %vm3634, %v3488, %v3593
  %v3639 = vsel %vm3634, %v3492, %v3595
  %v3640 = vsel %vm3634, %v3496, %v3597
  %v3641 = vsel %vm3634, %v3500, %v3599
  %v3642 = vsel %vm3634, %v3504, %v3601
  %v3643 = vsel %vm3634, %v3508, %v3603
  %v3644 = vsel %vm3634, %v3512, %v3605
  %v3645 = vsel %vm3634, %v3516, %v3607
  %v3646 = vsel %vm3634, %v3520, %v3609
  %v3647 = vsel %vm3634, %v3524, %v3611
  %v3648 = vsel %vm3634, %v3528, %v3613
  %v3649 = vsel %vm3634, %v3532, %v3615
  %v3650 = vsel %vm3634, %v3536, %v3617
  %s3651 = scalar_lea.vmem %s4, 14
  %v3652 = vld [vmem:[%s3651] sm:$0x3]
  %s3653 = scalar_lea.vmem %s3, 112
  %v3654 = vld [vmem:[%s3653] sm:$0xf]
  %v3655 = vld [vmem:[%s3653 + $0x4] sm:$0xf]
  %v3656 = vld [vmem:[%s3653 + $0x8] sm:$0xf]
  %v3657 = vld [vmem:[%s3653 + $0xc] sm:$0xf]
  %v3658 = vpack.c.bf16 %v3539, %v3538
  %v3659 = vpack.c.bf16 %v3636, %v3635
  %v3660 = vpack.c.bf16 %v3541, %v3540
  %v3661 = vpack.c.bf16 %v3638, %v3637
  %v3662 = vpack.c.bf16 %v3543, %v3542
  %v3663 = vpack.c.bf16 %v3640, %v3639
  %v3664 = vpack.c.bf16 %v3545, %v3544
  %v3665 = vpack.c.bf16 %v3642, %v3641
  %v3666 = vpack.c.bf16 %v3547, %v3546
  %v3667 = vpack.c.bf16 %v3644, %v3643
  %v3668 = vpack.c.bf16 %v3549, %v3548
  %v3669 = vpack.c.bf16 %v3646, %v3645
  %v3670 = vpack.c.bf16 %v3551, %v3550
  %v3671 = vpack.c.bf16 %v3648, %v3647
  %v3672 = vpack.c.bf16 %v3553, %v3552
  %v3673 = vpack.c.bf16 %v3650, %v3649
  %v3678 = vunpack.c.l.b16 %v3654
  %v3679 = vunpack.c.l.b16 %v3655
  %v3680 = vunpack.c.l.b16 %v3656
  %v3681 = vunpack.c.l.b16 %v3657
  %v3682 = vpack.c.b16 %v3679, %v3678
  %v3683 = vpack.c.b16 %v3681, %v3680
  %3686 = vmatprep.subr.bf16.mxu0 %v3659
  %3687 = vmatpush1.bf16.msra.mxu0 %v3658
  %3688 = vmatprep.subr.bf16.mxu0 %v3661
  %3689 = vmatpush1.bf16.msra.mxu0 %v3660
  %3690 = vmatprep.subr.bf16.mxu0 %v3663
  %3691 = vmatpush1.bf16.msra.mxu0 %v3662
  %3692 = vmatprep.subr.bf16.mxu0 %v3665
  %3693 = vmatpush1.bf16.msra.mxu0 %v3664
  %3694 = vmatprep.subr.bf16.mxu0 %v3667
  %3695 = vmatpush1.bf16.msra.mxu0 %v3666
  %3696 = vmatprep.subr.bf16.mxu0 %v3669
  %3697 = vmatpush1.bf16.msra.mxu0 %v3668
  %3698 = vmatprep.subr.bf16.mxu0 %v3671
  %3699 = vmatpush1.bf16.msra.mxu0 %v3670
  %3700 = vmatprep.subr.bf16.mxu0 %v3673
  %3701 = vmatpush1.bf16.msra.mxu0 %v3672
  %3702 = vmatprep.subr.bf16.mxu0 0
  %3703 = vmatpush1.bf16.msra.mxu0 0
  %3704 = vmatprep.subr.bf16.mxu0 0
  %3705 = vmatpush1.bf16.msra.mxu0 0
  %3706 = vmatprep.subr.bf16.mxu0 0
  %3707 = vmatpush1.bf16.msra.mxu0 0
  %3708 = vmatprep.subr.bf16.mxu0 0
  %3709 = vmatpush1.bf16.msra.mxu0 0
  %3710 = vmatprep.subr.bf16.mxu0 0
  %3711 = vmatpush1.bf16.msra.mxu0 0
  %3712 = vmatprep.subr.bf16.mxu0 0
  %3713 = vmatpush1.bf16.msra.mxu0 0
  %3714 = vmatprep.subr.bf16.mxu0 0
  %3715 = vmatpush1.bf16.msra.mxu0 0
  %3716 = vmatprep.subr.bf16.mxu0 0
  %3717 = vmatpush1.bf16.msra.mxu0 0
  %3718 = vmatprep.mubr.bf16.mxu0 0
  %3719 = vmatmul.mubr.bf16.gmra.mrb[0].mxu0 %v3682
  %v3720 = vpop.f32.mrb[0].mxu0
  %v3721 = vadd.f32 0.0, %v3720
  %v3722 = vpop.f32.mrb[0].mxu0
  %v3723 = vadd.f32 0.0, %v3722
  %v3724 = vpop.f32.mrb[0].mxu0
  %v3725 = vadd.f32 0.0, %v3724
  %v3726 = vpop.f32.mrb[0].mxu0
  %v3727 = vadd.f32 0.0, %v3726
  %3728 = vmatprep.mubr.bf16.mxu0 0
  %3729 = vmatmul.mubr.bf16.gmra.mrb[0].mxu0 %v3683
  %v3730 = vpop.f32.mrb[0].mxu0
  %v3731 = vadd.f32 0.0, %v3730
  %v3732 = vpop.f32.mrb[0].mxu0
  %v3733 = vadd.f32 0.0, %v3732
  %v3734 = vpop.f32.mrb[0].mxu0
  %v3735 = vadd.f32 0.0, %v3734
  %v3736 = vpop.f32.mrb[0].mxu0
  %v3737 = vadd.f32 0.0, %v3736
  %3738 = vdwg.mxu0
  %v3740 = vlaneseq
  %v3741 = vshrl.u32 %v3740, 7
  %v3742 = vsub.s32 0, %v3741
  %v3743 = vrot.slane %v3652, %v3742
  %v3744 = vlaneseq
  %v3745 = vshrl.u32 %v3744, 7
  %v3746 = vsub.s32 1, %v3745
  %v3747 = vrot.slane %v3652, %v3746
  %v3750 = vmul.f32 %v3743, %v3721
  %v3751 = vmul.f32 %v3747, %v3723
  %v3752 = vmul.f32 %v3743, %v3725
  %v3753 = vmul.f32 %v3747, %v3727
  %v3754 = vmul.f32 %v3743, %v3731
  %v3755 = vmul.f32 %v3747, %v3733
  %v3756 = vmul.f32 %v3743, %v3735
  %v3757 = vmul.f32 %v3747, %v3737
  %v3758 = vadd.f32 %v3465, %v3750
  %v3759 = vadd.f32 %v3466, %v3751
  %v3760 = vadd.f32 %v3467, %v3752
  %v3761 = vadd.f32 %v3468, %v3753
  %v3762 = vadd.f32 %v3469, %v3754
  %v3763 = vadd.f32 %v3470, %v3755
  %v3764 = vadd.f32 %v3471, %v3756
  %v3765 = vadd.f32 %v3472, %v3757
  %3766 = vrot.lane.b32.xlu0 %v1550, 113
  %v3767 = vpop.permute.xlu0 %3766
  %3768 = vrot.lane.b32.xlu0 %v1551, 113
  %v3769 = vpop.permute.xlu0 %3768
  %3770 = vrot.lane.b32.xlu0 %v1552, 113
  %v3771 = vpop.permute.xlu0 %3770
  %3772 = vrot.lane.b32.xlu0 %v1553, 113
  %v3773 = vpop.permute.xlu0 %3772
  %3774 = vrot.lane.b32.xlu0 %v1554, 113
  %v3775 = vpop.permute.xlu0 %3774
  %3776 = vrot.lane.b32.xlu0 %v1555, 113
  %v3777 = vpop.permute.xlu0 %3776
  %3778 = vrot.lane.b32.xlu0 %v1556, 113
  %v3779 = vpop.permute.xlu0 %3778
  %3780 = vrot.lane.b32.xlu0 %v1557, 113
  %v3781 = vpop.permute.xlu0 %3780
  %3782 = vrot.lane.b32.xlu0 %v1558, 113
  %v3783 = vpop.permute.xlu0 %3782
  %3784 = vrot.lane.b32.xlu0 %v1559, 113
  %v3785 = vpop.permute.xlu0 %3784
  %3786 = vrot.lane.b32.xlu0 %v1560, 113
  %v3787 = vpop.permute.xlu0 %3786
  %3788 = vrot.lane.b32.xlu0 %v1561, 113
  %v3789 = vpop.permute.xlu0 %3788
  %3790 = vrot.lane.b32.xlu0 %v1562, 113
  %v3791 = vpop.permute.xlu0 %3790
  %3792 = vrot.lane.b32.xlu0 %v1563, 113
  %v3793 = vpop.permute.xlu0 %3792
  %3794 = vrot.lane.b32.xlu0 %v1564, 113
  %v3795 = vpop.permute.xlu0 %3794
  %3796 = vrot.lane.b32.xlu0 %v1565, 113
  %v3797 = vpop.permute.xlu0 %3796
  %3798 = vrot.lane.b32.xlu0 %v1566, 113
  %v3799 = vpop.permute.xlu0 %3798
  %3800 = vrot.lane.b32.xlu0 %v1567, 113
  %v3801 = vpop.permute.xlu0 %3800
  %3802 = vrot.lane.b32.xlu0 %v1568, 113
  %v3803 = vpop.permute.xlu0 %3802
  %3804 = vrot.lane.b32.xlu0 %v1569, 113
  %v3805 = vpop.permute.xlu0 %3804
  %3806 = vrot.lane.b32.xlu0 %v1570, 113
  %v3807 = vpop.permute.xlu0 %3806
  %3808 = vrot.lane.b32.xlu0 %v1571, 113
  %v3809 = vpop.permute.xlu0 %3808
  %3810 = vrot.lane.b32.xlu0 %v1572, 113
  %v3811 = vpop.permute.xlu0 %3810
  %3812 = vrot.lane.b32.xlu0 %v1573, 113
  %v3813 = vpop.permute.xlu0 %3812
  %3814 = vrot.lane.b32.xlu0 %v1574, 113
  %v3815 = vpop.permute.xlu0 %3814
  %3816 = vrot.lane.b32.xlu0 %v1575, 113
  %v3817 = vpop.permute.xlu0 %3816
  %3818 = vrot.lane.b32.xlu0 %v1576, 113
  %v3819 = vpop.permute.xlu0 %3818
  %3820 = vrot.lane.b32.xlu0 %v1577, 113
  %v3821 = vpop.permute.xlu0 %3820
  %3822 = vrot.lane.b32.xlu0 %v1578, 113
  %v3823 = vpop.permute.xlu0 %3822
  %3824 = vrot.lane.b32.xlu0 %v1579, 113
  %v3825 = vpop.permute.xlu0 %3824
  %3826 = vrot.lane.b32.xlu0 %v1580, 113
  %v3827 = vpop.permute.xlu0 %3826
  %3828 = vrot.lane.b32.xlu0 %v1581, 113
  %v3829 = vpop.permute.xlu0 %3828
  %vm3830 = vcmask 924672
  %v3831 = vsel %vm3830, %v3767, %v3769
  %v3832 = vsel %vm3830, %v3771, %v3773
  %v3833 = vsel %vm3830, %v3775, %v3777
  %v3834 = vsel %vm3830, %v3779, %v3781
  %v3835 = vsel %vm3830, %v3783, %v3785
  %v3836 = vsel %vm3830, %v3787, %v3789
  %v3837 = vsel %vm3830, %v3791, %v3793
  %v3838 = vsel %vm3830, %v3795, %v3797
  %v3839 = vsel %vm3830, %v3799, %v3801
  %v3840 = vsel %vm3830, %v3803, %v3805
  %v3841 = vsel %vm3830, %v3807, %v3809
  %v3842 = vsel %vm3830, %v3811, %v3813
  %v3843 = vsel %vm3830, %v3815, %v3817
  %v3844 = vsel %vm3830, %v3819, %v3821
  %v3845 = vsel %vm3830, %v3823, %v3825
  %v3846 = vsel %vm3830, %v3827, %v3829
  %3879 = vrot.lane.b32.xlu0 %v1550, 53
  %v3880 = vpop.permute.xlu0 %3879
  %3881 = vrot.lane.b32.xlu0 %v1552, 53
  %v3882 = vpop.permute.xlu0 %3881
  %3883 = vrot.lane.b32.xlu0 %v1554, 53
  %v3884 = vpop.permute.xlu0 %3883
  %3885 = vrot.lane.b32.xlu0 %v1556, 53
  %v3886 = vpop.permute.xlu0 %3885
  %3887 = vrot.lane.b32.xlu0 %v1558, 53
  %v3888 = vpop.permute.xlu0 %3887
  %3889 = vrot.lane.b32.xlu0 %v1560, 53
  %v3890 = vpop.permute.xlu0 %3889
  %3891 = vrot.lane.b32.xlu0 %v1562, 53
  %v3892 = vpop.permute.xlu0 %3891
  %3893 = vrot.lane.b32.xlu0 %v1564, 53
  %v3894 = vpop.permute.xlu0 %3893
  %3895 = vrot.lane.b32.xlu0 %v1566, 53
  %v3896 = vpop.permute.xlu0 %3895
  %3897 = vrot.lane.b32.xlu0 %v1568, 53
  %v3898 = vpop.permute.xlu0 %3897
  %3899 = vrot.lane.b32.xlu0 %v1570, 53
  %v3900 = vpop.permute.xlu0 %3899
  %3901 = vrot.lane.b32.xlu0 %v1572, 53
  %v3902 = vpop.permute.xlu0 %3901
  %3903 = vrot.lane.b32.xlu0 %v1574, 53
  %v3904 = vpop.permute.xlu0 %3903
  %3905 = vrot.lane.b32.xlu0 %v1576, 53
  %v3906 = vpop.permute.xlu0 %3905
  %3907 = vrot.lane.b32.xlu0 %v1578, 53
  %v3908 = vpop.permute.xlu0 %3907
  %3909 = vrot.lane.b32.xlu0 %v1580, 53
  %v3910 = vpop.permute.xlu0 %3909
  %vm3927 = vcmask 433152
  %v3928 = vsel %vm3927, %v3769, %v3880
  %v3929 = vsel %vm3927, %v3773, %v3882
  %v3930 = vsel %vm3927, %v3777, %v3884
  %v3931 = vsel %vm3927, %v3781, %v3886
  %v3932 = vsel %vm3927, %v3785, %v3888
  %v3933 = vsel %vm3927, %v3789, %v3890
  %v3934 = vsel %vm3927, %v3793, %v3892
  %v3935 = vsel %vm3927, %v3797, %v3894
  %v3936 = vsel %vm3927, %v3801, %v3896
  %v3937 = vsel %vm3927, %v3805, %v3898
  %v3938 = vsel %vm3927, %v3809, %v3900
  %v3939 = vsel %vm3927, %v3813, %v3902
  %v3940 = vsel %vm3927, %v3817, %v3904
  %v3941 = vsel %vm3927, %v3821, %v3906
  %v3942 = vsel %vm3927, %v3825, %v3908
  %v3943 = vsel %vm3927, %v3829, %v3910
  %s3944 = scalar_lea.vmem %s4, 16
  %v3945 = vld [vmem:[%s3944] sm:$0x3]
  %s3946 = scalar_lea.vmem %s3, 128
  %v3947 = vld [vmem:[%s3946] sm:$0xf]
  %v3948 = vld [vmem:[%s3946 + $0x4] sm:$0xf]
  %v3949 = vld [vmem:[%s3946 + $0x8] sm:$0xf]
  %v3950 = vld [vmem:[%s3946 + $0xc] sm:$0xf]
  %v3951 = vpack.c.bf16 %v3832, %v3831
  %v3952 = vpack.c.bf16 %v3929, %v3928
  %v3953 = vpack.c.bf16 %v3834, %v3833
  %v3954 = vpack.c.bf16 %v3931, %v3930
  %v3955 = vpack.c.bf16 %v3836, %v3835
  %v3956 = vpack.c.bf16 %v3933, %v3932
  %v3957 = vpack.c.bf16 %v3838, %v3837
  %v3958 = vpack.c.bf16 %v3935, %v3934
  %v3959 = vpack.c.bf16 %v3840, %v3839
  %v3960 = vpack.c.bf16 %v3937, %v3936
  %v3961 = vpack.c.bf16 %v3842, %v3841
  %v3962 = vpack.c.bf16 %v3939, %v3938
  %v3963 = vpack.c.bf16 %v3844, %v3843
  %v3964 = vpack.c.bf16 %v3941, %v3940
  %v3965 = vpack.c.bf16 %v3846, %v3845
  %v3966 = vpack.c.bf16 %v3943, %v3942
  %v3971 = vunpack.c.l.b16 %v3947
  %v3972 = vunpack.c.l.b16 %v3948
  %v3973 = vunpack.c.l.b16 %v3949
  %v3974 = vunpack.c.l.b16 %v3950
  %v3975 = vpack.c.b16 %v3972, %v3971
  %v3976 = vpack.c.b16 %v3974, %v3973
  %3979 = vmatprep.subr.bf16.mxu0 %v3952
  %3980 = vmatpush1.bf16.msra.mxu0 %v3951
  %3981 = vmatprep.subr.bf16.mxu0 %v3954
  %3982 = vmatpush1.bf16.msra.mxu0 %v3953
  %3983 = vmatprep.subr.bf16.mxu0 %v3956
  %3984 = vmatpush1.bf16.msra.mxu0 %v3955
  %3985 = vmatprep.subr.bf16.mxu0 %v3958
  %3986 = vmatpush1.bf16.msra.mxu0 %v3957
  %3987 = vmatprep.subr.bf16.mxu0 %v3960
  %3988 = vmatpush1.bf16.msra.mxu0 %v3959
  %3989 = vmatprep.subr.bf16.mxu0 %v3962
  %3990 = vmatpush1.bf16.msra.mxu0 %v3961
  %3991 = vmatprep.subr.bf16.mxu0 %v3964
  %3992 = vmatpush1.bf16.msra.mxu0 %v3963
  %3993 = vmatprep.subr.bf16.mxu0 %v3966
  %3994 = vmatpush1.bf16.msra.mxu0 %v3965
  %3995 = vmatprep.subr.bf16.mxu0 0
  %3996 = vmatpush1.bf16.msra.mxu0 0
  %3997 = vmatprep.subr.bf16.mxu0 0
  %3998 = vmatpush1.bf16.msra.mxu0 0
  %3999 = vmatprep.subr.bf16.mxu0 0
  %4000 = vmatpush1.bf16.msra.mxu0 0
  %4001 = vmatprep.subr.bf16.mxu0 0
  %4002 = vmatpush1.bf16.msra.mxu0 0
  %4003 = vmatprep.subr.bf16.mxu0 0
  %4004 = vmatpush1.bf16.msra.mxu0 0
  %4005 = vmatprep.subr.bf16.mxu0 0
  %4006 = vmatpush1.bf16.msra.mxu0 0
  %4007 = vmatprep.subr.bf16.mxu0 0
  %4008 = vmatpush1.bf16.msra.mxu0 0
  %4009 = vmatprep.subr.bf16.mxu0 0
  %4010 = vmatpush1.bf16.msra.mxu0 0
  %4011 = vmatprep.mubr.bf16.mxu0 0
  %4012 = vmatmul.mubr.bf16.gmra.mrb[0].mxu0 %v3975
  %v4013 = vpop.f32.mrb[0].mxu0
  %v4014 = vadd.f32 0.0, %v4013
  %v4015 = vpop.f32.mrb[0].mxu0
  %v4016 = vadd.f32 0.0, %v4015
  %v4017 = vpop.f32.mrb[0].mxu0
  %v4018 = vadd.f32 0.0, %v4017
  %v4019 = vpop.f32.mrb[0].mxu0
  %v4020 = vadd.f32 0.0, %v4019
  %4021 = vmatprep.mubr.bf16.mxu0 0
  %4022 = vmatmul.mubr.bf16.gmra.mrb[0].mxu0 %v3976
  %v4023 = vpop.f32.mrb[0].mxu0
  %v4024 = vadd.f32 0.0, %v4023
  %v4025 = vpop.f32.mrb[0].mxu0
  %v4026 = vadd.f32 0.0, %v4025
  %v4027 = vpop.f32.mrb[0].mxu0
  %v4028 = vadd.f32 0.0, %v4027
  %v4029 = vpop.f32.mrb[0].mxu0
  %v4030 = vadd.f32 0.0, %v4029
  %4031 = vdwg.mxu0
  %v4033 = vlaneseq
  %v4034 = vshrl.u32 %v4033, 7
  %v4035 = vsub.s32 0, %v4034
  %v4036 = vrot.slane %v3945, %v4035
  %v4037 = vlaneseq
  %v4038 = vshrl.u32 %v4037, 7
  %v4039 = vsub.s32 1, %v4038
  %v4040 = vrot.slane %v3945, %v4039
  %v4043 = vmul.f32 %v4036, %v4014
  %v4044 = vmul.f32 %v4040, %v4016
  %v4045 = vmul.f32 %v4036, %v4018
  %v4046 = vmul.f32 %v4040, %v4020
  %v4047 = vmul.f32 %v4036, %v4024
  %v4048 = vmul.f32 %v4040, %v4026
  %v4049 = vmul.f32 %v4036, %v4028
  %v4050 = vmul.f32 %v4040, %v4030
  %v4051 = vadd.f32 %v3758, %v4043
  %v4052 = vadd.f32 %v3759, %v4044
  %v4053 = vadd.f32 %v3760, %v4045
  %v4054 = vadd.f32 %v3761, %v4046
  %v4055 = vadd.f32 %v3762, %v4047
  %v4056 = vadd.f32 %v3763, %v4048
  %v4057 = vadd.f32 %v3764, %v4049
  %v4058 = vadd.f32 %v3765, %v4050
  %4059 = vst [vmem:[%s5] sm:$0xff] %v4051
  %4060 = vst.msk [vmem:[%s5 + $0x8] sm:$0xff] %vm941, %v4052
  %4061 = vst [vmem:[%s5 + $0x10] sm:$0xff] %v4053
  %4062 = vst.msk [vmem:[%s5 + $0x18] sm:$0xff] %vm941, %v4054
  %4063 = vst [vmem:[%s5 + $0x20] sm:$0xff] %v4055
  %4064 = vst.msk [vmem:[%s5 + $0x28] sm:$0xff] %vm941, %v4056
  %4065 = vst [vmem:[%s5 + $0x30] sm:$0xff] %v4057
  %4066 = vst.msk [vmem:[%s5 + $0x38] sm:$0xff] %vm941, %v4058
  // Predicated region
  $region22: #{forward.1} parent=0 // pred_check
    _
  $region23: #{forward.1} parent=0 // pred_check_branch
    %4068 = sbr.rel (0) target = $region25
  $region24: #{forward.1} parent=0 // pred_region
    _
  $region25: #{forward.1} parent=0 // pred_fallthru
    _
  // Predicated region
  $region26: #{forward.1} parent=0 // pred_check
    _
  $region27: #{forward.1} parent=0 // pred_check_branch
    %4070 = sbr.rel (0) target = $region29
  $region28: #{forward.1} parent=0 // pred_region
    _
  $region29: #{forward.1} parent=0 // pred_fallthru
    _

</llo_original>
